<compile_context>
chip_gen: v6e
topology: v6e:2x2x1
jax: 0.10.0
libtpu: 0.0.40
codegen_flags: <defaults>
</compile_context>

<pallas_src>
import functools
import numpy as np
import jax
import jax.numpy as jnp
from jax import lax
from jax.experimental import pallas as pl
from jax.experimental.pallas import tpu as pltpu


# ---------------------------------------------------------------- kernels ---

def _layernorm(x, gamma, beta, eps):
    mean = jnp.mean(x, axis=-1, keepdims=True)
    var = jnp.mean(jnp.square(x - mean), axis=-1, keepdims=True)
    return (x - mean) * lax.rsqrt(var + eps) * gamma + beta


def encoder_stack_kernel(x_ref, g0_ref, b0_ref,
                         wq_ref, wk_ref, wv_ref, wh_ref, bh_ref,
                         g1_ref, b1_ref, w1_ref, bf1_ref,
                         w2_ref, bf2_ref, g2_ref, b2_ref,
                         out_ref, *, num_layers, num_heads):
    TB, S, D = x_ref.shape
    H = num_heads
    dk = D // H
    M = TB * S
    scale = float(1.0 / np.sqrt(dk))                 # PyTorch: Q / sqrt(d_k)

    # (TB, S, D) -> (TB*S, D): leading-dim merge (layout no-op).  The whole
    # row block becomes the MXU M dimension for projections and the FFN.
    x = x_ref[...].reshape(M, D)

    # Fused embedding LayerNorm (eps=1e-12) prologue — no standalone HBM pass.
    x = _layernorm(x, g0_ref[...], b0_ref[...], 1e-12)

    def to_heads(t):
        # (M, D) f32 -> (H*TB, S, dk): per-head lane slice + leading-dim
        # reshape + one concat, all in registers (no scratch, no matmuls).
        parts = [t[:, h * dk:(h + 1) * dk].reshape(TB, S, dk) for h in range(H)]
        return jnp.concatenate(parts, axis=0).astype(jnp.bfloat16)

    # Static unroll over layers; all stacked weights stay VMEM-resident.
    # For stacks whose weights exceed VMEM, stream next-layer weights with
    # pltpu.emit_pipeline over the layer axis instead.
    for l in range(num_layers):
        # --- Multi-head self-attention ----------------------------------
        xb = x.astype(jnp.bfloat16)
        q = jnp.dot(xb, wq_ref[l], preferred_element_type=jnp.float32)
        k = jnp.dot(xb, wk_ref[l], preferred_element_type=jnp.float32)
        v = jnp.dot(xb, wv_ref[l], preferred_element_type=jnp.float32)

        qh, kh, vh = to_heads(q), to_heads(k), to_heads(v)   # (H*TB, S, dk)

        # One batched score matmul and one batched context matmul for every
        # (sequence, head) in the block.
        scores = jnp.einsum('bqd,bkd->bqk', qh, kh,
                            preferred_element_type=jnp.float32) * scale
        scores = scores - jnp.max(scores, axis=-1, keepdims=True)
        e = jnp.exp(scores)
        inv = pl.reciprocal(jnp.sum(e, axis=-1, keepdims=True), approx=True)
        a = (e * inv).astype(jnp.bfloat16)                   # softmax(dim=-1)
        ctx = jnp.einsum('bqk,bkd->bqd', a, vh,
                         preferred_element_type=jnp.float32)  # (H*TB, S, dk)

        # Regroup heads -> (M, D) in registers (== group_heads / concat), fed
        # straight into the full-width output projection.
        hcat = jnp.concatenate(
            [ctx[h * TB:(h + 1) * TB].reshape(M, dk) for h in range(H)],
            axis=-1).astype(jnp.bfloat16)

        attn = jnp.dot(hcat, wh_ref[l],
                       preferred_element_type=jnp.float32) + bh_ref[l]
        out1 = _layernorm(x + attn, g1_ref[l], b1_ref[l], 1e-6)

        # --- Position-wise FFN (dropout = identity in eval mode) ---------
        # For real d_ff, tile this over the d_ff axis to bound the live
        # (M, d_ff) f32 intermediate; at this size materialize it directly.
        h1 = jnp.dot(out1.astype(jnp.bfloat16), w1_ref[l],
                     preferred_element_type=jnp.float32) + bf1_ref[l]
        h1 = jnp.maximum(h1, 0.0)
        h2 = jnp.dot(h1.astype(jnp.bfloat16), w2_ref[l],
                     preferred_element_type=jnp.float32) + bf2_ref[l]

        x = _layernorm(out1 + h2, g2_ref[l], b2_ref[l], 1e-6)

    out_ref[...] = x.reshape(TB, S, D)


# --------------------------------------------------------------- wrappers ---

def _resident_spec(a):
    """Full-array block with a constant index_map: VMEM-resident weight."""
    n = a.ndim
    return pl.BlockSpec(a.shape, lambda b, _n=n: (0,) * _n)


def _pick_seqs_per_block(batch, seq_len, target_rows=512):
    """Sequences per grid step so rows-per-step ~= target_rows, dividing B."""
    tb = max(1, min(batch, target_rows // max(seq_len, 1)))
    while batch % tb:
        tb -= 1
    return tb


def _layernorm_ref(x, g, b, eps):
    mean = x.mean(-1, keepdims=True)
    var = ((x - mean) ** 2).mean(-1, keepdims=True)
    return (x - mean) / jnp.sqrt(var + eps) * g + b


def encoder_forward(input_ids, params, num_heads, target_rows=512):
    emb = params['emb']
    B, S = input_ids.shape
    D = emb['word'].shape[1]

    # Embedding gather + positional add kept as XLA glue (table lookup has no
    # clean per-tile Pallas equivalent at this granularity); the embedding
    # LayerNorm is fused into the kernel prologue.
    x = jnp.take(emb['word'], input_ids, axis=0) + emb['pos'][:S][None]

    layers = params['layers']
    if not layers:
        return _layernorm_ref(x, emb['g'], emb['b'], 1e-12)

    # Stack per-layer weights along a leading layer axis (VMEM-resident).
    W = {k: jnp.stack([p[k] for p in layers], axis=0) for k in layers[0]}

    TB = _pick_seqs_per_block(B, S, target_rows)
    grid = (B // TB,)
    act_spec = pl.BlockSpec((TB, S, D), lambda b: (b, 0, 0))

    weight_inputs = [emb['g'], emb['b'],
                     W['wq'], W['wk'], W['wv'], W['wh'], W['bh'],
                     W['g1'], W['b1'], W['w1'], W['bf1'],
                     W['w2'], W['bf2'], W['g2'], W['b2']]
    in_specs = [act_spec] + [_resident_spec(a) for a in weight_inputs]

    kernel = functools.partial(encoder_stack_kernel,
                               num_layers=len(layers), num_heads=num_heads)

    return pl.pallas_call(
        kernel,
        grid=grid,
        out_shape=jax.ShapeDtypeStruct((B, S, D), jnp.float32),
        in_specs=in_specs,
        out_specs=act_spec,
        compiler_params=pltpu.CompilerParams(
            dimension_semantics=("parallel",),
            vmem_limit_bytes=48 * 1024 * 1024),
    )(x, *weight_inputs)


# ------------------------------------------------------------ param setup ---

def sinusoidal_pos_emb(nb_p, dim):
    theta = np.array([[p / np.power(10000, 2 * (j // 2) / dim) for j in range(dim)]
                      for p in range(nb_p)])
    E = np.zeros((nb_p, dim), dtype=np.float32)
    E[:, 0::2] = np.sin(theta[:, 0::2])
    E[:, 1::2] = np.cos(theta[:, 1::2])
    return jnp.asarray(E)


def init_params(key, num_layers, d_model, num_heads, d_ff, vocab, max_pos):
    keys = jax.random.split(key, 1 + num_layers)

    word = jax.random.normal(keys[0], (vocab, d_model), jnp.float32)
    word = word.at[1].set(0.0)                      # nn.Embedding(padding_idx=1)
    emb = dict(word=word,
               pos=sinusoidal_pos_emb(max_pos, d_model),
               g=jnp.ones((1, d_model), jnp.float32),
               b=jnp.zeros((1, d_model), jnp.float32))

    def dense(k, fan_in, shape, dtype=jnp.float32):
        bound = 1.0 / np.sqrt(fan_in)
        return jax.random.uniform(k, shape, jnp.float32, -bound, bound).astype(dtype)

    bf16 = jnp.bfloat16                             # matmul operand dtype
    layers = []
    for i in range(num_layers):
        lk = jax.random.split(keys[1 + i], 9)
        layers.append(dict(
            wq=dense(lk[0], d_model, (d_model, d_model), bf16),
            wk=dense(lk[1], d_model, (d_model, d_model), bf16),
            wv=dense(lk[2], d_model, (d_model, d_model), bf16),
            wh=dense(lk[3], d_model, (d_model, d_model), bf16),
            bh=dense(lk[4], d_model, (1, d_model)),
            g1=jnp.ones((1, d_model), jnp.float32),
            b1=jnp.zeros((1, d_model), jnp.float32),
            w1=dense(lk[5], d_model, (d_model, d_ff), bf16),
            bf1=dense(lk[6], d_model, (1, d_ff)),
            w2=dense(lk[7], d_ff, (d_ff, d_model), bf16),
            bf2=dense(lk[8], d_ff, (1, d_model)),
            g2=jnp.ones((1, d_model), jnp.float32),
            b2=jnp.zeros((1, d_model), jnp.float32),
        ))
    return dict(emb=emb, layers=layers)


# ---------------------------------------------------------- JAX reference ---

def encoder_reference(input_ids, params, num_heads):
    emb = params['emb']
    B, S = input_ids.shape
    D = emb['word'].shape[1]
    dk = D // num_heads
    x = jnp.take(emb['word'], input_ids, axis=0) + emb['pos'][:S][None]
    x = _layernorm_ref(x, emb['g'], emb['b'], 1e-12)
    for p in params['layers']:
        wq = p['wq'].astype(jnp.float32)
        wk = p['wk'].astype(jnp.float32)
        wv = p['wv'].astype(jnp.float32)
        wh = p['wh'].astype(jnp.float32)
        w1 = p['w1'].astype(jnp.float32)
        w2 = p['w2'].astype(jnp.float32)
        Q = (x @ wq).reshape(B, S, num_heads, dk).transpose(0, 2, 1, 3) / np.sqrt(dk)
        K = (x @ wk).reshape(B, S, num_heads, dk).transpose(0, 2, 1, 3)
        V = (x @ wv).reshape(B, S, num_heads, dk).transpose(0, 2, 1, 3)
        A = jax.nn.softmax(Q @ jnp.swapaxes(K, -1, -2), axis=-1)
        H = (A @ V).transpose(0, 2, 1, 3).reshape(B, S, D)
        attn = H @ wh + p['bh']
        out1 = _layernorm_ref(x + attn, p['g1'], p['b1'], 1e-6)
        ffn = jax.nn.relu(out1 @ w1 + p['bf1']) @ w2 + p['bf2']
        x = _layernorm_ref(out1 + ffn, p['g2'], p['b2'], 1e-6)
    return x


# ----------------------------------------------------------------- driver ---

if __name__ == "__main__":
    num_layers, d_model, num_heads, d_ff = 2, 32, 4, 64
    input_vocab_size, max_position_encoding = 50, 16
    B, S = 2, 8

    key = jax.random.PRNGKey(0)
    kp, kx = jax.random.split(key)
    params = init_params(kp, num_layers, d_model, num_heads, d_ff,
                         input_vocab_size, max_position_encoding)
    input_ids = jax.random.randint(kx, (B, S), 0, input_vocab_size, dtype=jnp.int32)

    fwd = jax.jit(lambda ids, prm: encoder_forward(ids, prm, num_heads))
    out = jax.block_until_ready(fwd(input_ids, params))

    ref = encoder_reference(input_ids, params, num_heads)
    assert out.shape == (B, S, d_model)
    # bf16 matmul operands (f32 accumulate) + approx-reciprocal softmax vs a
    # pure f32 reference -> loose tolerance.
    np.testing.assert_allclose(np.asarray(out), np.asarray(ref),
                               rtol=5e-2, atol=5e-2)
    print("KERNEL_OK")
</pallas_src>

<mosaic_0001>
module attributes {stable_mosaic.version = 11 : i64} {
  func.func @encoder_stack_kernel(%arg0: i32, %arg1: memref<2x8x32xf32, #tpu.memory_space<vmem>>, %arg2: memref<1x32xf32, #tpu.memory_space<vmem>>, %arg3: memref<1x32xf32, #tpu.memory_space<vmem>>, %arg4: memref<2x32x32xbf16, #tpu.memory_space<vmem>>, %arg5: memref<2x32x32xbf16, #tpu.memory_space<vmem>>, %arg6: memref<2x32x32xbf16, #tpu.memory_space<vmem>>, %arg7: memref<2x32x32xbf16, #tpu.memory_space<vmem>>, %arg8: memref<2x1x32xf32, #tpu.memory_space<vmem>>, %arg9: memref<2x1x32xf32, #tpu.memory_space<vmem>>, %arg10: memref<2x1x32xf32, #tpu.memory_space<vmem>>, %arg11: memref<2x32x64xbf16, #tpu.memory_space<vmem>>, %arg12: memref<2x1x64xf32, #tpu.memory_space<vmem>>, %arg13: memref<2x64x32xbf16, #tpu.memory_space<vmem>>, %arg14: memref<2x1x32xf32, #tpu.memory_space<vmem>>, %arg15: memref<2x1x32xf32, #tpu.memory_space<vmem>>, %arg16: memref<2x1x32xf32, #tpu.memory_space<vmem>>, %arg17: memref<2x8x32xf32, #tpu.memory_space<vmem>>) attributes {dimension_semantics = [#tpu.dimension_semantics<parallel>], iteration_bounds = array<i64: 1>, scalar_prefetch = 0 : i64, scratch_operands = 0 : i64, tpu.core_type = #tpu.core_type<tc>, window_params = [{transform_indices = @transform_0, window_bounds = array<i64: 2, 8, 32>}, {pipeline_mode = #tpu.pipeline_mode<synchronous>, transform_indices = @transform_1, window_bounds = array<i64: 1, 32>}, {pipeline_mode = #tpu.pipeline_mode<synchronous>, transform_indices = @transform_2, window_bounds = array<i64: 1, 32>}, {pipeline_mode = #tpu.pipeline_mode<synchronous>, transform_indices = @transform_3, window_bounds = array<i64: 2, 32, 32>}, {pipeline_mode = #tpu.pipeline_mode<synchronous>, transform_indices = @transform_4, window_bounds = array<i64: 2, 32, 32>}, {pipeline_mode = #tpu.pipeline_mode<synchronous>, transform_indices = @transform_5, window_bounds = array<i64: 2, 32, 32>}, {pipeline_mode = #tpu.pipeline_mode<synchronous>, transform_indices = @transform_6, window_bounds = array<i64: 2, 32, 32>}, {pipeline_mode = #tpu.pipeline_mode<synchronous>, transform_indices = @transform_7, window_bounds = array<i64: 2, 1, 32>}, {pipeline_mode = #tpu.pipeline_mode<synchronous>, transform_indices = @transform_8, window_bounds = array<i64: 2, 1, 32>}, {pipeline_mode = #tpu.pipeline_mode<synchronous>, transform_indices = @transform_9, window_bounds = array<i64: 2, 1, 32>}, {pipeline_mode = #tpu.pipeline_mode<synchronous>, transform_indices = @transform_10, window_bounds = array<i64: 2, 32, 64>}, {pipeline_mode = #tpu.pipeline_mode<synchronous>, transform_indices = @transform_11, window_bounds = array<i64: 2, 1, 64>}, {pipeline_mode = #tpu.pipeline_mode<synchronous>, transform_indices = @transform_12, window_bounds = array<i64: 2, 64, 32>}, {pipeline_mode = #tpu.pipeline_mode<synchronous>, transform_indices = @transform_13, window_bounds = array<i64: 2, 1, 32>}, {pipeline_mode = #tpu.pipeline_mode<synchronous>, transform_indices = @transform_14, window_bounds = array<i64: 2, 1, 32>}, {pipeline_mode = #tpu.pipeline_mode<synchronous>, transform_indices = @transform_15, window_bounds = array<i64: 2, 1, 32>}, {transform_indices = @transform_16, window_bounds = array<i64: 2, 8, 32>}]} {
    %c0 = arith.constant 0 : index
    %c0_0 = arith.constant 0 : index
    %c0_1 = arith.constant 0 : index
    %0 = vector.load %arg1[%c0, %c0_0, %c0_1] : memref<2x8x32xf32, #tpu.memory_space<vmem>>, vector<2x8x32xf32>
    %1 = vector.shape_cast %0 : vector<2x8x32xf32> to vector<16x32xf32>
    %c0_2 = arith.constant 0 : index
    %c0_3 = arith.constant 0 : index
    %2 = vector.load %arg2[%c0_2, %c0_3] : memref<1x32xf32, #tpu.memory_space<vmem>>, vector<1x32xf32>
    %c0_4 = arith.constant 0 : index
    %c0_5 = arith.constant 0 : index
    %3 = vector.load %arg3[%c0_4, %c0_5] : memref<1x32xf32, #tpu.memory_space<vmem>>, vector<1x32xf32>
    %cst = arith.constant dense<0.000000e+00> : vector<16xf32>
    %4 = vector.multi_reduction <add>, %1, %cst [1] : vector<16x32xf32> to vector<16xf32>
    %5 = vector.shape_cast %4 : vector<16xf32> to vector<16x1xf32>
    %cst_6 = arith.constant 3.200000e+01 : f32
    %6 = vector.broadcast %cst_6 : f32 to vector<16x1xf32>
    %7 = arith.divf %5, %6 : vector<16x1xf32>
    %8 = vector.broadcast %7 : vector<16x1xf32> to vector<16x32xf32>
    %9 = arith.subf %1, %8 : vector<16x32xf32>
    %10 = arith.mulf %9, %9 : vector<16x32xf32>
    %cst_7 = arith.constant dense<0.000000e+00> : vector<16xf32>
    %11 = vector.multi_reduction <add>, %10, %cst_7 [1] : vector<16x32xf32> to vector<16xf32>
    %12 = vector.shape_cast %11 : vector<16xf32> to vector<16x1xf32>
    %cst_8 = arith.constant 3.200000e+01 : f32
    %13 = vector.broadcast %cst_8 : f32 to vector<16x1xf32>
    %14 = arith.divf %12, %13 : vector<16x1xf32>
    %15 = vector.broadcast %7 : vector<16x1xf32> to vector<16x32xf32>
    %16 = arith.subf %1, %15 : vector<16x32xf32>
    %cst_9 = arith.constant 9.99999996E-13 : f32
    %17 = vector.broadcast %cst_9 : f32 to vector<16x1xf32>
    %18 = arith.addf %14, %17 : vector<16x1xf32>
    %19 = math.rsqrt %18 : vector<16x1xf32>
    %20 = vector.broadcast %19 : vector<16x1xf32> to vector<16x32xf32>
    %21 = arith.mulf %16, %20 : vector<16x32xf32>
    %22 = vector.broadcast %2 : vector<1x32xf32> to vector<16x32xf32>
    %23 = arith.mulf %21, %22 : vector<16x32xf32>
    %24 = vector.broadcast %3 : vector<1x32xf32> to vector<16x32xf32>
    %25 = arith.addf %23, %24 : vector<16x32xf32>
    %26 = arith.truncf %25 : vector<16x32xf32> to vector<16x32xbf16>
    %c0_10 = arith.constant 0 : index
    %c0_11 = arith.constant 0 : index
    %c0_12 = arith.constant 0 : index
    %27 = vector.load %arg4[%c0_10, %c0_11, %c0_12] : memref<2x32x32xbf16, #tpu.memory_space<vmem>>, vector<1x32x32xbf16>
    %28 = vector.shape_cast %27 : vector<1x32x32xbf16> to vector<32x32xbf16>
    %cst_13 = arith.constant dense<0.000000e+00> : vector<16x32xf32>
    %29 = tpu.matmul %26, %28, %cst_13 {dimension_numbers = #tpu.dot_dimension_numbers<[1], [0], [0], [1], [0, 0, 1, 1], [], []>} : vector<16x32xbf16>, vector<32x32xbf16>, vector<16x32xf32> -> vector<16x32xf32>
    %c0_14 = arith.constant 0 : index
    %c0_15 = arith.constant 0 : index
    %c0_16 = arith.constant 0 : index
    %30 = vector.load %arg5[%c0_14, %c0_15, %c0_16] : memref<2x32x32xbf16, #tpu.memory_space<vmem>>, vector<1x32x32xbf16>
    %31 = vector.shape_cast %30 : vector<1x32x32xbf16> to vector<32x32xbf16>
    %cst_17 = arith.constant dense<0.000000e+00> : vector<16x32xf32>
    %32 = tpu.matmul %26, %31, %cst_17 {dimension_numbers = #tpu.dot_dimension_numbers<[1], [0], [0], [1], [0, 0, 1, 1], [], []>} : vector<16x32xbf16>, vector<32x32xbf16>, vector<16x32xf32> -> vector<16x32xf32>
    %c0_18 = arith.constant 0 : index
    %c0_19 = arith.constant 0 : index
    %c0_20 = arith.constant 0 : index
    %33 = vector.load %arg6[%c0_18, %c0_19, %c0_20] : memref<2x32x32xbf16, #tpu.memory_space<vmem>>, vector<1x32x32xbf16>
    %34 = vector.shape_cast %33 : vector<1x32x32xbf16> to vector<32x32xbf16>
    %cst_21 = arith.constant dense<0.000000e+00> : vector<16x32xf32>
    %35 = tpu.matmul %26, %34, %cst_21 {dimension_numbers = #tpu.dot_dimension_numbers<[1], [0], [0], [1], [0, 0, 1, 1], [], []>} : vector<16x32xbf16>, vector<32x32xbf16>, vector<16x32xf32> -> vector<16x32xf32>
    %36 = vector.extract_strided_slice %29 {offsets = [0, 0], sizes = [16, 8], strides = [1, 1]} : vector<16x32xf32> to vector<16x8xf32>
    %37 = vector.shape_cast %36 : vector<16x8xf32> to vector<2x8x8xf32>
    %38 = vector.extract_strided_slice %29 {offsets = [0, 8], sizes = [16, 8], strides = [1, 1]} : vector<16x32xf32> to vector<16x8xf32>
    %39 = vector.shape_cast %38 : vector<16x8xf32> to vector<2x8x8xf32>
    %40 = vector.extract_strided_slice %29 {offsets = [0, 16], sizes = [16, 8], strides = [1, 1]} : vector<16x32xf32> to vector<16x8xf32>
    %41 = vector.shape_cast %40 : vector<16x8xf32> to vector<2x8x8xf32>
    %42 = vector.extract_strided_slice %29 {offsets = [0, 24], sizes = [16, 8], strides = [1, 1]} : vector<16x32xf32> to vector<16x8xf32>
    %43 = vector.shape_cast %42 : vector<16x8xf32> to vector<2x8x8xf32>
    %44 = tpu.concatenate %37, %39, %41, %43 in 0 : vector<2x8x8xf32>, vector<2x8x8xf32>, vector<2x8x8xf32>, vector<2x8x8xf32> -> vector<8x8x8xf32>
    %45 = arith.truncf %44 : vector<8x8x8xf32> to vector<8x8x8xbf16>
    %46 = vector.extract_strided_slice %32 {offsets = [0, 0], sizes = [16, 8], strides = [1, 1]} : vector<16x32xf32> to vector<16x8xf32>
    %47 = vector.shape_cast %46 : vector<16x8xf32> to vector<2x8x8xf32>
    %48 = vector.extract_strided_slice %32 {offsets = [0, 8], sizes = [16, 8], strides = [1, 1]} : vector<16x32xf32> to vector<16x8xf32>
    %49 = vector.shape_cast %48 : vector<16x8xf32> to vector<2x8x8xf32>
    %50 = vector.extract_strided_slice %32 {offsets = [0, 16], sizes = [16, 8], strides = [1, 1]} : vector<16x32xf32> to vector<16x8xf32>
    %51 = vector.shape_cast %50 : vector<16x8xf32> to vector<2x8x8xf32>
    %52 = vector.extract_strided_slice %32 {offsets = [0, 24], sizes = [16, 8], strides = [1, 1]} : vector<16x32xf32> to vector<16x8xf32>
    %53 = vector.shape_cast %52 : vector<16x8xf32> to vector<2x8x8xf32>
    %54 = tpu.concatenate %47, %49, %51, %53 in 0 : vector<2x8x8xf32>, vector<2x8x8xf32>, vector<2x8x8xf32>, vector<2x8x8xf32> -> vector<8x8x8xf32>
    %55 = arith.truncf %54 : vector<8x8x8xf32> to vector<8x8x8xbf16>
    %56 = vector.extract_strided_slice %35 {offsets = [0, 0], sizes = [16, 8], strides = [1, 1]} : vector<16x32xf32> to vector<16x8xf32>
    %57 = vector.shape_cast %56 : vector<16x8xf32> to vector<2x8x8xf32>
    %58 = vector.extract_strided_slice %35 {offsets = [0, 8], sizes = [16, 8], strides = [1, 1]} : vector<16x32xf32> to vector<16x8xf32>
    %59 = vector.shape_cast %58 : vector<16x8xf32> to vector<2x8x8xf32>
    %60 = vector.extract_strided_slice %35 {offsets = [0, 16], sizes = [16, 8], strides = [1, 1]} : vector<16x32xf32> to vector<16x8xf32>
    %61 = vector.shape_cast %60 : vector<16x8xf32> to vector<2x8x8xf32>
    %62 = vector.extract_strided_slice %35 {offsets = [0, 24], sizes = [16, 8], strides = [1, 1]} : vector<16x32xf32> to vector<16x8xf32>
    %63 = vector.shape_cast %62 : vector<16x8xf32> to vector<2x8x8xf32>
    %64 = tpu.concatenate %57, %59, %61, %63 in 0 : vector<2x8x8xf32>, vector<2x8x8xf32>, vector<2x8x8xf32>, vector<2x8x8xf32> -> vector<8x8x8xf32>
    %65 = arith.truncf %64 : vector<8x8x8xf32> to vector<8x8x8xbf16>
    "tpu.trace_start"() <{level = 10 : i32, message = "bqd,bkd->bqk"}> : () -> ()
    %cst_22 = arith.constant dense<0.000000e+00> : vector<8x8x8xf32>
    %66 = tpu.matmul %45, %55, %cst_22 {dimension_numbers = #tpu.dot_dimension_numbers<[2], [2], [1], [1], [0, 0, 0, 1, 1, 1], [0], [0]>} : vector<8x8x8xbf16>, vector<8x8x8xbf16>, vector<8x8x8xf32> -> vector<8x8x8xf32>
    "tpu.trace_stop"() : () -> ()
    %cst_23 = arith.constant 0.353553385 : f32
    %67 = vector.broadcast %cst_23 : f32 to vector<8x8x8xf32>
    %68 = arith.mulf %66, %67 : vector<8x8x8xf32>
    %cst_24 = arith.constant dense<0xFF800000> : vector<8x8xf32>
    %69 = vector.multi_reduction <maximumf>, %68, %cst_24 [2] : vector<8x8x8xf32> to vector<8x8xf32>
    %70 = vector.shape_cast %69 : vector<8x8xf32> to vector<8x8x1xf32>
    %71 = vector.broadcast %70 : vector<8x8x1xf32> to vector<8x8x8xf32>
    %72 = arith.subf %68, %71 : vector<8x8x8xf32>
    %73 = math.exp %72 : vector<8x8x8xf32>
    %cst_25 = arith.constant dense<0.000000e+00> : vector<8x8xf32>
    %74 = vector.multi_reduction <add>, %73, %cst_25 [2] : vector<8x8x8xf32> to vector<8x8xf32>
    %75 = vector.shape_cast %74 : vector<8x8xf32> to vector<8x8x1xf32>
    %76 = tpu.reciprocal %75 {approx = true} : vector<8x8x1xf32> -> vector<8x8x1xf32>
    %77 = vector.broadcast %76 : vector<8x8x1xf32> to vector<8x8x8xf32>
    %78 = arith.mulf %73, %77 : vector<8x8x8xf32>
    %79 = arith.truncf %78 : vector<8x8x8xf32> to vector<8x8x8xbf16>
    "tpu.trace_start"() <{level = 10 : i32, message = "bqk,bkd->bqd"}> : () -> ()
    %cst_26 = arith.constant dense<0.000000e+00> : vector<8x8x8xf32>
    %80 = tpu.matmul %79, %65, %cst_26 {dimension_numbers = #tpu.dot_dimension_numbers<[2], [1], [1], [2], [0, 0, 0, 1, 1, 2], [0], [0]>} : vector<8x8x8xbf16>, vector<8x8x8xbf16>, vector<8x8x8xf32> -> vector<8x8x8xf32>
    "tpu.trace_stop"() : () -> ()
    %81 = vector.extract_strided_slice %80 {offsets = [0, 0, 0], sizes = [2, 8, 8], strides = [1, 1, 1]} : vector<8x8x8xf32> to vector<2x8x8xf32>
    %82 = vector.shape_cast %81 : vector<2x8x8xf32> to vector<16x8xf32>
    %83 = vector.extract_strided_slice %80 {offsets = [2, 0, 0], sizes = [2, 8, 8], strides = [1, 1, 1]} : vector<8x8x8xf32> to vector<2x8x8xf32>
    %84 = vector.shape_cast %83 : vector<2x8x8xf32> to vector<16x8xf32>
    %85 = vector.extract_strided_slice %80 {offsets = [4, 0, 0], sizes = [2, 8, 8], strides = [1, 1, 1]} : vector<8x8x8xf32> to vector<2x8x8xf32>
    %86 = vector.shape_cast %85 : vector<2x8x8xf32> to vector<16x8xf32>
    %87 = vector.extract_strided_slice %80 {offsets = [6, 0, 0], sizes = [2, 8, 8], strides = [1, 1, 1]} : vector<8x8x8xf32> to vector<2x8x8xf32>
    %88 = vector.shape_cast %87 : vector<2x8x8xf32> to vector<16x8xf32>
    %89 = tpu.concatenate %82, %84, %86, %88 in 1 : vector<16x8xf32>, vector<16x8xf32>, vector<16x8xf32>, vector<16x8xf32> -> vector<16x32xf32>
    %90 = arith.truncf %89 : vector<16x32xf32> to vector<16x32xbf16>
    %c0_27 = arith.constant 0 : index
    %c0_28 = arith.constant 0 : index
    %c0_29 = arith.constant 0 : index
    %91 = vector.load %arg7[%c0_27, %c0_28, %c0_29] : memref<2x32x32xbf16, #tpu.memory_space<vmem>>, vector<1x32x32xbf16>
    %92 = vector.shape_cast %91 : vector<1x32x32xbf16> to vector<32x32xbf16>
    %cst_30 = arith.constant dense<0.000000e+00> : vector<16x32xf32>
    %93 = tpu.matmul %90, %92, %cst_30 {dimension_numbers = #tpu.dot_dimension_numbers<[1], [0], [0], [1], [0, 0, 1, 1], [], []>} : vector<16x32xbf16>, vector<32x32xbf16>, vector<16x32xf32> -> vector<16x32xf32>
    %c0_31 = arith.constant 0 : index
    %c0_32 = arith.constant 0 : index
    %c0_33 = arith.constant 0 : index
    %94 = vector.load %arg8[%c0_31, %c0_32, %c0_33] : memref<2x1x32xf32, #tpu.memory_space<vmem>>, vector<1x1x32xf32>
    %95 = vector.shape_cast %94 : vector<1x1x32xf32> to vector<1x32xf32>
    %96 = vector.broadcast %95 : vector<1x32xf32> to vector<16x32xf32>
    %97 = arith.addf %93, %96 : vector<16x32xf32>
    %98 = arith.addf %25, %97 : vector<16x32xf32>
    %c0_34 = arith.constant 0 : index
    %c0_35 = arith.constant 0 : index
    %c0_36 = arith.constant 0 : index
    %99 = vector.load %arg9[%c0_34, %c0_35, %c0_36] : memref<2x1x32xf32, #tpu.memory_space<vmem>>, vector<1x1x32xf32>
    %100 = vector.shape_cast %99 : vector<1x1x32xf32> to vector<1x32xf32>
    %c0_37 = arith.constant 0 : index
    %c0_38 = arith.constant 0 : index
    %c0_39 = arith.constant 0 : index
    %101 = vector.load %arg10[%c0_37, %c0_38, %c0_39] : memref<2x1x32xf32, #tpu.memory_space<vmem>>, vector<1x1x32xf32>
    %102 = vector.shape_cast %101 : vector<1x1x32xf32> to vector<1x32xf32>
    %cst_40 = arith.constant dense<0.000000e+00> : vector<16xf32>
    %103 = vector.multi_reduction <add>, %98, %cst_40 [1] : vector<16x32xf32> to vector<16xf32>
    %104 = vector.shape_cast %103 : vector<16xf32> to vector<16x1xf32>
    %cst_41 = arith.constant 3.200000e+01 : f32
    %105 = vector.broadcast %cst_41 : f32 to vector<16x1xf32>
    %106 = arith.divf %104, %105 : vector<16x1xf32>
    %107 = vector.broadcast %106 : vector<16x1xf32> to vector<16x32xf32>
    %108 = arith.subf %98, %107 : vector<16x32xf32>
    %109 = arith.mulf %108, %108 : vector<16x32xf32>
    %cst_42 = arith.constant dense<0.000000e+00> : vector<16xf32>
    %110 = vector.multi_reduction <add>, %109, %cst_42 [1] : vector<16x32xf32> to vector<16xf32>
    %111 = vector.shape_cast %110 : vector<16xf32> to vector<16x1xf32>
    %cst_43 = arith.constant 3.200000e+01 : f32
    %112 = vector.broadcast %cst_43 : f32 to vector<16x1xf32>
    %113 = arith.divf %111, %112 : vector<16x1xf32>
    %114 = vector.broadcast %106 : vector<16x1xf32> to vector<16x32xf32>
    %115 = arith.subf %98, %114 : vector<16x32xf32>
    %cst_44 = arith.constant 9.99999997E-7 : f32
    %116 = vector.broadcast %cst_44 : f32 to vector<16x1xf32>
    %117 = arith.addf %113, %116 : vector<16x1xf32>
    %118 = math.rsqrt %117 : vector<16x1xf32>
    %119 = vector.broadcast %118 : vector<16x1xf32> to vector<16x32xf32>
    %120 = arith.mulf %115, %119 : vector<16x32xf32>
    %121 = vector.broadcast %100 : vector<1x32xf32> to vector<16x32xf32>
    %122 = arith.mulf %120, %121 : vector<16x32xf32>
    %123 = vector.broadcast %102 : vector<1x32xf32> to vector<16x32xf32>
    %124 = arith.addf %122, %123 : vector<16x32xf32>
    %125 = arith.truncf %124 : vector<16x32xf32> to vector<16x32xbf16>
    %c0_45 = arith.constant 0 : index
    %c0_46 = arith.constant 0 : index
    %c0_47 = arith.constant 0 : index
    %126 = vector.load %arg11[%c0_45, %c0_46, %c0_47] : memref<2x32x64xbf16, #tpu.memory_space<vmem>>, vector<1x32x64xbf16>
    %127 = vector.shape_cast %126 : vector<1x32x64xbf16> to vector<32x64xbf16>
    %cst_48 = arith.constant dense<0.000000e+00> : vector<16x64xf32>
    %128 = tpu.matmul %125, %127, %cst_48 {dimension_numbers = #tpu.dot_dimension_numbers<[1], [0], [0], [1], [0, 0, 1, 1], [], []>} : vector<16x32xbf16>, vector<32x64xbf16>, vector<16x64xf32> -> vector<16x64xf32>
    %c0_49 = arith.constant 0 : index
    %c0_50 = arith.constant 0 : index
    %c0_51 = arith.constant 0 : index
    %129 = vector.load %arg12[%c0_49, %c0_50, %c0_51] : memref<2x1x64xf32, #tpu.memory_space<vmem>>, vector<1x1x64xf32>
    %130 = vector.shape_cast %129 : vector<1x1x64xf32> to vector<1x64xf32>
    %131 = vector.broadcast %130 : vector<1x64xf32> to vector<16x64xf32>
    %132 = arith.addf %128, %131 : vector<16x64xf32>
    %cst_52 = arith.constant 0.000000e+00 : f32
    %133 = vector.broadcast %cst_52 : f32 to vector<16x64xf32>
    %134 = arith.maximumf %132, %133 : vector<16x64xf32>
    %135 = arith.truncf %134 : vector<16x64xf32> to vector<16x64xbf16>
    %c0_53 = arith.constant 0 : index
    %c0_54 = arith.constant 0 : index
    %c0_55 = arith.constant 0 : index
    %136 = vector.load %arg13[%c0_53, %c0_54, %c0_55] : memref<2x64x32xbf16, #tpu.memory_space<vmem>>, vector<1x64x32xbf16>
    %137 = vector.shape_cast %136 : vector<1x64x32xbf16> to vector<64x32xbf16>
    %cst_56 = arith.constant dense<0.000000e+00> : vector<16x32xf32>
    %138 = tpu.matmul %135, %137, %cst_56 {dimension_numbers = #tpu.dot_dimension_numbers<[1], [0], [0], [1], [0, 0, 1, 1], [], []>} : vector<16x64xbf16>, vector<64x32xbf16>, vector<16x32xf32> -> vector<16x32xf32>
    %c0_57 = arith.constant 0 : index
    %c0_58 = arith.constant 0 : index
    %c0_59 = arith.constant 0 : index
    %139 = vector.load %arg14[%c0_57, %c0_58, %c0_59] : memref<2x1x32xf32, #tpu.memory_space<vmem>>, vector<1x1x32xf32>
    %140 = vector.shape_cast %139 : vector<1x1x32xf32> to vector<1x32xf32>
    %141 = vector.broadcast %140 : vector<1x32xf32> to vector<16x32xf32>
    %142 = arith.addf %138, %141 : vector<16x32xf32>
    %143 = arith.addf %124, %142 : vector<16x32xf32>
    %c0_60 = arith.constant 0 : index
    %c0_61 = arith.constant 0 : index
    %c0_62 = arith.constant 0 : index
    %144 = vector.load %arg15[%c0_60, %c0_61, %c0_62] : memref<2x1x32xf32, #tpu.memory_space<vmem>>, vector<1x1x32xf32>
    %145 = vector.shape_cast %144 : vector<1x1x32xf32> to vector<1x32xf32>
    %c0_63 = arith.constant 0 : index
    %c0_64 = arith.constant 0 : index
    %c0_65 = arith.constant 0 : index
    %146 = vector.load %arg16[%c0_63, %c0_64, %c0_65] : memref<2x1x32xf32, #tpu.memory_space<vmem>>, vector<1x1x32xf32>
    %147 = vector.shape_cast %146 : vector<1x1x32xf32> to vector<1x32xf32>
    %cst_66 = arith.constant dense<0.000000e+00> : vector<16xf32>
    %148 = vector.multi_reduction <add>, %143, %cst_66 [1] : vector<16x32xf32> to vector<16xf32>
    %149 = vector.shape_cast %148 : vector<16xf32> to vector<16x1xf32>
    %cst_67 = arith.constant 3.200000e+01 : f32
    %150 = vector.broadcast %cst_67 : f32 to vector<16x1xf32>
    %151 = arith.divf %149, %150 : vector<16x1xf32>
    %152 = vector.broadcast %151 : vector<16x1xf32> to vector<16x32xf32>
    %153 = arith.subf %143, %152 : vector<16x32xf32>
    %154 = arith.mulf %153, %153 : vector<16x32xf32>
    %cst_68 = arith.constant dense<0.000000e+00> : vector<16xf32>
    %155 = vector.multi_reduction <add>, %154, %cst_68 [1] : vector<16x32xf32> to vector<16xf32>
    %156 = vector.shape_cast %155 : vector<16xf32> to vector<16x1xf32>
    %cst_69 = arith.constant 3.200000e+01 : f32
    %157 = vector.broadcast %cst_69 : f32 to vector<16x1xf32>
    %158 = arith.divf %156, %157 : vector<16x1xf32>
    %159 = vector.broadcast %151 : vector<16x1xf32> to vector<16x32xf32>
    %160 = arith.subf %143, %159 : vector<16x32xf32>
    %cst_70 = arith.constant 9.99999997E-7 : f32
    %161 = vector.broadcast %cst_70 : f32 to vector<16x1xf32>
    %162 = arith.addf %158, %161 : vector<16x1xf32>
    %163 = math.rsqrt %162 : vector<16x1xf32>
    %164 = vector.broadcast %163 : vector<16x1xf32> to vector<16x32xf32>
    %165 = arith.mulf %160, %164 : vector<16x32xf32>
    %166 = vector.broadcast %145 : vector<1x32xf32> to vector<16x32xf32>
    %167 = arith.mulf %165, %166 : vector<16x32xf32>
    %168 = vector.broadcast %147 : vector<1x32xf32> to vector<16x32xf32>
    %169 = arith.addf %167, %168 : vector<16x32xf32>
    %170 = arith.truncf %169 : vector<16x32xf32> to vector<16x32xbf16>
    %c1 = arith.constant 1 : index
    %c0_71 = arith.constant 0 : index
    %c0_72 = arith.constant 0 : index
    %171 = vector.load %arg4[%c1, %c0_71, %c0_72] : memref<2x32x32xbf16, #tpu.memory_space<vmem>>, vector<1x32x32xbf16>
    %172 = vector.shape_cast %171 : vector<1x32x32xbf16> to vector<32x32xbf16>
    %cst_73 = arith.constant dense<0.000000e+00> : vector<16x32xf32>
    %173 = tpu.matmul %170, %172, %cst_73 {dimension_numbers = #tpu.dot_dimension_numbers<[1], [0], [0], [1], [0, 0, 1, 1], [], []>} : vector<16x32xbf16>, vector<32x32xbf16>, vector<16x32xf32> -> vector<16x32xf32>
    %c1_74 = arith.constant 1 : index
    %c0_75 = arith.constant 0 : index
    %c0_76 = arith.constant 0 : index
    %174 = vector.load %arg5[%c1_74, %c0_75, %c0_76] : memref<2x32x32xbf16, #tpu.memory_space<vmem>>, vector<1x32x32xbf16>
    %175 = vector.shape_cast %174 : vector<1x32x32xbf16> to vector<32x32xbf16>
    %cst_77 = arith.constant dense<0.000000e+00> : vector<16x32xf32>
    %176 = tpu.matmul %170, %175, %cst_77 {dimension_numbers = #tpu.dot_dimension_numbers<[1], [0], [0], [1], [0, 0, 1, 1], [], []>} : vector<16x32xbf16>, vector<32x32xbf16>, vector<16x32xf32> -> vector<16x32xf32>
    %c1_78 = arith.constant 1 : index
    %c0_79 = arith.constant 0 : index
    %c0_80 = arith.constant 0 : index
    %177 = vector.load %arg6[%c1_78, %c0_79, %c0_80] : memref<2x32x32xbf16, #tpu.memory_space<vmem>>, vector<1x32x32xbf16>
    %178 = vector.shape_cast %177 : vector<1x32x32xbf16> to vector<32x32xbf16>
    %cst_81 = arith.constant dense<0.000000e+00> : vector<16x32xf32>
    %179 = tpu.matmul %170, %178, %cst_81 {dimension_numbers = #tpu.dot_dimension_numbers<[1], [0], [0], [1], [0, 0, 1, 1], [], []>} : vector<16x32xbf16>, vector<32x32xbf16>, vector<16x32xf32> -> vector<16x32xf32>
    %180 = vector.extract_strided_slice %173 {offsets = [0, 0], sizes = [16, 8], strides = [1, 1]} : vector<16x32xf32> to vector<16x8xf32>
    %181 = vector.shape_cast %180 : vector<16x8xf32> to vector<2x8x8xf32>
    %182 = vector.extract_strided_slice %173 {offsets = [0, 8], sizes = [16, 8], strides = [1, 1]} : vector<16x32xf32> to vector<16x8xf32>
    %183 = vector.shape_cast %182 : vector<16x8xf32> to vector<2x8x8xf32>
    %184 = vector.extract_strided_slice %173 {offsets = [0, 16], sizes = [16, 8], strides = [1, 1]} : vector<16x32xf32> to vector<16x8xf32>
    %185 = vector.shape_cast %184 : vector<16x8xf32> to vector<2x8x8xf32>
    %186 = vector.extract_strided_slice %173 {offsets = [0, 24], sizes = [16, 8], strides = [1, 1]} : vector<16x32xf32> to vector<16x8xf32>
    %187 = vector.shape_cast %186 : vector<16x8xf32> to vector<2x8x8xf32>
    %188 = tpu.concatenate %181, %183, %185, %187 in 0 : vector<2x8x8xf32>, vector<2x8x8xf32>, vector<2x8x8xf32>, vector<2x8x8xf32> -> vector<8x8x8xf32>
    %189 = arith.truncf %188 : vector<8x8x8xf32> to vector<8x8x8xbf16>
    %190 = vector.extract_strided_slice %176 {offsets = [0, 0], sizes = [16, 8], strides = [1, 1]} : vector<16x32xf32> to vector<16x8xf32>
    %191 = vector.shape_cast %190 : vector<16x8xf32> to vector<2x8x8xf32>
    %192 = vector.extract_strided_slice %176 {offsets = [0, 8], sizes = [16, 8], strides = [1, 1]} : vector<16x32xf32> to vector<16x8xf32>
    %193 = vector.shape_cast %192 : vector<16x8xf32> to vector<2x8x8xf32>
    %194 = vector.extract_strided_slice %176 {offsets = [0, 16], sizes = [16, 8], strides = [1, 1]} : vector<16x32xf32> to vector<16x8xf32>
    %195 = vector.shape_cast %194 : vector<16x8xf32> to vector<2x8x8xf32>
    %196 = vector.extract_strided_slice %176 {offsets = [0, 24], sizes = [16, 8], strides = [1, 1]} : vector<16x32xf32> to vector<16x8xf32>
    %197 = vector.shape_cast %196 : vector<16x8xf32> to vector<2x8x8xf32>
    %198 = tpu.concatenate %191, %193, %195, %197 in 0 : vector<2x8x8xf32>, vector<2x8x8xf32>, vector<2x8x8xf32>, vector<2x8x8xf32> -> vector<8x8x8xf32>
    %199 = arith.truncf %198 : vector<8x8x8xf32> to vector<8x8x8xbf16>
    %200 = vector.extract_strided_slice %179 {offsets = [0, 0], sizes = [16, 8], strides = [1, 1]} : vector<16x32xf32> to vector<16x8xf32>
    %201 = vector.shape_cast %200 : vector<16x8xf32> to vector<2x8x8xf32>
    %202 = vector.extract_strided_slice %179 {offsets = [0, 8], sizes = [16, 8], strides = [1, 1]} : vector<16x32xf32> to vector<16x8xf32>
    %203 = vector.shape_cast %202 : vector<16x8xf32> to vector<2x8x8xf32>
    %204 = vector.extract_strided_slice %179 {offsets = [0, 16], sizes = [16, 8], strides = [1, 1]} : vector<16x32xf32> to vector<16x8xf32>
    %205 = vector.shape_cast %204 : vector<16x8xf32> to vector<2x8x8xf32>
    %206 = vector.extract_strided_slice %179 {offsets = [0, 24], sizes = [16, 8], strides = [1, 1]} : vector<16x32xf32> to vector<16x8xf32>
    %207 = vector.shape_cast %206 : vector<16x8xf32> to vector<2x8x8xf32>
    %208 = tpu.concatenate %201, %203, %205, %207 in 0 : vector<2x8x8xf32>, vector<2x8x8xf32>, vector<2x8x8xf32>, vector<2x8x8xf32> -> vector<8x8x8xf32>
    %209 = arith.truncf %208 : vector<8x8x8xf32> to vector<8x8x8xbf16>
    "tpu.trace_start"() <{level = 10 : i32, message = "bqd,bkd->bqk"}> : () -> ()
    %cst_82 = arith.constant dense<0.000000e+00> : vector<8x8x8xf32>
    %210 = tpu.matmul %189, %199, %cst_82 {dimension_numbers = #tpu.dot_dimension_numbers<[2], [2], [1], [1], [0, 0, 0, 1, 1, 1], [0], [0]>} : vector<8x8x8xbf16>, vector<8x8x8xbf16>, vector<8x8x8xf32> -> vector<8x8x8xf32>
    "tpu.trace_stop"() : () -> ()
    %cst_83 = arith.constant 0.353553385 : f32
    %211 = vector.broadcast %cst_83 : f32 to vector<8x8x8xf32>
    %212 = arith.mulf %210, %211 : vector<8x8x8xf32>
    %cst_84 = arith.constant dense<0xFF800000> : vector<8x8xf32>
    %213 = vector.multi_reduction <maximumf>, %212, %cst_84 [2] : vector<8x8x8xf32> to vector<8x8xf32>
    %214 = vector.shape_cast %213 : vector<8x8xf32> to vector<8x8x1xf32>
    %215 = vector.broadcast %214 : vector<8x8x1xf32> to vector<8x8x8xf32>
    %216 = arith.subf %212, %215 : vector<8x8x8xf32>
    %217 = math.exp %216 : vector<8x8x8xf32>
    %cst_85 = arith.constant dense<0.000000e+00> : vector<8x8xf32>
    %218 = vector.multi_reduction <add>, %217, %cst_85 [2] : vector<8x8x8xf32> to vector<8x8xf32>
    %219 = vector.shape_cast %218 : vector<8x8xf32> to vector<8x8x1xf32>
    %220 = tpu.reciprocal %219 {approx = true} : vector<8x8x1xf32> -> vector<8x8x1xf32>
    %221 = vector.broadcast %220 : vector<8x8x1xf32> to vector<8x8x8xf32>
    %222 = arith.mulf %217, %221 : vector<8x8x8xf32>
    %223 = arith.truncf %222 : vector<8x8x8xf32> to vector<8x8x8xbf16>
    "tpu.trace_start"() <{level = 10 : i32, message = "bqk,bkd->bqd"}> : () -> ()
    %cst_86 = arith.constant dense<0.000000e+00> : vector<8x8x8xf32>
    %224 = tpu.matmul %223, %209, %cst_86 {dimension_numbers = #tpu.dot_dimension_numbers<[2], [1], [1], [2], [0, 0, 0, 1, 1, 2], [0], [0]>} : vector<8x8x8xbf16>, vector<8x8x8xbf16>, vector<8x8x8xf32> -> vector<8x8x8xf32>
    "tpu.trace_stop"() : () -> ()
    %225 = vector.extract_strided_slice %224 {offsets = [0, 0, 0], sizes = [2, 8, 8], strides = [1, 1, 1]} : vector<8x8x8xf32> to vector<2x8x8xf32>
    %226 = vector.shape_cast %225 : vector<2x8x8xf32> to vector<16x8xf32>
    %227 = vector.extract_strided_slice %224 {offsets = [2, 0, 0], sizes = [2, 8, 8], strides = [1, 1, 1]} : vector<8x8x8xf32> to vector<2x8x8xf32>
    %228 = vector.shape_cast %227 : vector<2x8x8xf32> to vector<16x8xf32>
    %229 = vector.extract_strided_slice %224 {offsets = [4, 0, 0], sizes = [2, 8, 8], strides = [1, 1, 1]} : vector<8x8x8xf32> to vector<2x8x8xf32>
    %230 = vector.shape_cast %229 : vector<2x8x8xf32> to vector<16x8xf32>
    %231 = vector.extract_strided_slice %224 {offsets = [6, 0, 0], sizes = [2, 8, 8], strides = [1, 1, 1]} : vector<8x8x8xf32> to vector<2x8x8xf32>
    %232 = vector.shape_cast %231 : vector<2x8x8xf32> to vector<16x8xf32>
    %233 = tpu.concatenate %226, %228, %230, %232 in 1 : vector<16x8xf32>, vector<16x8xf32>, vector<16x8xf32>, vector<16x8xf32> -> vector<16x32xf32>
    %234 = arith.truncf %233 : vector<16x32xf32> to vector<16x32xbf16>
    %c1_87 = arith.constant 1 : index
    %c0_88 = arith.constant 0 : index
    %c0_89 = arith.constant 0 : index
    %235 = vector.load %arg7[%c1_87, %c0_88, %c0_89] : memref<2x32x32xbf16, #tpu.memory_space<vmem>>, vector<1x32x32xbf16>
    %236 = vector.shape_cast %235 : vector<1x32x32xbf16> to vector<32x32xbf16>
    %cst_90 = arith.constant dense<0.000000e+00> : vector<16x32xf32>
    %237 = tpu.matmul %234, %236, %cst_90 {dimension_numbers = #tpu.dot_dimension_numbers<[1], [0], [0], [1], [0, 0, 1, 1], [], []>} : vector<16x32xbf16>, vector<32x32xbf16>, vector<16x32xf32> -> vector<16x32xf32>
    %c1_91 = arith.constant 1 : index
    %c0_92 = arith.constant 0 : index
    %c0_93 = arith.constant 0 : index
    %238 = vector.load %arg8[%c1_91, %c0_92, %c0_93] : memref<2x1x32xf32, #tpu.memory_space<vmem>>, vector<1x1x32xf32>
    %239 = vector.shape_cast %238 : vector<1x1x32xf32> to vector<1x32xf32>
    %240 = vector.broadcast %239 : vector<1x32xf32> to vector<16x32xf32>
    %241 = arith.addf %237, %240 : vector<16x32xf32>
    %242 = arith.addf %169, %241 : vector<16x32xf32>
    %c1_94 = arith.constant 1 : index
    %c0_95 = arith.constant 0 : index
    %c0_96 = arith.constant 0 : index
    %243 = vector.load %arg9[%c1_94, %c0_95, %c0_96] : memref<2x1x32xf32, #tpu.memory_space<vmem>>, vector<1x1x32xf32>
    %244 = vector.shape_cast %243 : vector<1x1x32xf32> to vector<1x32xf32>
    %c1_97 = arith.constant 1 : index
    %c0_98 = arith.constant 0 : index
    %c0_99 = arith.constant 0 : index
    %245 = vector.load %arg10[%c1_97, %c0_98, %c0_99] : memref<2x1x32xf32, #tpu.memory_space<vmem>>, vector<1x1x32xf32>
    %246 = vector.shape_cast %245 : vector<1x1x32xf32> to vector<1x32xf32>
    %cst_100 = arith.constant dense<0.000000e+00> : vector<16xf32>
    %247 = vector.multi_reduction <add>, %242, %cst_100 [1] : vector<16x32xf32> to vector<16xf32>
    %248 = vector.shape_cast %247 : vector<16xf32> to vector<16x1xf32>
    %cst_101 = arith.constant 3.200000e+01 : f32
    %249 = vector.broadcast %cst_101 : f32 to vector<16x1xf32>
    %250 = arith.divf %248, %249 : vector<16x1xf32>
    %251 = vector.broadcast %250 : vector<16x1xf32> to vector<16x32xf32>
    %252 = arith.subf %242, %251 : vector<16x32xf32>
    %253 = arith.mulf %252, %252 : vector<16x32xf32>
    %cst_102 = arith.constant dense<0.000000e+00> : vector<16xf32>
    %254 = vector.multi_reduction <add>, %253, %cst_102 [1] : vector<16x32xf32> to vector<16xf32>
    %255 = vector.shape_cast %254 : vector<16xf32> to vector<16x1xf32>
    %cst_103 = arith.constant 3.200000e+01 : f32
    %256 = vector.broadcast %cst_103 : f32 to vector<16x1xf32>
    %257 = arith.divf %255, %256 : vector<16x1xf32>
    %258 = vector.broadcast %250 : vector<16x1xf32> to vector<16x32xf32>
    %259 = arith.subf %242, %258 : vector<16x32xf32>
    %cst_104 = arith.constant 9.99999997E-7 : f32
    %260 = vector.broadcast %cst_104 : f32 to vector<16x1xf32>
    %261 = arith.addf %257, %260 : vector<16x1xf32>
    %262 = math.rsqrt %261 : vector<16x1xf32>
    %263 = vector.broadcast %262 : vector<16x1xf32> to vector<16x32xf32>
    %264 = arith.mulf %259, %263 : vector<16x32xf32>
    %265 = vector.broadcast %244 : vector<1x32xf32> to vector<16x32xf32>
    %266 = arith.mulf %264, %265 : vector<16x32xf32>
    %267 = vector.broadcast %246 : vector<1x32xf32> to vector<16x32xf32>
    %268 = arith.addf %266, %267 : vector<16x32xf32>
    %269 = arith.truncf %268 : vector<16x32xf32> to vector<16x32xbf16>
    %c1_105 = arith.constant 1 : index
    %c0_106 = arith.constant 0 : index
    %c0_107 = arith.constant 0 : index
    %270 = vector.load %arg11[%c1_105, %c0_106, %c0_107] : memref<2x32x64xbf16, #tpu.memory_space<vmem>>, vector<1x32x64xbf16>
    %271 = vector.shape_cast %270 : vector<1x32x64xbf16> to vector<32x64xbf16>
    %cst_108 = arith.constant dense<0.000000e+00> : vector<16x64xf32>
    %272 = tpu.matmul %269, %271, %cst_108 {dimension_numbers = #tpu.dot_dimension_numbers<[1], [0], [0], [1], [0, 0, 1, 1], [], []>} : vector<16x32xbf16>, vector<32x64xbf16>, vector<16x64xf32> -> vector<16x64xf32>
    %c1_109 = arith.constant 1 : index
    %c0_110 = arith.constant 0 : index
    %c0_111 = arith.constant 0 : index
    %273 = vector.load %arg12[%c1_109, %c0_110, %c0_111] : memref<2x1x64xf32, #tpu.memory_space<vmem>>, vector<1x1x64xf32>
    %274 = vector.shape_cast %273 : vector<1x1x64xf32> to vector<1x64xf32>
    %275 = vector.broadcast %274 : vector<1x64xf32> to vector<16x64xf32>
    %276 = arith.addf %272, %275 : vector<16x64xf32>
    %cst_112 = arith.constant 0.000000e+00 : f32
    %277 = vector.broadcast %cst_112 : f32 to vector<16x64xf32>
    %278 = arith.maximumf %276, %277 : vector<16x64xf32>
    %279 = arith.truncf %278 : vector<16x64xf32> to vector<16x64xbf16>
    %c1_113 = arith.constant 1 : index
    %c0_114 = arith.constant 0 : index
    %c0_115 = arith.constant 0 : index
    %280 = vector.load %arg13[%c1_113, %c0_114, %c0_115] : memref<2x64x32xbf16, #tpu.memory_space<vmem>>, vector<1x64x32xbf16>
    %281 = vector.shape_cast %280 : vector<1x64x32xbf16> to vector<64x32xbf16>
    %cst_116 = arith.constant dense<0.000000e+00> : vector<16x32xf32>
    %282 = tpu.matmul %279, %281, %cst_116 {dimension_numbers = #tpu.dot_dimension_numbers<[1], [0], [0], [1], [0, 0, 1, 1], [], []>} : vector<16x64xbf16>, vector<64x32xbf16>, vector<16x32xf32> -> vector<16x32xf32>
    %c1_117 = arith.constant 1 : index
    %c0_118 = arith.constant 0 : index
    %c0_119 = arith.constant 0 : index
    %283 = vector.load %arg14[%c1_117, %c0_118, %c0_119] : memref<2x1x32xf32, #tpu.memory_space<vmem>>, vector<1x1x32xf32>
    %284 = vector.shape_cast %283 : vector<1x1x32xf32> to vector<1x32xf32>
    %285 = vector.broadcast %284 : vector<1x32xf32> to vector<16x32xf32>
    %286 = arith.addf %282, %285 : vector<16x32xf32>
    %287 = arith.addf %268, %286 : vector<16x32xf32>
    %c1_120 = arith.constant 1 : index
    %c0_121 = arith.constant 0 : index
    %c0_122 = arith.constant 0 : index
    %288 = vector.load %arg15[%c1_120, %c0_121, %c0_122] : memref<2x1x32xf32, #tpu.memory_space<vmem>>, vector<1x1x32xf32>
    %289 = vector.shape_cast %288 : vector<1x1x32xf32> to vector<1x32xf32>
    %c1_123 = arith.constant 1 : index
    %c0_124 = arith.constant 0 : index
    %c0_125 = arith.constant 0 : index
    %290 = vector.load %arg16[%c1_123, %c0_124, %c0_125] : memref<2x1x32xf32, #tpu.memory_space<vmem>>, vector<1x1x32xf32>
    %291 = vector.shape_cast %290 : vector<1x1x32xf32> to vector<1x32xf32>
    %cst_126 = arith.constant dense<0.000000e+00> : vector<16xf32>
    %292 = vector.multi_reduction <add>, %287, %cst_126 [1] : vector<16x32xf32> to vector<16xf32>
    %293 = vector.shape_cast %292 : vector<16xf32> to vector<16x1xf32>
    %cst_127 = arith.constant 3.200000e+01 : f32
    %294 = vector.broadcast %cst_127 : f32 to vector<16x1xf32>
    %295 = arith.divf %293, %294 : vector<16x1xf32>
    %296 = vector.broadcast %295 : vector<16x1xf32> to vector<16x32xf32>
    %297 = arith.subf %287, %296 : vector<16x32xf32>
    %298 = arith.mulf %297, %297 : vector<16x32xf32>
    %cst_128 = arith.constant dense<0.000000e+00> : vector<16xf32>
    %299 = vector.multi_reduction <add>, %298, %cst_128 [1] : vector<16x32xf32> to vector<16xf32>
    %300 = vector.shape_cast %299 : vector<16xf32> to vector<16x1xf32>
    %cst_129 = arith.constant 3.200000e+01 : f32
    %301 = vector.broadcast %cst_129 : f32 to vector<16x1xf32>
    %302 = arith.divf %300, %301 : vector<16x1xf32>
    %303 = vector.broadcast %295 : vector<16x1xf32> to vector<16x32xf32>
    %304 = arith.subf %287, %303 : vector<16x32xf32>
    %cst_130 = arith.constant 9.99999997E-7 : f32
    %305 = vector.broadcast %cst_130 : f32 to vector<16x1xf32>
    %306 = arith.addf %302, %305 : vector<16x1xf32>
    %307 = math.rsqrt %306 : vector<16x1xf32>
    %308 = vector.broadcast %307 : vector<16x1xf32> to vector<16x32xf32>
    %309 = arith.mulf %304, %308 : vector<16x32xf32>
    %310 = vector.broadcast %289 : vector<1x32xf32> to vector<16x32xf32>
    %311 = arith.mulf %309, %310 : vector<16x32xf32>
    %312 = vector.broadcast %291 : vector<1x32xf32> to vector<16x32xf32>
    %313 = arith.addf %311, %312 : vector<16x32xf32>
    %314 = vector.shape_cast %313 : vector<16x32xf32> to vector<2x8x32xf32>
    %c0_131 = arith.constant 0 : index
    %c0_132 = arith.constant 0 : index
    %c0_133 = arith.constant 0 : index
    %315 = vector.load %arg17[%c0_131, %c0_132, %c0_133] : memref<2x8x32xf32, #tpu.memory_space<vmem>>, vector<2x8x32xf32>
    tpu.vector_store %arg17[%c0_131, %c0_132, %c0_133], %314 {strides = array<i32>} : memref<2x8x32xf32, #tpu.memory_space<vmem>>, vector<2x8x32xf32>,
    return
  }
  func.func @transform_0(%arg0: i32) -> (i32, i32, i32) {
    %c0_i32 = arith.constant 0 : i32
    %c0_i32_0 = arith.constant 0 : i32
    %c0_i32_1 = arith.constant 0 : i32
    return %arg0, %c0_i32, %c0_i32_0 : i32, i32, i32
  }
  func.func @transform_1(%arg0: i32) -> (i32, i32) {
    %c0_i32 = arith.constant 0 : i32
    %c0_i32_0 = arith.constant 0 : i32
    %c0_i32_1 = arith.constant 0 : i32
    return %c0_i32, %c0_i32_0 : i32, i32
  }
  func.func @transform_2(%arg0: i32) -> (i32, i32) {
    %c0_i32 = arith.constant 0 : i32
    %c0_i32_0 = arith.constant 0 : i32
    %c0_i32_1 = arith.constant 0 : i32
    return %c0_i32, %c0_i32_0 : i32, i32
  }
  func.func @transform_3(%arg0: i32) -> (i32, i32, i32) {
    %c0_i32 = arith.constant 0 : i32
    %c0_i32_0 = arith.constant 0 : i32
    %c0_i32_1 = arith.constant 0 : i32
    %c0_i32_2 = arith.constant 0 : i32
    return %c0_i32, %c0_i32_0, %c0_i32_1 : i32, i32, i32
  }
  func.func @transform_4(%arg0: i32) -> (i32, i32, i32) {
    %c0_i32 = arith.constant 0 : i32
    %c0_i32_0 = arith.constant 0 : i32
    %c0_i32_1 = arith.constant 0 : i32
    %c0_i32_2 = arith.constant 0 : i32
    return %c0_i32, %c0_i32_0, %c0_i32_1 : i32, i32, i32
  }
  func.func @transform_5(%arg0: i32) -> (i32, i32, i32) {
    %c0_i32 = arith.constant 0 : i32
    %c0_i32_0 = arith.constant 0 : i32
    %c0_i32_1 = arith.constant 0 : i32
    %c0_i32_2 = arith.constant 0 : i32
    return %c0_i32, %c0_i32_0, %c0_i32_1 : i32, i32, i32
  }
  func.func @transform_6(%arg0: i32) -> (i32, i32, i32) {
    %c0_i32 = arith.constant 0 : i32
    %c0_i32_0 = arith.constant 0 : i32
    %c0_i32_1 = arith.constant 0 : i32
    %c0_i32_2 = arith.constant 0 : i32
    return %c0_i32, %c0_i32_0, %c0_i32_1 : i32, i32, i32
  }
  func.func @transform_7(%arg0: i32) -> (i32, i32, i32) {
    %c0_i32 = arith.constant 0 : i32
    %c0_i32_0 = arith.constant 0 : i32
    %c0_i32_1 = arith.constant 0 : i32
    %c0_i32_2 = arith.constant 0 : i32
    return %c0_i32, %c0_i32_0, %c0_i32_1 : i32, i32, i32
  }
  func.func @transform_8(%arg0: i32) -> (i32, i32, i32) {
    %c0_i32 = arith.constant 0 : i32
    %c0_i32_0 = arith.constant 0 : i32
    %c0_i32_1 = arith.constant 0 : i32
    %c0_i32_2 = arith.constant 0 : i32
    return %c0_i32, %c0_i32_0, %c0_i32_1 : i32, i32, i32
  }
  func.func @transform_9(%arg0: i32) -> (i32, i32, i32) {
    %c0_i32 = arith.constant 0 : i32
    %c0_i32_0 = arith.constant 0 : i32
    %c0_i32_1 = arith.constant 0 : i32
    %c0_i32_2 = arith.constant 0 : i32
    return %c0_i32, %c0_i32_0, %c0_i32_1 : i32, i32, i32
  }
  func.func @transform_10(%arg0: i32) -> (i32, i32, i32) {
    %c0_i32 = arith.constant 0 : i32
    %c0_i32_0 = arith.constant 0 : i32
    %c0_i32_1 = arith.constant 0 : i32
    %c0_i32_2 = arith.constant 0 : i32
    return %c0_i32, %c0_i32_0, %c0_i32_1 : i32, i32, i32
  }
  func.func @transform_11(%arg0: i32) -> (i32, i32, i32) {
    %c0_i32 = arith.constant 0 : i32
    %c0_i32_0 = arith.constant 0 : i32
    %c0_i32_1 = arith.constant 0 : i32
    %c0_i32_2 = arith.constant 0 : i32
    return %c0_i32, %c0_i32_0, %c0_i32_1 : i32, i32, i32
  }
  func.func @transform_12(%arg0: i32) -> (i32, i32, i32) {
    %c0_i32 = arith.constant 0 : i32
    %c0_i32_0 = arith.constant 0 : i32
    %c0_i32_1 = arith.constant 0 : i32
    %c0_i32_2 = arith.constant 0 : i32
    return %c0_i32, %c0_i32_0, %c0_i32_1 : i32, i32, i32
  }
  func.func @transform_13(%arg0: i32) -> (i32, i32, i32) {
    %c0_i32 = arith.constant 0 : i32
    %c0_i32_0 = arith.constant 0 : i32
    %c0_i32_1 = arith.constant 0 : i32
    %c0_i32_2 = arith.constant 0 : i32
    return %c0_i32, %c0_i32_0, %c0_i32_1 : i32, i32, i32
  }
  func.func @transform_14(%arg0: i32) -> (i32, i32, i32) {
    %c0_i32 = arith.constant 0 : i32
    %c0_i32_0 = arith.constant 0 : i32
    %c0_i32_1 = arith.constant 0 : i32
    %c0_i32_2 = arith.constant 0 : i32
    return %c0_i32, %c0_i32_0, %c0_i32_1 : i32, i32, i32
  }
  func.func @transform_15(%arg0: i32) -> (i32, i32, i32) {
    %c0_i32 = arith.constant 0 : i32
    %c0_i32_0 = arith.constant 0 : i32
    %c0_i32_1 = arith.constant 0 : i32
    %c0_i32_2 = arith.constant 0 : i32
    return %c0_i32, %c0_i32_0, %c0_i32_1 : i32, i32, i32
  }
  func.func @transform_16(%arg0: i32) -> (i32, i32, i32) {
    %c0_i32 = arith.constant 0 : i32
    %c0_i32_0 = arith.constant 0 : i32
    %c0_i32_1 = arith.constant 0 : i32
    return %arg0, %c0_i32, %c0_i32_0 : i32, i32, i32
  }
}

</mosaic_0001>

<llo_original>
// kernel: _lambda_.1
$region0: #{_lambda_.1}
  #allocation0 [shape = 'u32[]', space=smem, size = 0x4, offset = 0x4, fixed_abs, tag = 'smem constant byte address 0x4 - core index']
  #allocation1 [shape = 'u32[144,128]{1,0:T(1,128)}', space=vmem, size = 0x12000, scoped, tag = 'internal scratch']
  %s0 = inlined_call_operand.vmem [shape: f32[2,8,32], index: 0, kind: input, shape index: {}]
  %s1 = inlined_call_operand.vmem [shape: f32[1,32], index: 1, kind: input, shape index: {}]
  %s2 = inlined_call_operand.vmem [shape: f32[1,32], index: 2, kind: input, shape index: {}]
  %s3 = inlined_call_operand.vmem [shape: bf16[2,32,32], index: 3, kind: input, shape index: {}]
  %s4 = inlined_call_operand.vmem [shape: bf16[2,32,32], index: 4, kind: input, shape index: {}]
  %s5 = inlined_call_operand.vmem [shape: bf16[2,32,32], index: 5, kind: input, shape index: {}]
  %s6 = inlined_call_operand.vmem [shape: bf16[2,32,32], index: 6, kind: input, shape index: {}]
  %s7 = inlined_call_operand.vmem [shape: f32[2,1,32], index: 7, kind: input, shape index: {}]
  %s8 = inlined_call_operand.vmem [shape: f32[2,1,32], index: 8, kind: input, shape index: {}]
  %s9 = inlined_call_operand.vmem [shape: f32[2,1,32], index: 9, kind: input, shape index: {}]
  %s10 = inlined_call_operand.vmem [shape: bf16[2,32,64], index: 10, kind: input, shape index: {}]
  %s11 = inlined_call_operand.vmem [shape: f32[2,1,64], index: 11, kind: input, shape index: {}]
  %s12 = inlined_call_operand.vmem [shape: bf16[2,64,32], index: 12, kind: input, shape index: {}]
  %s13 = inlined_call_operand.vmem [shape: f32[2,1,32], index: 13, kind: input, shape index: {}]
  %s14 = inlined_call_operand.vmem [shape: f32[2,1,32], index: 14, kind: input, shape index: {}]
  %s15 = inlined_call_operand.vmem [shape: f32[2,1,32], index: 15, kind: input, shape index: {}]
  %s16 = inlined_call_operand.hbm [shape: f32[2,8,32], index: 16, kind: output, shape index: {}]
  %s17 = sld [smem:[#allocation0]]
  $region74: #{_lambda_.1} parent=0
    _
  %s19 = ssub.s32 1, %s17
  %s20 = scalar_select 0, %s19, %s17
  $region1: #{_lambda_.1} parent=0
    #allocation2 [shape = 'u8[8192]{0}', space=vmem, size = 0x2000, scoped, tag = 'output window, operand 0, single buffered']
    #allocation3 [shape = 's32[1]{0}', space=sflag, size = 0x4, scoped, tag = 'scoped memory for _lambda_.1']
    %21 = vsyncpa [#allocation3], 0
    // Predicated region
    $region2: #{_lambda_.1} parent=1 // pred_check
      _
    $region3: #{_lambda_.1} parent=1 // pred_check_branch
      %23 = sbr.rel (0) target = $region5
    $region4: #{_lambda_.1} parent=1 // pred_region
      _
    $region5: #{_lambda_.1} parent=1 // pred_fallthru
      _
    // Predicated region
    $region6: #{_lambda_.1} parent=1 // pred_check
      _
    $region7: #{_lambda_.1} parent=1 // pred_check_branch
      %25 = sbr.rel (0) target = $region9
    $region8: #{_lambda_.1} parent=1 // pred_region
      _
    $region9: #{_lambda_.1} parent=1 // pred_fallthru
      _
    // Predicated region
    $region10: #{_lambda_.1} parent=1 // pred_check
      _
    $region11: #{_lambda_.1} parent=1 // pred_check_branch
      %27 = sbr.rel (0) target = $region13
    $region12: #{_lambda_.1} parent=1 // pred_region
      _
    $region13: #{_lambda_.1} parent=1 // pred_fallthru
      _
    // Predicated region
    $region14: #{_lambda_.1} parent=1 // pred_check
      _
    $region15: #{_lambda_.1} parent=1 // pred_check_branch
      %29 = sbr.rel (0) target = $region17
    $region16: #{_lambda_.1} parent=1 // pred_region
      _
    $region17: #{_lambda_.1} parent=1 // pred_fallthru
      _
    // Predicated region
    $region18: #{_lambda_.1} parent=1 // pred_check
      _
    $region19: #{_lambda_.1} parent=1 // pred_check_branch
      %31 = sbr.rel (0) target = $region21
    $region20: #{_lambda_.1} parent=1 // pred_region
      _
    $region21: #{_lambda_.1} parent=1 // pred_fallthru
      _
    // Predicated region
    $region22: #{_lambda_.1} parent=1 // pred_check
      _
    $region23: #{_lambda_.1} parent=1 // pred_check_branch
      %33 = sbr.rel (0) target = $region25
    $region24: #{_lambda_.1} parent=1 // pred_region
      _
    $region25: #{_lambda_.1} parent=1 // pred_fallthru
      _
    // Predicated region
    $region26: #{_lambda_.1} parent=1 // pred_check
      _
    $region27: #{_lambda_.1} parent=1 // pred_check_branch
      %35 = sbr.rel (0) target = $region29
    $region28: #{_lambda_.1} parent=1 // pred_region
      _
    $region29: #{_lambda_.1} parent=1 // pred_fallthru
      _
    // Predicated region
    $region30: #{_lambda_.1} parent=1 // pred_check
      _
    $region31: #{_lambda_.1} parent=1 // pred_check_branch
      %37 = sbr.rel (0) target = $region33
    $region32: #{_lambda_.1} parent=1 // pred_region
      _
    $region33: #{_lambda_.1} parent=1 // pred_fallthru
      _
    // Predicated region
    $region34: #{_lambda_.1} parent=1 // pred_check
      _
    $region35: #{_lambda_.1} parent=1 // pred_check_branch
      %39 = sbr.rel (0) target = $region37
    $region36: #{_lambda_.1} parent=1 // pred_region
      _
    $region37: #{_lambda_.1} parent=1 // pred_fallthru
      _
    // Predicated region
    $region38: #{_lambda_.1} parent=1 // pred_check
      _
    $region39: #{_lambda_.1} parent=1 // pred_check_branch
      %41 = sbr.rel (0) target = $region41
    $region40: #{_lambda_.1} parent=1 // pred_region
      _
    $region41: #{_lambda_.1} parent=1 // pred_fallthru
      _
    // Predicated region
    $region42: #{_lambda_.1} parent=1 // pred_check
      _
    $region43: #{_lambda_.1} parent=1 // pred_check_branch
      %43 = sbr.rel (0) target = $region45
    $region44: #{_lambda_.1} parent=1 // pred_region
      _
    $region45: #{_lambda_.1} parent=1 // pred_fallthru
      _
    // Predicated region
    $region46: #{_lambda_.1} parent=1 // pred_check
      _
    $region47: #{_lambda_.1} parent=1 // pred_check_branch
      %45 = sbr.rel (0) target = $region49
    $region48: #{_lambda_.1} parent=1 // pred_region
      _
    $region49: #{_lambda_.1} parent=1 // pred_fallthru
      _
    // Predicated region
    $region50: #{_lambda_.1} parent=1 // pred_check
      _
    $region51: #{_lambda_.1} parent=1 // pred_check_branch
      %47 = sbr.rel (0) target = $region53
    $region52: #{_lambda_.1} parent=1 // pred_region
      _
    $region53: #{_lambda_.1} parent=1 // pred_fallthru
      _
    // Predicated region
    $region54: #{_lambda_.1} parent=1 // pred_check
      _
    $region55: #{_lambda_.1} parent=1 // pred_check_branch
      %49 = sbr.rel (0) target = $region57
    $region56: #{_lambda_.1} parent=1 // pred_region
      _
    $region57: #{_lambda_.1} parent=1 // pred_fallthru
      _
    // Predicated region
    $region58: #{_lambda_.1} parent=1 // pred_check
      _
    $region59: #{_lambda_.1} parent=1 // pred_check_branch
      %51 = sbr.rel (0) target = $region61
    $region60: #{_lambda_.1} parent=1 // pred_region
      _
    $region61: #{_lambda_.1} parent=1 // pred_fallthru
      _
    // Predicated region
    $region62: #{_lambda_.1} parent=1 // pred_check
      _
    $region63: #{_lambda_.1} parent=1 // pred_check_branch
      %53 = sbr.rel (0) target = $region65
    $region64: #{_lambda_.1} parent=1 // pred_region
      _
    $region65: #{_lambda_.1} parent=1 // pred_fallthru
      _
    %v55 = vld [vmem:[%s0] sm:$0xff]
    %v56 = vld [vmem:[%s0 + $0x8] sm:$0xff]
    %v57 = vld [vmem:[%s1] sm:$0x1]
    %v58 = vld [vmem:[%s2] sm:$0x1]
    %vm59 = vcmask 261120
    %v60 = vsel %vm59, %v55, 0.0
    %61 = vadd.xlane.f32.xlu0 %v60
    %v62 = vpop.xlane.xlu0 %61
    %v63 = vsel %vm59, %v56, 0.0
    %64 = vadd.xlane.f32.xlu0 %v63
    %v65 = vpop.xlane.xlu0 %64
    %v66 = vrcp.pop 32.0
    %v67 = vmul.f32 %v62, %v66
    %v68 = vmul.f32 %v65, %v66
    %v69 = vsub.f32 %v55, %v67
    %v70 = vsub.f32 %v56, %v68
    %v71 = vmul.f32 %v69, %v69
    %v72 = vmul.f32 %v70, %v70
    %v73 = vsel %vm59, %v71, 0.0
    %74 = vadd.xlane.f32.xlu0 %v73
    %v75 = vpop.xlane.xlu0 %74
    %v76 = vsel %vm59, %v72, 0.0
    %77 = vadd.xlane.f32.xlu0 %v76
    %v78 = vpop.xlane.xlu0 %77
    %v79 = vmul.f32 %v75, %v66
    %v80 = vmul.f32 %v78, %v66
    %v81 = vadd.f32 %v79, 1e-12
    %v82 = vadd.f32 %v80, 1e-12
    %v83 = vrsqrt.pop %v81
    %v84 = vrsqrt.pop %v82
    %v85 = vmul.f32 %v69, %v83
    %v86 = vmul.f32 %v70, %v84
    %v88 = vlaneseq
    %v89 = vshrl.u32 %v88, 7
    %v90 = vsub.s32 0, %v89
    %v91 = vrot.slane %v57, %v90
    %v93 = vmul.f32 %v85, %v91
    %v94 = vmul.f32 %v86, %v91
    %v96 = vlaneseq
    %v97 = vshrl.u32 %v96, 7
    %v98 = vsub.s32 0, %v97
    %v99 = vrot.slane %v58, %v98
    %v101 = vadd.f32 %v93, %v99
    %v102 = vadd.f32 %v94, %v99
    %v103 = vpack.c.bf16 %v102, %v101
    %v104 = vld [vmem:[%s3] sm:$0xf]
    %v105 = vld [vmem:[%s3 + $0x4] sm:$0xf]
    %v106 = vld [vmem:[%s3 + $0x8] sm:$0xf]
    %v107 = vld [vmem:[%s3 + $0xc] sm:$0xf]
    %v112 = vunpack.c.l.b16 %v104
    %v113 = vunpack.c.l.b16 %v105
    %v114 = vunpack.c.l.b16 %v106
    %v115 = vunpack.c.l.b16 %v107
    %v116 = vpack.c.b16 %v113, %v112
    %v117 = vpack.c.b16 %v115, %v114
    %v121 = vsel %vm59, %v103, 0
    %123 = vmatprep.subr.bf16.mxu0 0
    %124 = vmatpush1.bf16.msra.mxu0 0
    %125 = vmatprep.subr.bf16.mxu0 0
    %126 = vmatpush1.bf16.msra.mxu0 0
    %127 = vmatprep.subr.bf16.mxu0 0
    %128 = vmatpush1.bf16.msra.mxu0 0
    %129 = vmatprep.subr.bf16.mxu0 0
    %130 = vmatpush1.bf16.msra.mxu0 0
    %131 = vmatprep.subr.bf16.mxu0 0
    %132 = vmatpush1.bf16.msra.mxu0 0
    %133 = vmatprep.subr.bf16.mxu0 0
    %134 = vmatpush1.bf16.msra.mxu0 0
    %135 = vmatprep.subr.bf16.mxu0 0
    %136 = vmatpush1.bf16.msra.mxu0 %v117
    %137 = vmatprep.subr.bf16.mxu0 0
    %138 = vmatpush1.bf16.msra.mxu0 %v116
    %139 = vmatprep.subr.bf16.mxu0 0
    %140 = vmatpush2.bf16.msra.mxu0 0
    %141 = vmatprep.subr.bf16.mxu0 0
    %142 = vmatpush2.bf16.msra.mxu0 0
    %143 = vmatprep.subr.bf16.mxu0 0
    %144 = vmatpush2.bf16.msra.mxu0 0
    %145 = vmatprep.subr.bf16.mxu0 0
    %146 = vmatpush2.bf16.msra.mxu0 0
    %147 = vmatprep.subr.bf16.mxu0 0
    %148 = vmatpush2.bf16.msra.mxu0 0
    %149 = vmatprep.subr.bf16.mxu0 0
    %150 = vmatpush2.bf16.msra.mxu0 0
    %151 = vmatprep.subr.bf16.mxu0 0
    %152 = vmatpush2.bf16.msra.mxu0 0
    %153 = vmatprep.subr.bf16.mxu0 0
    %154 = vmatpush2.bf16.msra.mxu0 0
    %155 = vmatprep.mubr.bf16.mxu0 0
    %156 = vmatmul.mubr.bf16.gmra.mxu0 %v121
    %v157 = vpop.f32.mrf.mxu0
    %v158 = vadd.f32 0.0, %v157
    %v159 = vpop.f32.mrf.mxu0
    %v160 = vpop.f32.mrf.mxu0
    %v161 = vadd.f32 0.0, %v160
    %v162 = vpop.f32.mrf.mxu0
    %163 = vdwg.mxu0
    %v164 = vld [vmem:[%s4] sm:$0xf]
    %v165 = vld [vmem:[%s4 + $0x4] sm:$0xf]
    %v166 = vld [vmem:[%s4 + $0x8] sm:$0xf]
    %v167 = vld [vmem:[%s4 + $0xc] sm:$0xf]
    %v172 = vunpack.c.l.b16 %v164
    %v173 = vunpack.c.l.b16 %v165
    %v174 = vunpack.c.l.b16 %v166
    %v175 = vunpack.c.l.b16 %v167
    %v176 = vpack.c.b16 %v173, %v172
    %v177 = vpack.c.b16 %v175, %v174
    %180 = vmatprep.subr.bf16.mxu0 0
    %181 = vmatpush1.bf16.msra.mxu0 0
    %182 = vmatprep.subr.bf16.mxu0 0
    %183 = vmatpush1.bf16.msra.mxu0 0
    %184 = vmatprep.subr.bf16.mxu0 0
    %185 = vmatpush1.bf16.msra.mxu0 0
    %186 = vmatprep.subr.bf16.mxu0 0
    %187 = vmatpush1.bf16.msra.mxu0 0
    %188 = vmatprep.subr.bf16.mxu0 0
    %189 = vmatpush1.bf16.msra.mxu0 0
    %190 = vmatprep.subr.bf16.mxu0 0
    %191 = vmatpush1.bf16.msra.mxu0 0
    %192 = vmatprep.subr.bf16.mxu0 0
    %193 = vmatpush1.bf16.msra.mxu0 %v177
    %194 = vmatprep.subr.bf16.mxu0 0
    %195 = vmatpush1.bf16.msra.mxu0 %v176
    %196 = vmatprep.subr.bf16.mxu0 0
    %197 = vmatpush2.bf16.msra.mxu0 0
    %198 = vmatprep.subr.bf16.mxu0 0
    %199 = vmatpush2.bf16.msra.mxu0 0
    %200 = vmatprep.subr.bf16.mxu0 0
    %201 = vmatpush2.bf16.msra.mxu0 0
    %202 = vmatprep.subr.bf16.mxu0 0
    %203 = vmatpush2.bf16.msra.mxu0 0
    %204 = vmatprep.subr.bf16.mxu0 0
    %205 = vmatpush2.bf16.msra.mxu0 0
    %206 = vmatprep.subr.bf16.mxu0 0
    %207 = vmatpush2.bf16.msra.mxu0 0
    %208 = vmatprep.subr.bf16.mxu0 0
    %209 = vmatpush2.bf16.msra.mxu0 0
    %210 = vmatprep.subr.bf16.mxu0 0
    %211 = vmatpush2.bf16.msra.mxu0 0
    %212 = vmatprep.mubr.bf16.mxu0 0
    %213 = vmatmul.mubr.bf16.gmra.mxu0 %v121
    %v214 = vpop.f32.mrf.mxu0
    %v215 = vadd.f32 0.0, %v214
    %v216 = vpop.f32.mrf.mxu0
    %v217 = vpop.f32.mrf.mxu0
    %v218 = vadd.f32 0.0, %v217
    %v219 = vpop.f32.mrf.mxu0
    %220 = vdwg.mxu0
    %v221 = vld [vmem:[%s5] sm:$0xf]
    %v222 = vld [vmem:[%s5 + $0x4] sm:$0xf]
    %v223 = vld [vmem:[%s5 + $0x8] sm:$0xf]
    %v224 = vld [vmem:[%s5 + $0xc] sm:$0xf]
    %v229 = vunpack.c.l.b16 %v221
    %v230 = vunpack.c.l.b16 %v222
    %v231 = vunpack.c.l.b16 %v223
    %v232 = vunpack.c.l.b16 %v224
    %v233 = vpack.c.b16 %v230, %v229
    %v234 = vpack.c.b16 %v232, %v231
    %237 = vmatprep.subr.bf16.mxu0 0
    %238 = vmatpush1.bf16.msra.mxu0 0
    %239 = vmatprep.subr.bf16.mxu0 0
    %240 = vmatpush1.bf16.msra.mxu0 0
    %241 = vmatprep.subr.bf16.mxu0 0
    %242 = vmatpush1.bf16.msra.mxu0 0
    %243 = vmatprep.subr.bf16.mxu0 0
    %244 = vmatpush1.bf16.msra.mxu0 0
    %245 = vmatprep.subr.bf16.mxu0 0
    %246 = vmatpush1.bf16.msra.mxu0 0
    %247 = vmatprep.subr.bf16.mxu0 0
    %248 = vmatpush1.bf16.msra.mxu0 0
    %249 = vmatprep.subr.bf16.mxu0 0
    %250 = vmatpush1.bf16.msra.mxu0 %v234
    %251 = vmatprep.subr.bf16.mxu0 0
    %252 = vmatpush1.bf16.msra.mxu0 %v233
    %253 = vmatprep.subr.bf16.mxu0 0
    %254 = vmatpush2.bf16.msra.mxu0 0
    %255 = vmatprep.subr.bf16.mxu0 0
    %256 = vmatpush2.bf16.msra.mxu0 0
    %257 = vmatprep.subr.bf16.mxu0 0
    %258 = vmatpush2.bf16.msra.mxu0 0
    %259 = vmatprep.subr.bf16.mxu0 0
    %260 = vmatpush2.bf16.msra.mxu0 0
    %261 = vmatprep.subr.bf16.mxu0 0
    %262 = vmatpush2.bf16.msra.mxu0 0
    %263 = vmatprep.subr.bf16.mxu0 0
    %264 = vmatpush2.bf16.msra.mxu0 0
    %265 = vmatprep.subr.bf16.mxu0 0
    %266 = vmatpush2.bf16.msra.mxu0 0
    %267 = vmatprep.subr.bf16.mxu0 0
    %268 = vmatpush2.bf16.msra.mxu0 0
    %269 = vmatprep.mubr.bf16.mxu0 0
    %270 = vmatmul.mubr.bf16.gmra.mxu0 %v121
    %v271 = vpop.f32.mrf.mxu0
    %v272 = vadd.f32 0.0, %v271
    %v273 = vpop.f32.mrf.mxu0
    %v274 = vpop.f32.mrf.mxu0
    %v275 = vadd.f32 0.0, %v274
    %v276 = vpop.f32.mrf.mxu0
    %277 = vdwg.mxu0
    %280 = vrot.lane.b32.xlu0 %v158, 120
    %v281 = vpop.permute.xlu0 %280
    %282 = vrot.lane.b32.xlu0 %v161, 120
    %v283 = vpop.permute.xlu0 %282
    %286 = vrot.lane.b32.xlu0 %v158, 112
    %v287 = vpop.permute.xlu0 %286
    %288 = vrot.lane.b32.xlu0 %v161, 112
    %v289 = vpop.permute.xlu0 %288
    %292 = vrot.lane.b32.xlu0 %v158, 104
    %v293 = vpop.permute.xlu0 %292
    %294 = vrot.lane.b32.xlu0 %v161, 104
    %v295 = vpop.permute.xlu0 %294
    %v298 = vpack.c.bf16 %v158, %v158
    %v299 = vpack.c.bf16 %v161, %v161
    %v300 = vpack.c.bf16 %v281, %v281
    %v301 = vpack.c.bf16 %v283, %v283
    %v302 = vpack.c.bf16 %v287, %v287
    %v303 = vpack.c.bf16 %v289, %v289
    %v304 = vpack.c.bf16 %v293, %v293
    %v305 = vpack.c.bf16 %v295, %v295
    %308 = vrot.lane.b32.xlu0 %v215, 120
    %v309 = vpop.permute.xlu0 %308
    %310 = vrot.lane.b32.xlu0 %v218, 120
    %v311 = vpop.permute.xlu0 %310
    %314 = vrot.lane.b32.xlu0 %v215, 112
    %v315 = vpop.permute.xlu0 %314
    %316 = vrot.lane.b32.xlu0 %v218, 112
    %v317 = vpop.permute.xlu0 %316
    %320 = vrot.lane.b32.xlu0 %v215, 104
    %v321 = vpop.permute.xlu0 %320
    %322 = vrot.lane.b32.xlu0 %v218, 104
    %v323 = vpop.permute.xlu0 %322
    %v326 = vpack.c.bf16 %v215, %v215
    %v327 = vpack.c.bf16 %v218, %v218
    %v328 = vpack.c.bf16 %v309, %v309
    %v329 = vpack.c.bf16 %v311, %v311
    %v330 = vpack.c.bf16 %v315, %v315
    %v331 = vpack.c.bf16 %v317, %v317
    %v332 = vpack.c.bf16 %v321, %v321
    %v333 = vpack.c.bf16 %v323, %v323
    %336 = vrot.lane.b32.xlu0 %v272, 120
    %v337 = vpop.permute.xlu0 %336
    %338 = vrot.lane.b32.xlu0 %v275, 120
    %v339 = vpop.permute.xlu0 %338
    %342 = vrot.lane.b32.xlu0 %v272, 112
    %v343 = vpop.permute.xlu0 %342
    %344 = vrot.lane.b32.xlu0 %v275, 112
    %v345 = vpop.permute.xlu0 %344
    %348 = vrot.lane.b32.xlu0 %v272, 104
    %v349 = vpop.permute.xlu0 %348
    %350 = vrot.lane.b32.xlu0 %v275, 104
    %v351 = vpop.permute.xlu0 %350
    %v354 = vpack.c.bf16 %v272, %v272
    %v355 = vpack.c.bf16 %v275, %v275
    %v356 = vpack.c.bf16 %v337, %v337
    %v357 = vpack.c.bf16 %v339, %v339
    %v358 = vpack.c.bf16 %v343, %v343
    %v359 = vpack.c.bf16 %v345, %v345
    %v360 = vpack.c.bf16 %v349, %v349
    %v361 = vpack.c.bf16 %v351, %v351
    %vm362 = vcmask 64512
    %v364 = vsel %vm362, %v298, 0
    %v367 = vsel %vm362, %v326, 0
    %369 = vmatprep.subr.bf16.mxu0 0
    %370 = vmatpush1.bf16.xpose.msra.mxu0 0
    %371 = vmatprep.subr.bf16.mxu0 0
    %372 = vmatpush1.bf16.xpose.msra.mxu0 0
    %373 = vmatprep.subr.bf16.mxu0 0
    %374 = vmatpush1.bf16.xpose.msra.mxu0 0
    %375 = vmatprep.subr.bf16.mxu0 0
    %376 = vmatpush1.bf16.xpose.msra.mxu0 0
    %377 = vmatprep.subr.bf16.mxu0 0
    %378 = vmatpush1.bf16.xpose.msra.mxu0 0
    %379 = vmatprep.subr.bf16.mxu0 0
    %380 = vmatpush1.bf16.xpose.msra.mxu0 0
    %381 = vmatprep.subr.bf16.mxu0 0
    %382 = vmatpush1.bf16.xpose.msra.mxu0 0
    %383 = vmatprep.subr.bf16.mxu0 0
    %384 = vmatpush1.bf16.xpose.msra.mxu0 %v367
    %385 = vmatprep.subr.bf16.mxu0 0
    %386 = vmatpush2.bf16.xpose.msra.mxu0 0
    %387 = vmatprep.subr.bf16.mxu0 0
    %388 = vmatpush2.bf16.xpose.msra.mxu0 0
    %389 = vmatprep.subr.bf16.mxu0 0
    %390 = vmatpush2.bf16.xpose.msra.mxu0 0
    %391 = vmatprep.subr.bf16.mxu0 0
    %392 = vmatpush2.bf16.xpose.msra.mxu0 0
    %393 = vmatprep.subr.bf16.mxu0 0
    %394 = vmatpush2.bf16.xpose.msra.mxu0 0
    %395 = vmatprep.subr.bf16.mxu0 0
    %396 = vmatpush2.bf16.xpose.msra.mxu0 0
    %397 = vmatprep.subr.bf16.mxu0 0
    %398 = vmatpush2.bf16.xpose.msra.mxu0 0
    %399 = vmatprep.subr.bf16.mxu0 0
    %400 = vmatpush2.bf16.xpose.msra.mxu0 0
    %401 = vmatprep.mubr.bf16.mxu0 0
    %402 = vmatmul.mubr.bf16.gmra.mxu0 %v364
    %v403 = vpop.f32.mrf.mxu0
    %v404 = vadd.f32 0.0, %v403
    %v405 = vpop.f32.mrf.mxu0
    %v406 = vpop.f32.mrf.mxu0
    %v407 = vpop.f32.mrf.mxu0
    %408 = vdwg.mxu0
    %v410 = vsel %vm362, %v299, 0
    %v413 = vsel %vm362, %v327, 0
    %415 = vmatprep.subr.bf16.mxu0 0
    %416 = vmatpush1.bf16.xpose.msra.mxu0 0
    %417 = vmatprep.subr.bf16.mxu0 0
    %418 = vmatpush1.bf16.xpose.msra.mxu0 0
    %419 = vmatprep.subr.bf16.mxu0 0
    %420 = vmatpush1.bf16.xpose.msra.mxu0 0
    %421 = vmatprep.subr.bf16.mxu0 0
    %422 = vmatpush1.bf16.xpose.msra.mxu0 0
    %423 = vmatprep.subr.bf16.mxu0 0
    %424 = vmatpush1.bf16.xpose.msra.mxu0 0
    %425 = vmatprep.subr.bf16.mxu0 0
    %426 = vmatpush1.bf16.xpose.msra.mxu0 0
    %427 = vmatprep.subr.bf16.mxu0 0
    %428 = vmatpush1.bf16.xpose.msra.mxu0 0
    %429 = vmatprep.subr.bf16.mxu0 0
    %430 = vmatpush1.bf16.xpose.msra.mxu0 %v413
    %431 = vmatprep.subr.bf16.mxu0 0
    %432 = vmatpush2.bf16.xpose.msra.mxu0 0
    %433 = vmatprep.subr.bf16.mxu0 0
    %434 = vmatpush2.bf16.xpose.msra.mxu0 0
    %435 = vmatprep.subr.bf16.mxu0 0
    %436 = vmatpush2.bf16.xpose.msra.mxu0 0
    %437 = vmatprep.subr.bf16.mxu0 0
    %438 = vmatpush2.bf16.xpose.msra.mxu0 0
    %439 = vmatprep.subr.bf16.mxu0 0
    %440 = vmatpush2.bf16.xpose.msra.mxu0 0
    %441 = vmatprep.subr.bf16.mxu0 0
    %442 = vmatpush2.bf16.xpose.msra.mxu0 0
    %443 = vmatprep.subr.bf16.mxu0 0
    %444 = vmatpush2.bf16.xpose.msra.mxu0 0
    %445 = vmatprep.subr.bf16.mxu0 0
    %446 = vmatpush2.bf16.xpose.msra.mxu0 0
    %447 = vmatprep.mubr.bf16.mxu0 0
    %448 = vmatmul.mubr.bf16.gmra.mxu0 %v410
    %v449 = vpop.f32.mrf.mxu0
    %v450 = vadd.f32 0.0, %v449
    %v451 = vpop.f32.mrf.mxu0
    %v452 = vpop.f32.mrf.mxu0
    %v453 = vpop.f32.mrf.mxu0
    %454 = vdwg.mxu0
    %v456 = vsel %vm362, %v300, 0
    %v459 = vsel %vm362, %v328, 0
    %461 = vmatprep.subr.bf16.mxu0 0
    %462 = vmatpush1.bf16.xpose.msra.mxu0 0
    %463 = vmatprep.subr.bf16.mxu0 0
    %464 = vmatpush1.bf16.xpose.msra.mxu0 0
    %465 = vmatprep.subr.bf16.mxu0 0
    %466 = vmatpush1.bf16.xpose.msra.mxu0 0
    %467 = vmatprep.subr.bf16.mxu0 0
    %468 = vmatpush1.bf16.xpose.msra.mxu0 0
    %469 = vmatprep.subr.bf16.mxu0 0
    %470 = vmatpush1.bf16.xpose.msra.mxu0 0
    %471 = vmatprep.subr.bf16.mxu0 0
    %472 = vmatpush1.bf16.xpose.msra.mxu0 0
    %473 = vmatprep.subr.bf16.mxu0 0
    %474 = vmatpush1.bf16.xpose.msra.mxu0 0
    %475 = vmatprep.subr.bf16.mxu0 0
    %476 = vmatpush1.bf16.xpose.msra.mxu0 %v459
    %477 = vmatprep.subr.bf16.mxu0 0
    %478 = vmatpush2.bf16.xpose.msra.mxu0 0
    %479 = vmatprep.subr.bf16.mxu0 0
    %480 = vmatpush2.bf16.xpose.msra.mxu0 0
    %481 = vmatprep.subr.bf16.mxu0 0
    %482 = vmatpush2.bf16.xpose.msra.mxu0 0
    %483 = vmatprep.subr.bf16.mxu0 0
    %484 = vmatpush2.bf16.xpose.msra.mxu0 0
    %485 = vmatprep.subr.bf16.mxu0 0
    %486 = vmatpush2.bf16.xpose.msra.mxu0 0
    %487 = vmatprep.subr.bf16.mxu0 0
    %488 = vmatpush2.bf16.xpose.msra.mxu0 0
    %489 = vmatprep.subr.bf16.mxu0 0
    %490 = vmatpush2.bf16.xpose.msra.mxu0 0
    %491 = vmatprep.subr.bf16.mxu0 0
    %492 = vmatpush2.bf16.xpose.msra.mxu0 0
    %493 = vmatprep.mubr.bf16.mxu0 0
    %494 = vmatmul.mubr.bf16.gmra.mxu0 %v456
    %v495 = vpop.f32.mrf.mxu0
    %v496 = vadd.f32 0.0, %v495
    %v497 = vpop.f32.mrf.mxu0
    %v498 = vpop.f32.mrf.mxu0
    %v499 = vpop.f32.mrf.mxu0
    %500 = vdwg.mxu0
    %v502 = vsel %vm362, %v301, 0
    %v505 = vsel %vm362, %v329, 0
    %507 = vmatprep.subr.bf16.mxu0 0
    %508 = vmatpush1.bf16.xpose.msra.mxu0 0
    %509 = vmatprep.subr.bf16.mxu0 0
    %510 = vmatpush1.bf16.xpose.msra.mxu0 0
    %511 = vmatprep.subr.bf16.mxu0 0
    %512 = vmatpush1.bf16.xpose.msra.mxu0 0
    %513 = vmatprep.subr.bf16.mxu0 0
    %514 = vmatpush1.bf16.xpose.msra.mxu0 0
    %515 = vmatprep.subr.bf16.mxu0 0
    %516 = vmatpush1.bf16.xpose.msra.mxu0 0
    %517 = vmatprep.subr.bf16.mxu0 0
    %518 = vmatpush1.bf16.xpose.msra.mxu0 0
    %519 = vmatprep.subr.bf16.mxu0 0
    %520 = vmatpush1.bf16.xpose.msra.mxu0 0
    %521 = vmatprep.subr.bf16.mxu0 0
    %522 = vmatpush1.bf16.xpose.msra.mxu0 %v505
    %523 = vmatprep.subr.bf16.mxu0 0
    %524 = vmatpush2.bf16.xpose.msra.mxu0 0
    %525 = vmatprep.subr.bf16.mxu0 0
    %526 = vmatpush2.bf16.xpose.msra.mxu0 0
    %527 = vmatprep.subr.bf16.mxu0 0
    %528 = vmatpush2.bf16.xpose.msra.mxu0 0
    %529 = vmatprep.subr.bf16.mxu0 0
    %530 = vmatpush2.bf16.xpose.msra.mxu0 0
    %531 = vmatprep.subr.bf16.mxu0 0
    %532 = vmatpush2.bf16.xpose.msra.mxu0 0
    %533 = vmatprep.subr.bf16.mxu0 0
    %534 = vmatpush2.bf16.xpose.msra.mxu0 0
    %535 = vmatprep.subr.bf16.mxu0 0
    %536 = vmatpush2.bf16.xpose.msra.mxu0 0
    %537 = vmatprep.subr.bf16.mxu0 0
    %538 = vmatpush2.bf16.xpose.msra.mxu0 0
    %539 = vmatprep.mubr.bf16.mxu0 0
    %540 = vmatmul.mubr.bf16.gmra.mxu0 %v502
    %v541 = vpop.f32.mrf.mxu0
    %v542 = vadd.f32 0.0, %v541
    %v543 = vpop.f32.mrf.mxu0
    %v544 = vpop.f32.mrf.mxu0
    %v545 = vpop.f32.mrf.mxu0
    %546 = vdwg.mxu0
    %v548 = vsel %vm362, %v302, 0
    %v551 = vsel %vm362, %v330, 0
    %553 = vmatprep.subr.bf16.mxu0 0
    %554 = vmatpush1.bf16.xpose.msra.mxu0 0
    %555 = vmatprep.subr.bf16.mxu0 0
    %556 = vmatpush1.bf16.xpose.msra.mxu0 0
    %557 = vmatprep.subr.bf16.mxu0 0
    %558 = vmatpush1.bf16.xpose.msra.mxu0 0
    %559 = vmatprep.subr.bf16.mxu0 0
    %560 = vmatpush1.bf16.xpose.msra.mxu0 0
    %561 = vmatprep.subr.bf16.mxu0 0
    %562 = vmatpush1.bf16.xpose.msra.mxu0 0
    %563 = vmatprep.subr.bf16.mxu0 0
    %564 = vmatpush1.bf16.xpose.msra.mxu0 0
    %565 = vmatprep.subr.bf16.mxu0 0
    %566 = vmatpush1.bf16.xpose.msra.mxu0 0
    %567 = vmatprep.subr.bf16.mxu0 0
    %568 = vmatpush1.bf16.xpose.msra.mxu0 %v551
    %569 = vmatprep.subr.bf16.mxu0 0
    %570 = vmatpush2.bf16.xpose.msra.mxu0 0
    %571 = vmatprep.subr.bf16.mxu0 0
    %572 = vmatpush2.bf16.xpose.msra.mxu0 0
    %573 = vmatprep.subr.bf16.mxu0 0
    %574 = vmatpush2.bf16.xpose.msra.mxu0 0
    %575 = vmatprep.subr.bf16.mxu0 0
    %576 = vmatpush2.bf16.xpose.msra.mxu0 0
    %577 = vmatprep.subr.bf16.mxu0 0
    %578 = vmatpush2.bf16.xpose.msra.mxu0 0
    %579 = vmatprep.subr.bf16.mxu0 0
    %580 = vmatpush2.bf16.xpose.msra.mxu0 0
    %581 = vmatprep.subr.bf16.mxu0 0
    %582 = vmatpush2.bf16.xpose.msra.mxu0 0
    %583 = vmatprep.subr.bf16.mxu0 0
    %584 = vmatpush2.bf16.xpose.msra.mxu0 0
    %585 = vmatprep.mubr.bf16.mxu0 0
    %586 = vmatmul.mubr.bf16.gmra.mxu0 %v548
    %v587 = vpop.f32.mrf.mxu0
    %v588 = vadd.f32 0.0, %v587
    %v589 = vpop.f32.mrf.mxu0
    %v590 = vpop.f32.mrf.mxu0
    %v591 = vpop.f32.mrf.mxu0
    %592 = vdwg.mxu0
    %v594 = vsel %vm362, %v303, 0
    %v597 = vsel %vm362, %v331, 0
    %599 = vmatprep.subr.bf16.mxu0 0
    %600 = vmatpush1.bf16.xpose.msra.mxu0 0
    %601 = vmatprep.subr.bf16.mxu0 0
    %602 = vmatpush1.bf16.xpose.msra.mxu0 0
    %603 = vmatprep.subr.bf16.mxu0 0
    %604 = vmatpush1.bf16.xpose.msra.mxu0 0
    %605 = vmatprep.subr.bf16.mxu0 0
    %606 = vmatpush1.bf16.xpose.msra.mxu0 0
    %607 = vmatprep.subr.bf16.mxu0 0
    %608 = vmatpush1.bf16.xpose.msra.mxu0 0
    %609 = vmatprep.subr.bf16.mxu0 0
    %610 = vmatpush1.bf16.xpose.msra.mxu0 0
    %611 = vmatprep.subr.bf16.mxu0 0
    %612 = vmatpush1.bf16.xpose.msra.mxu0 0
    %613 = vmatprep.subr.bf16.mxu0 0
    %614 = vmatpush1.bf16.xpose.msra.mxu0 %v597
    %615 = vmatprep.subr.bf16.mxu0 0
    %616 = vmatpush2.bf16.xpose.msra.mxu0 0
    %617 = vmatprep.subr.bf16.mxu0 0
    %618 = vmatpush2.bf16.xpose.msra.mxu0 0
    %619 = vmatprep.subr.bf16.mxu0 0
    %620 = vmatpush2.bf16.xpose.msra.mxu0 0
    %621 = vmatprep.subr.bf16.mxu0 0
    %622 = vmatpush2.bf16.xpose.msra.mxu0 0
    %623 = vmatprep.subr.bf16.mxu0 0
    %624 = vmatpush2.bf16.xpose.msra.mxu0 0
    %625 = vmatprep.subr.bf16.mxu0 0
    %626 = vmatpush2.bf16.xpose.msra.mxu0 0
    %627 = vmatprep.subr.bf16.mxu0 0
    %628 = vmatpush2.bf16.xpose.msra.mxu0 0
    %629 = vmatprep.subr.bf16.mxu0 0
    %630 = vmatpush2.bf16.xpose.msra.mxu0 0
    %631 = vmatprep.mubr.bf16.mxu0 0
    %632 = vmatmul.mubr.bf16.gmra.mxu0 %v594
    %v633 = vpop.f32.mrf.mxu0
    %v634 = vadd.f32 0.0, %v633
    %v635 = vpop.f32.mrf.mxu0
    %v636 = vpop.f32.mrf.mxu0
    %v637 = vpop.f32.mrf.mxu0
    %638 = vdwg.mxu0
    %v640 = vsel %vm362, %v304, 0
    %v643 = vsel %vm362, %v332, 0
    %645 = vmatprep.subr.bf16.mxu0 0
    %646 = vmatpush1.bf16.xpose.msra.mxu0 0
    %647 = vmatprep.subr.bf16.mxu0 0
    %648 = vmatpush1.bf16.xpose.msra.mxu0 0
    %649 = vmatprep.subr.bf16.mxu0 0
    %650 = vmatpush1.bf16.xpose.msra.mxu0 0
    %651 = vmatprep.subr.bf16.mxu0 0
    %652 = vmatpush1.bf16.xpose.msra.mxu0 0
    %653 = vmatprep.subr.bf16.mxu0 0
    %654 = vmatpush1.bf16.xpose.msra.mxu0 0
    %655 = vmatprep.subr.bf16.mxu0 0
    %656 = vmatpush1.bf16.xpose.msra.mxu0 0
    %657 = vmatprep.subr.bf16.mxu0 0
    %658 = vmatpush1.bf16.xpose.msra.mxu0 0
    %659 = vmatprep.subr.bf16.mxu0 0
    %660 = vmatpush1.bf16.xpose.msra.mxu0 %v643
    %661 = vmatprep.subr.bf16.mxu0 0
    %662 = vmatpush2.bf16.xpose.msra.mxu0 0
    %663 = vmatprep.subr.bf16.mxu0 0
    %664 = vmatpush2.bf16.xpose.msra.mxu0 0
    %665 = vmatprep.subr.bf16.mxu0 0
    %666 = vmatpush2.bf16.xpose.msra.mxu0 0
    %667 = vmatprep.subr.bf16.mxu0 0
    %668 = vmatpush2.bf16.xpose.msra.mxu0 0
    %669 = vmatprep.subr.bf16.mxu0 0
    %670 = vmatpush2.bf16.xpose.msra.mxu0 0
    %671 = vmatprep.subr.bf16.mxu0 0
    %672 = vmatpush2.bf16.xpose.msra.mxu0 0
    %673 = vmatprep.subr.bf16.mxu0 0
    %674 = vmatpush2.bf16.xpose.msra.mxu0 0
    %675 = vmatprep.subr.bf16.mxu0 0
    %676 = vmatpush2.bf16.xpose.msra.mxu0 0
    %677 = vmatprep.mubr.bf16.mxu0 0
    %678 = vmatmul.mubr.bf16.gmra.mxu0 %v640
    %v679 = vpop.f32.mrf.mxu0
    %v680 = vadd.f32 0.0, %v679
    %v681 = vpop.f32.mrf.mxu0
    %v682 = vpop.f32.mrf.mxu0
    %v683 = vpop.f32.mrf.mxu0
    %684 = vdwg.mxu0
    %v686 = vsel %vm362, %v305, 0
    %v689 = vsel %vm362, %v333, 0
    %691 = vmatprep.subr.bf16.mxu0 0
    %692 = vmatpush1.bf16.xpose.msra.mxu0 0
    %693 = vmatprep.subr.bf16.mxu0 0
    %694 = vmatpush1.bf16.xpose.msra.mxu0 0
    %695 = vmatprep.subr.bf16.mxu0 0
    %696 = vmatpush1.bf16.xpose.msra.mxu0 0
    %697 = vmatprep.subr.bf16.mxu0 0
    %698 = vmatpush1.bf16.xpose.msra.mxu0 0
    %699 = vmatprep.subr.bf16.mxu0 0
    %700 = vmatpush1.bf16.xpose.msra.mxu0 0
    %701 = vmatprep.subr.bf16.mxu0 0
    %702 = vmatpush1.bf16.xpose.msra.mxu0 0
    %703 = vmatprep.subr.bf16.mxu0 0
    %704 = vmatpush1.bf16.xpose.msra.mxu0 0
    %705 = vmatprep.subr.bf16.mxu0 0
    %706 = vmatpush1.bf16.xpose.msra.mxu0 %v689
    %707 = vmatprep.subr.bf16.mxu0 0
    %708 = vmatpush2.bf16.xpose.msra.mxu0 0
    %709 = vmatprep.subr.bf16.mxu0 0
    %710 = vmatpush2.bf16.xpose.msra.mxu0 0
    %711 = vmatprep.subr.bf16.mxu0 0
    %712 = vmatpush2.bf16.xpose.msra.mxu0 0
    %713 = vmatprep.subr.bf16.mxu0 0
    %714 = vmatpush2.bf16.xpose.msra.mxu0 0
    %715 = vmatprep.subr.bf16.mxu0 0
    %716 = vmatpush2.bf16.xpose.msra.mxu0 0
    %717 = vmatprep.subr.bf16.mxu0 0
    %718 = vmatpush2.bf16.xpose.msra.mxu0 0
    %719 = vmatprep.subr.bf16.mxu0 0
    %720 = vmatpush2.bf16.xpose.msra.mxu0 0
    %721 = vmatprep.subr.bf16.mxu0 0
    %722 = vmatpush2.bf16.xpose.msra.mxu0 0
    %723 = vmatprep.mubr.bf16.mxu0 0
    %724 = vmatmul.mubr.bf16.gmra.mxu0 %v686
    %v725 = vpop.f32.mrf.mxu0
    %v726 = vadd.f32 0.0, %v725
    %v727 = vpop.f32.mrf.mxu0
    %v728 = vpop.f32.mrf.mxu0
    %v729 = vpop.f32.mrf.mxu0
    %730 = vdwg.mxu0
    %v731 = vmul.f32 %v404, 0.35355338
    %v732 = vmul.f32 %v450, 0.35355338
    %v733 = vmul.f32 %v496, 0.35355338
    %v734 = vmul.f32 %v542, 0.35355338
    %v735 = vmul.f32 %v588, 0.35355338
    %v736 = vmul.f32 %v634, 0.35355338
    %v737 = vmul.f32 %v680, 0.35355338
    %v738 = vmul.f32 %v726, 0.35355338
    %v739 = vsel %vm362, %v731, -inf
    %740 = vmax.xlane.f32.xlu0 %v739
    %v741 = vpop.xlane.xlu0 %740
    %v742 = vsel %vm362, %v732, -inf
    %743 = vmax.xlane.f32.xlu0 %v742
    %v744 = vpop.xlane.xlu0 %743
    %v745 = vsel %vm362, %v733, -inf
    %746 = vmax.xlane.f32.xlu0 %v745
    %v747 = vpop.xlane.xlu0 %746
    %v748 = vsel %vm362, %v734, -inf
    %749 = vmax.xlane.f32.xlu0 %v748
    %v750 = vpop.xlane.xlu0 %749
    %v751 = vsel %vm362, %v735, -inf
    %752 = vmax.xlane.f32.xlu0 %v751
    %v753 = vpop.xlane.xlu0 %752
    %v754 = vsel %vm362, %v736, -inf
    %755 = vmax.xlane.f32.xlu0 %v754
    %v756 = vpop.xlane.xlu0 %755
    %v757 = vsel %vm362, %v737, -inf
    %758 = vmax.xlane.f32.xlu0 %v757
    %v759 = vpop.xlane.xlu0 %758
    %v760 = vsel %vm362, %v738, -inf
    %761 = vmax.xlane.f32.xlu0 %v760
    %v762 = vpop.xlane.xlu0 %761
    %v763 = vsub.f32 %v731, %v741
    %v764 = vsub.f32 %v732, %v744
    %v765 = vsub.f32 %v733, %v747
    %v766 = vsub.f32 %v734, %v750
    %v767 = vsub.f32 %v735, %v753
    %v768 = vsub.f32 %v736, %v756
    %v769 = vsub.f32 %v737, %v759
    %v770 = vsub.f32 %v738, %v762
    %v771 = vmul.f32 %v763, 1.442695
    %v772 = vpow.pop %v771
    %v773 = vmul.f32 %v764, 1.442695
    %v774 = vpow.pop %v773
    %v775 = vmul.f32 %v765, 1.442695
    %v776 = vpow.pop %v775
    %v777 = vmul.f32 %v766, 1.442695
    %v778 = vpow.pop %v777
    %v779 = vmul.f32 %v767, 1.442695
    %v780 = vpow.pop %v779
    %v781 = vmul.f32 %v768, 1.442695
    %v782 = vpow.pop %v781
    %v783 = vmul.f32 %v769, 1.442695
    %v784 = vpow.pop %v783
    %v785 = vmul.f32 %v770, 1.442695
    %v786 = vpow.pop %v785
    %v787 = vsel %vm362, %v772, 0.0
    %788 = vadd.xlane.f32.xlu0 %v787
    %v789 = vpop.xlane.xlu0 %788
    %v790 = vsel %vm362, %v774, 0.0
    %791 = vadd.xlane.f32.xlu0 %v790
    %v792 = vpop.xlane.xlu0 %791
    %v793 = vsel %vm362, %v776, 0.0
    %794 = vadd.xlane.f32.xlu0 %v793
    %v795 = vpop.xlane.xlu0 %794
    %v796 = vsel %vm362, %v778, 0.0
    %797 = vadd.xlane.f32.xlu0 %v796
    %v798 = vpop.xlane.xlu0 %797
    %v799 = vsel %vm362, %v780, 0.0
    %800 = vadd.xlane.f32.xlu0 %v799
    %v801 = vpop.xlane.xlu0 %800
    %v802 = vsel %vm362, %v782, 0.0
    %803 = vadd.xlane.f32.xlu0 %v802
    %v804 = vpop.xlane.xlu0 %803
    %v805 = vsel %vm362, %v784, 0.0
    %806 = vadd.xlane.f32.xlu0 %v805
    %v807 = vpop.xlane.xlu0 %806
    %v808 = vsel %vm362, %v786, 0.0
    %809 = vadd.xlane.f32.xlu0 %v808
    %v810 = vpop.xlane.xlu0 %809
    %v811 = vrcp.pop %v789
    %v812 = vrcp.pop %v792
    %v813 = vrcp.pop %v795
    %v814 = vrcp.pop %v798
    %v815 = vrcp.pop %v801
    %v816 = vrcp.pop %v804
    %v817 = vrcp.pop %v807
    %v818 = vrcp.pop %v810
    %v819 = vmul.f32 %v772, %v811
    %v820 = vmul.f32 %v774, %v812
    %v821 = vmul.f32 %v776, %v813
    %v822 = vmul.f32 %v778, %v814
    %v823 = vmul.f32 %v780, %v815
    %v824 = vmul.f32 %v782, %v816
    %v825 = vmul.f32 %v784, %v817
    %v826 = vmul.f32 %v786, %v818
    %v827 = vpack.c.bf16 %v819, %v819
    %v828 = vpack.c.bf16 %v820, %v820
    %v829 = vpack.c.bf16 %v821, %v821
    %v830 = vpack.c.bf16 %v822, %v822
    %v831 = vpack.c.bf16 %v823, %v823
    %v832 = vpack.c.bf16 %v824, %v824
    %v833 = vpack.c.bf16 %v825, %v825
    %v834 = vpack.c.bf16 %v826, %v826
    %v836 = vsel %vm362, %v827, 0
    %vm838 = vcmask 1043456
    %v840 = vsel %vm838, %v354, 0
    %842 = vmatprep.subr.bf16.mxu0 0
    %843 = vmatpush1.bf16.msra.mxu0 0
    %844 = vmatprep.subr.bf16.mxu0 0
    %845 = vmatpush1.bf16.msra.mxu0 0
    %846 = vmatprep.subr.bf16.mxu0 0
    %847 = vmatpush1.bf16.msra.mxu0 0
    %848 = vmatprep.subr.bf16.mxu0 0
    %849 = vmatpush1.bf16.msra.mxu0 0
    %850 = vmatprep.subr.bf16.mxu0 0
    %851 = vmatpush1.bf16.msra.mxu0 0
    %852 = vmatprep.subr.bf16.mxu0 0
    %853 = vmatpush1.bf16.msra.mxu0 0
    %854 = vmatprep.subr.bf16.mxu0 0
    %855 = vmatpush1.bf16.msra.mxu0 0
    %856 = vmatprep.subr.bf16.mxu0 0
    %857 = vmatpush1.bf16.msra.mxu0 %v840
    %858 = vmatprep.subr.bf16.mxu0 0
    %859 = vmatpush2.bf16.msra.mxu0 0
    %860 = vmatprep.subr.bf16.mxu0 0
    %861 = vmatpush2.bf16.msra.mxu0 0
    %862 = vmatprep.subr.bf16.mxu0 0
    %863 = vmatpush2.bf16.msra.mxu0 0
    %864 = vmatprep.subr.bf16.mxu0 0
    %865 = vmatpush2.bf16.msra.mxu0 0
    %866 = vmatprep.subr.bf16.mxu0 0
    %867 = vmatpush2.bf16.msra.mxu0 0
    %868 = vmatprep.subr.bf16.mxu0 0
    %869 = vmatpush2.bf16.msra.mxu0 0
    %870 = vmatprep.subr.bf16.mxu0 0
    %871 = vmatpush2.bf16.msra.mxu0 0
    %872 = vmatprep.subr.bf16.mxu0 0
    %873 = vmatpush2.bf16.msra.mxu0 0
    %874 = vmatprep.mubr.bf16.mxu0 0
    %875 = vmatmul.mubr.bf16.gmra.mxu0 %v836
    %v876 = vpop.f32.mrf.mxu0
    %v877 = vadd.f32 0.0, %v876
    %v878 = vpop.f32.mrf.mxu0
    %v879 = vpop.f32.mrf.mxu0
    %v880 = vpop.f32.mrf.mxu0
    %881 = vdwg.mxu0
    %v883 = vsel %vm362, %v828, 0
    %v886 = vsel %vm838, %v355, 0
    %888 = vmatprep.subr.bf16.mxu0 0
    %889 = vmatpush1.bf16.msra.mxu0 0
    %890 = vmatprep.subr.bf16.mxu0 0
    %891 = vmatpush1.bf16.msra.mxu0 0
    %892 = vmatprep.subr.bf16.mxu0 0
    %893 = vmatpush1.bf16.msra.mxu0 0
    %894 = vmatprep.subr.bf16.mxu0 0
    %895 = vmatpush1.bf16.msra.mxu0 0
    %896 = vmatprep.subr.bf16.mxu0 0
    %897 = vmatpush1.bf16.msra.mxu0 0
    %898 = vmatprep.subr.bf16.mxu0 0
    %899 = vmatpush1.bf16.msra.mxu0 0
    %900 = vmatprep.subr.bf16.mxu0 0
    %901 = vmatpush1.bf16.msra.mxu0 0
    %902 = vmatprep.subr.bf16.mxu0 0
    %903 = vmatpush1.bf16.msra.mxu0 %v886
    %904 = vmatprep.subr.bf16.mxu0 0
    %905 = vmatpush2.bf16.msra.mxu0 0
    %906 = vmatprep.subr.bf16.mxu0 0
    %907 = vmatpush2.bf16.msra.mxu0 0
    %908 = vmatprep.subr.bf16.mxu0 0
    %909 = vmatpush2.bf16.msra.mxu0 0
    %910 = vmatprep.subr.bf16.mxu0 0
    %911 = vmatpush2.bf16.msra.mxu0 0
    %912 = vmatprep.subr.bf16.mxu0 0
    %913 = vmatpush2.bf16.msra.mxu0 0
    %914 = vmatprep.subr.bf16.mxu0 0
    %915 = vmatpush2.bf16.msra.mxu0 0
    %916 = vmatprep.subr.bf16.mxu0 0
    %917 = vmatpush2.bf16.msra.mxu0 0
    %918 = vmatprep.subr.bf16.mxu0 0
    %919 = vmatpush2.bf16.msra.mxu0 0
    %920 = vmatprep.mubr.bf16.mxu0 0
    %921 = vmatmul.mubr.bf16.gmra.mxu0 %v883
    %v922 = vpop.f32.mrf.mxu0
    %v923 = vadd.f32 0.0, %v922
    %v924 = vpop.f32.mrf.mxu0
    %v925 = vpop.f32.mrf.mxu0
    %v926 = vpop.f32.mrf.mxu0
    %927 = vdwg.mxu0
    %v929 = vsel %vm362, %v829, 0
    %v932 = vsel %vm838, %v356, 0
    %934 = vmatprep.subr.bf16.mxu0 0
    %935 = vmatpush1.bf16.msra.mxu0 0
    %936 = vmatprep.subr.bf16.mxu0 0
    %937 = vmatpush1.bf16.msra.mxu0 0
    %938 = vmatprep.subr.bf16.mxu0 0
    %939 = vmatpush1.bf16.msra.mxu0 0
    %940 = vmatprep.subr.bf16.mxu0 0
    %941 = vmatpush1.bf16.msra.mxu0 0
    %942 = vmatprep.subr.bf16.mxu0 0
    %943 = vmatpush1.bf16.msra.mxu0 0
    %944 = vmatprep.subr.bf16.mxu0 0
    %945 = vmatpush1.bf16.msra.mxu0 0
    %946 = vmatprep.subr.bf16.mxu0 0
    %947 = vmatpush1.bf16.msra.mxu0 0
    %948 = vmatprep.subr.bf16.mxu0 0
    %949 = vmatpush1.bf16.msra.mxu0 %v932
    %950 = vmatprep.subr.bf16.mxu0 0
    %951 = vmatpush2.bf16.msra.mxu0 0
    %952 = vmatprep.subr.bf16.mxu0 0
    %953 = vmatpush2.bf16.msra.mxu0 0
    %954 = vmatprep.subr.bf16.mxu0 0
    %955 = vmatpush2.bf16.msra.mxu0 0
    %956 = vmatprep.subr.bf16.mxu0 0
    %957 = vmatpush2.bf16.msra.mxu0 0
    %958 = vmatprep.subr.bf16.mxu0 0
    %959 = vmatpush2.bf16.msra.mxu0 0
    %960 = vmatprep.subr.bf16.mxu0 0
    %961 = vmatpush2.bf16.msra.mxu0 0
    %962 = vmatprep.subr.bf16.mxu0 0
    %963 = vmatpush2.bf16.msra.mxu0 0
    %964 = vmatprep.subr.bf16.mxu0 0
    %965 = vmatpush2.bf16.msra.mxu0 0
    %966 = vmatprep.mubr.bf16.mxu0 0
    %967 = vmatmul.mubr.bf16.gmra.mxu0 %v929
    %v968 = vpop.f32.mrf.mxu0
    %v969 = vadd.f32 0.0, %v968
    %v970 = vpop.f32.mrf.mxu0
    %v971 = vpop.f32.mrf.mxu0
    %v972 = vpop.f32.mrf.mxu0
    %973 = vdwg.mxu0
    %v975 = vsel %vm362, %v830, 0
    %v978 = vsel %vm838, %v357, 0
    %980 = vmatprep.subr.bf16.mxu0 0
    %981 = vmatpush1.bf16.msra.mxu0 0
    %982 = vmatprep.subr.bf16.mxu0 0
    %983 = vmatpush1.bf16.msra.mxu0 0
    %984 = vmatprep.subr.bf16.mxu0 0
    %985 = vmatpush1.bf16.msra.mxu0 0
    %986 = vmatprep.subr.bf16.mxu0 0
    %987 = vmatpush1.bf16.msra.mxu0 0
    %988 = vmatprep.subr.bf16.mxu0 0
    %989 = vmatpush1.bf16.msra.mxu0 0
    %990 = vmatprep.subr.bf16.mxu0 0
    %991 = vmatpush1.bf16.msra.mxu0 0
    %992 = vmatprep.subr.bf16.mxu0 0
    %993 = vmatpush1.bf16.msra.mxu0 0
    %994 = vmatprep.subr.bf16.mxu0 0
    %995 = vmatpush1.bf16.msra.mxu0 %v978
    %996 = vmatprep.subr.bf16.mxu0 0
    %997 = vmatpush2.bf16.msra.mxu0 0
    %998 = vmatprep.subr.bf16.mxu0 0
    %999 = vmatpush2.bf16.msra.mxu0 0
    %1000 = vmatprep.subr.bf16.mxu0 0
    %1001 = vmatpush2.bf16.msra.mxu0 0
    %1002 = vmatprep.subr.bf16.mxu0 0
    %1003 = vmatpush2.bf16.msra.mxu0 0
    %1004 = vmatprep.subr.bf16.mxu0 0
    %1005 = vmatpush2.bf16.msra.mxu0 0
    %1006 = vmatprep.subr.bf16.mxu0 0
    %1007 = vmatpush2.bf16.msra.mxu0 0
    %1008 = vmatprep.subr.bf16.mxu0 0
    %1009 = vmatpush2.bf16.msra.mxu0 0
    %1010 = vmatprep.subr.bf16.mxu0 0
    %1011 = vmatpush2.bf16.msra.mxu0 0
    %1012 = vmatprep.mubr.bf16.mxu0 0
    %1013 = vmatmul.mubr.bf16.gmra.mxu0 %v975
    %v1014 = vpop.f32.mrf.mxu0
    %v1015 = vadd.f32 0.0, %v1014
    %v1016 = vpop.f32.mrf.mxu0
    %v1017 = vpop.f32.mrf.mxu0
    %v1018 = vpop.f32.mrf.mxu0
    %1019 = vdwg.mxu0
    %v1021 = vsel %vm362, %v831, 0
    %v1024 = vsel %vm838, %v358, 0
    %1026 = vmatprep.subr.bf16.mxu0 0
    %1027 = vmatpush1.bf16.msra.mxu0 0
    %1028 = vmatprep.subr.bf16.mxu0 0
    %1029 = vmatpush1.bf16.msra.mxu0 0
    %1030 = vmatprep.subr.bf16.mxu0 0
    %1031 = vmatpush1.bf16.msra.mxu0 0
    %1032 = vmatprep.subr.bf16.mxu0 0
    %1033 = vmatpush1.bf16.msra.mxu0 0
    %1034 = vmatprep.subr.bf16.mxu0 0
    %1035 = vmatpush1.bf16.msra.mxu0 0
    %1036 = vmatprep.subr.bf16.mxu0 0
    %1037 = vmatpush1.bf16.msra.mxu0 0
    %1038 = vmatprep.subr.bf16.mxu0 0
    %1039 = vmatpush1.bf16.msra.mxu0 0
    %1040 = vmatprep.subr.bf16.mxu0 0
    %1041 = vmatpush1.bf16.msra.mxu0 %v1024
    %1042 = vmatprep.subr.bf16.mxu0 0
    %1043 = vmatpush2.bf16.msra.mxu0 0
    %1044 = vmatprep.subr.bf16.mxu0 0
    %1045 = vmatpush2.bf16.msra.mxu0 0
    %1046 = vmatprep.subr.bf16.mxu0 0
    %1047 = vmatpush2.bf16.msra.mxu0 0
    %1048 = vmatprep.subr.bf16.mxu0 0
    %1049 = vmatpush2.bf16.msra.mxu0 0
    %1050 = vmatprep.subr.bf16.mxu0 0
    %1051 = vmatpush2.bf16.msra.mxu0 0
    %1052 = vmatprep.subr.bf16.mxu0 0
    %1053 = vmatpush2.bf16.msra.mxu0 0
    %1054 = vmatprep.subr.bf16.mxu0 0
    %1055 = vmatpush2.bf16.msra.mxu0 0
    %1056 = vmatprep.subr.bf16.mxu0 0
    %1057 = vmatpush2.bf16.msra.mxu0 0
    %1058 = vmatprep.mubr.bf16.mxu0 0
    %1059 = vmatmul.mubr.bf16.gmra.mxu0 %v1021
    %v1060 = vpop.f32.mrf.mxu0
    %v1061 = vadd.f32 0.0, %v1060
    %v1062 = vpop.f32.mrf.mxu0
    %v1063 = vpop.f32.mrf.mxu0
    %v1064 = vpop.f32.mrf.mxu0
    %1065 = vdwg.mxu0
    %v1067 = vsel %vm362, %v832, 0
    %v1070 = vsel %vm838, %v359, 0
    %1072 = vmatprep.subr.bf16.mxu0 0
    %1073 = vmatpush1.bf16.msra.mxu0 0
    %1074 = vmatprep.subr.bf16.mxu0 0
    %1075 = vmatpush1.bf16.msra.mxu0 0
    %1076 = vmatprep.subr.bf16.mxu0 0
    %1077 = vmatpush1.bf16.msra.mxu0 0
    %1078 = vmatprep.subr.bf16.mxu0 0
    %1079 = vmatpush1.bf16.msra.mxu0 0
    %1080 = vmatprep.subr.bf16.mxu0 0
    %1081 = vmatpush1.bf16.msra.mxu0 0
    %1082 = vmatprep.subr.bf16.mxu0 0
    %1083 = vmatpush1.bf16.msra.mxu0 0
    %1084 = vmatprep.subr.bf16.mxu0 0
    %1085 = vmatpush1.bf16.msra.mxu0 0
    %1086 = vmatprep.subr.bf16.mxu0 0
    %1087 = vmatpush1.bf16.msra.mxu0 %v1070
    %1088 = vmatprep.subr.bf16.mxu0 0
    %1089 = vmatpush2.bf16.msra.mxu0 0
    %1090 = vmatprep.subr.bf16.mxu0 0
    %1091 = vmatpush2.bf16.msra.mxu0 0
    %1092 = vmatprep.subr.bf16.mxu0 0
    %1093 = vmatpush2.bf16.msra.mxu0 0
    %1094 = vmatprep.subr.bf16.mxu0 0
    %1095 = vmatpush2.bf16.msra.mxu0 0
    %1096 = vmatprep.subr.bf16.mxu0 0
    %1097 = vmatpush2.bf16.msra.mxu0 0
    %1098 = vmatprep.subr.bf16.mxu0 0
    %1099 = vmatpush2.bf16.msra.mxu0 0
    %1100 = vmatprep.subr.bf16.mxu0 0
    %1101 = vmatpush2.bf16.msra.mxu0 0
    %1102 = vmatprep.subr.bf16.mxu0 0
    %1103 = vmatpush2.bf16.msra.mxu0 0
    %1104 = vmatprep.mubr.bf16.mxu0 0
    %1105 = vmatmul.mubr.bf16.gmra.mxu0 %v1067
    %v1106 = vpop.f32.mrf.mxu0
    %v1107 = vadd.f32 0.0, %v1106
    %v1108 = vpop.f32.mrf.mxu0
    %v1109 = vpop.f32.mrf.mxu0
    %v1110 = vpop.f32.mrf.mxu0
    %1111 = vdwg.mxu0
    %v1113 = vsel %vm362, %v833, 0
    %v1116 = vsel %vm838, %v360, 0
    %1118 = vmatprep.subr.bf16.mxu0 0
    %1119 = vmatpush1.bf16.msra.mxu0 0
    %1120 = vmatprep.subr.bf16.mxu0 0
    %1121 = vmatpush1.bf16.msra.mxu0 0
    %1122 = vmatprep.subr.bf16.mxu0 0
    %1123 = vmatpush1.bf16.msra.mxu0 0
    %1124 = vmatprep.subr.bf16.mxu0 0
    %1125 = vmatpush1.bf16.msra.mxu0 0
    %1126 = vmatprep.subr.bf16.mxu0 0
    %1127 = vmatpush1.bf16.msra.mxu0 0
    %1128 = vmatprep.subr.bf16.mxu0 0
    %1129 = vmatpush1.bf16.msra.mxu0 0
    %1130 = vmatprep.subr.bf16.mxu0 0
    %1131 = vmatpush1.bf16.msra.mxu0 0
    %1132 = vmatprep.subr.bf16.mxu0 0
    %1133 = vmatpush1.bf16.msra.mxu0 %v1116
    %1134 = vmatprep.subr.bf16.mxu0 0
    %1135 = vmatpush2.bf16.msra.mxu0 0
    %1136 = vmatprep.subr.bf16.mxu0 0
    %1137 = vmatpush2.bf16.msra.mxu0 0
    %1138 = vmatprep.subr.bf16.mxu0 0
    %1139 = vmatpush2.bf16.msra.mxu0 0
    %1140 = vmatprep.subr.bf16.mxu0 0
    %1141 = vmatpush2.bf16.msra.mxu0 0
    %1142 = vmatprep.subr.bf16.mxu0 0
    %1143 = vmatpush2.bf16.msra.mxu0 0
    %1144 = vmatprep.subr.bf16.mxu0 0
    %1145 = vmatpush2.bf16.msra.mxu0 0
    %1146 = vmatprep.subr.bf16.mxu0 0
    %1147 = vmatpush2.bf16.msra.mxu0 0
    %1148 = vmatprep.subr.bf16.mxu0 0
    %1149 = vmatpush2.bf16.msra.mxu0 0
    %1150 = vmatprep.mubr.bf16.mxu0 0
    %1151 = vmatmul.mubr.bf16.gmra.mxu0 %v1113
    %v1152 = vpop.f32.mrf.mxu0
    %v1153 = vadd.f32 0.0, %v1152
    %v1154 = vpop.f32.mrf.mxu0
    %v1155 = vpop.f32.mrf.mxu0
    %v1156 = vpop.f32.mrf.mxu0
    %1157 = vdwg.mxu0
    %v1159 = vsel %vm362, %v834, 0
    %v1162 = vsel %vm838, %v361, 0
    %1164 = vmatprep.subr.bf16.mxu0 0
    %1165 = vmatpush1.bf16.msra.mxu0 0
    %1166 = vmatprep.subr.bf16.mxu0 0
    %1167 = vmatpush1.bf16.msra.mxu0 0
    %1168 = vmatprep.subr.bf16.mxu0 0
    %1169 = vmatpush1.bf16.msra.mxu0 0
    %1170 = vmatprep.subr.bf16.mxu0 0
    %1171 = vmatpush1.bf16.msra.mxu0 0
    %1172 = vmatprep.subr.bf16.mxu0 0
    %1173 = vmatpush1.bf16.msra.mxu0 0
    %1174 = vmatprep.subr.bf16.mxu0 0
    %1175 = vmatpush1.bf16.msra.mxu0 0
    %1176 = vmatprep.subr.bf16.mxu0 0
    %1177 = vmatpush1.bf16.msra.mxu0 0
    %1178 = vmatprep.subr.bf16.mxu0 0
    %1179 = vmatpush1.bf16.msra.mxu0 %v1162
    %1180 = vmatprep.subr.bf16.mxu0 0
    %1181 = vmatpush2.bf16.msra.mxu0 0
    %1182 = vmatprep.subr.bf16.mxu0 0
    %1183 = vmatpush2.bf16.msra.mxu0 0
    %1184 = vmatprep.subr.bf16.mxu0 0
    %1185 = vmatpush2.bf16.msra.mxu0 0
    %1186 = vmatprep.subr.bf16.mxu0 0
    %1187 = vmatpush2.bf16.msra.mxu0 0
    %1188 = vmatprep.subr.bf16.mxu0 0
    %1189 = vmatpush2.bf16.msra.mxu0 0
    %1190 = vmatprep.subr.bf16.mxu0 0
    %1191 = vmatpush2.bf16.msra.mxu0 0
    %1192 = vmatprep.subr.bf16.mxu0 0
    %1193 = vmatpush2.bf16.msra.mxu0 0
    %1194 = vmatprep.subr.bf16.mxu0 0
    %1195 = vmatpush2.bf16.msra.mxu0 0
    %1196 = vmatprep.mubr.bf16.mxu0 0
    %1197 = vmatmul.mubr.bf16.gmra.mxu0 %v1159
    %v1198 = vpop.f32.mrf.mxu0
    %v1199 = vadd.f32 0.0, %v1198
    %v1200 = vpop.f32.mrf.mxu0
    %v1201 = vpop.f32.mrf.mxu0
    %v1202 = vpop.f32.mrf.mxu0
    %1203 = vdwg.mxu0
    %1206 = vrot.lane.b32.xlu0 %v969, 8
    %v1207 = vpop.permute.xlu0 %1206
    %1208 = vrot.lane.b32.xlu0 %v1015, 8
    %v1209 = vpop.permute.xlu0 %1208
    %1214 = vrot.lane.b32.xlu0 %v1061, 16
    %v1215 = vpop.permute.xlu0 %1214
    %1216 = vrot.lane.b32.xlu0 %v1107, 16
    %v1217 = vpop.permute.xlu0 %1216
    %1222 = vrot.lane.b32.xlu0 %v1153, 24
    %v1223 = vpop.permute.xlu0 %1222
    %1224 = vrot.lane.b32.xlu0 %v1199, 24
    %v1225 = vpop.permute.xlu0 %1224
    %v1228 = vsel %vm362, %v877, %v1207
    %v1229 = vsel %vm362, %v923, %v1209
    %vm1230 = vcmask 130048
    %v1231 = vsel %vm1230, %v1228, %v1215
    %v1232 = vsel %vm1230, %v1229, %v1217
    %vm1233 = vcmask 195584
    %v1234 = vsel %vm1233, %v1231, %v1223
    %v1235 = vsel %vm1233, %v1232, %v1225
    %v1236 = vpack.c.bf16 %v1235, %v1234
    %v1237 = vld [vmem:[%s6] sm:$0xf]
    %v1238 = vld [vmem:[%s6 + $0x4] sm:$0xf]
    %v1239 = vld [vmem:[%s6 + $0x8] sm:$0xf]
    %v1240 = vld [vmem:[%s6 + $0xc] sm:$0xf]
    %v1241 = vld [vmem:[%s7] sm:$0x1]
    %v1243 = vlaneseq
    %v1244 = vshrl.u32 %v1243, 7
    %v1245 = vsub.s32 0, %v1244
    %v1246 = vrot.slane %v1241, %v1245
    %v1252 = vunpack.c.l.b16 %v1237
    %v1253 = vunpack.c.l.b16 %v1238
    %v1254 = vunpack.c.l.b16 %v1239
    %v1255 = vunpack.c.l.b16 %v1240
    %v1256 = vpack.c.b16 %v1253, %v1252
    %v1257 = vpack.c.b16 %v1255, %v1254
    %v1261 = vsel %vm59, %v1236, 0
    %1263 = vmatprep.subr.bf16.mxu0 0
    %1264 = vmatpush1.bf16.msra.mxu0 0
    %1265 = vmatprep.subr.bf16.mxu0 0
    %1266 = vmatpush1.bf16.msra.mxu0 0
    %1267 = vmatprep.subr.bf16.mxu0 0
    %1268 = vmatpush1.bf16.msra.mxu0 0
    %1269 = vmatprep.subr.bf16.mxu0 0
    %1270 = vmatpush1.bf16.msra.mxu0 0
    %1271 = vmatprep.subr.bf16.mxu0 0
    %1272 = vmatpush1.bf16.msra.mxu0 0
    %1273 = vmatprep.subr.bf16.mxu0 0
    %1274 = vmatpush1.bf16.msra.mxu0 0
    %1275 = vmatprep.subr.bf16.mxu0 0
    %1276 = vmatpush1.bf16.msra.mxu0 %v1257
    %1277 = vmatprep.subr.bf16.mxu0 0
    %1278 = vmatpush1.bf16.msra.mxu0 %v1256
    %1279 = vmatprep.subr.bf16.mxu0 0
    %1280 = vmatpush2.bf16.msra.mxu0 0
    %1281 = vmatprep.subr.bf16.mxu0 0
    %1282 = vmatpush2.bf16.msra.mxu0 0
    %1283 = vmatprep.subr.bf16.mxu0 0
    %1284 = vmatpush2.bf16.msra.mxu0 0
    %1285 = vmatprep.subr.bf16.mxu0 0
    %1286 = vmatpush2.bf16.msra.mxu0 0
    %1287 = vmatprep.subr.bf16.mxu0 0
    %1288 = vmatpush2.bf16.msra.mxu0 0
    %1289 = vmatprep.subr.bf16.mxu0 0
    %1290 = vmatpush2.bf16.msra.mxu0 0
    %1291 = vmatprep.subr.bf16.mxu0 0
    %1292 = vmatpush2.bf16.msra.mxu0 0
    %1293 = vmatprep.subr.bf16.mxu0 0
    %1294 = vmatpush2.bf16.msra.mxu0 0
    %1295 = vmatprep.mubr.bf16.mxu0 0
    %1296 = vmatmul.mubr.bf16.gmra.mxu0 %v1261
    %v1297 = vpop.f32.mrf.mxu0
    %v1298 = vadd.f32 %v1246, %v1297
    %v1299 = vpop.f32.mrf.mxu0
    %v1300 = vpop.f32.mrf.mxu0
    %v1301 = vadd.f32 %v1246, %v1300
    %v1302 = vpop.f32.mrf.mxu0
    %1303 = vdwg.mxu0
    %v1304 = vadd.f32 %v101, %v1298
    %v1305 = vadd.f32 %v102, %v1301
    %v1306 = vld [vmem:[%s8] sm:$0x1]
    %v1307 = vld [vmem:[%s9] sm:$0x1]
    %v1308 = vsel %vm59, %v1304, 0.0
    %1309 = vadd.xlane.f32.xlu0 %v1308
    %v1310 = vpop.xlane.xlu0 %1309
    %v1311 = vsel %vm59, %v1305, 0.0
    %1312 = vadd.xlane.f32.xlu0 %v1311
    %v1313 = vpop.xlane.xlu0 %1312
    %v1314 = vmul.f32 %v1310, %v66
    %v1315 = vmul.f32 %v1313, %v66
    %v1316 = vsub.f32 %v1304, %v1314
    %v1317 = vsub.f32 %v1305, %v1315
    %v1318 = vmul.f32 %v1316, %v1316
    %v1319 = vmul.f32 %v1317, %v1317
    %v1320 = vsel %vm59, %v1318, 0.0
    %1321 = vadd.xlane.f32.xlu0 %v1320
    %v1322 = vpop.xlane.xlu0 %1321
    %v1323 = vsel %vm59, %v1319, 0.0
    %1324 = vadd.xlane.f32.xlu0 %v1323
    %v1325 = vpop.xlane.xlu0 %1324
    %v1326 = vmul.f32 %v1322, %v66
    %v1327 = vmul.f32 %v1325, %v66
    %v1328 = vadd.f32 %v1326, 1e-06
    %v1329 = vadd.f32 %v1327, 1e-06
    %v1330 = vrsqrt.pop %v1328
    %v1331 = vrsqrt.pop %v1329
    %v1332 = vmul.f32 %v1316, %v1330
    %v1333 = vmul.f32 %v1317, %v1331
    %v1335 = vlaneseq
    %v1336 = vshrl.u32 %v1335, 7
    %v1337 = vsub.s32 0, %v1336
    %v1338 = vrot.slane %v1306, %v1337
    %v1340 = vmul.f32 %v1332, %v1338
    %v1341 = vmul.f32 %v1333, %v1338
    %v1343 = vlaneseq
    %v1344 = vshrl.u32 %v1343, 7
    %v1345 = vsub.s32 0, %v1344
    %v1346 = vrot.slane %v1307, %v1345
    %v1348 = vadd.f32 %v1340, %v1346
    %v1349 = vadd.f32 %v1341, %v1346
    %v1350 = vpack.c.bf16 %v1349, %v1348
    %v1351 = vld [vmem:[%s10] sm:$0xf]
    %v1352 = vld [vmem:[%s10 + $0x4] sm:$0xf]
    %v1353 = vld [vmem:[%s10 + $0x8] sm:$0xf]
    %v1354 = vld [vmem:[%s10 + $0xc] sm:$0xf]
    %v1355 = vld [vmem:[%s11] sm:$0x1]
    %v1357 = vlaneseq
    %v1358 = vshrl.u32 %v1357, 7
    %v1359 = vsub.s32 0, %v1358
    %v1360 = vrot.slane %v1355, %v1359
    %v1366 = vunpack.c.l.b16 %v1351
    %v1367 = vunpack.c.l.b16 %v1352
    %v1368 = vunpack.c.l.b16 %v1353
    %v1369 = vunpack.c.l.b16 %v1354
    %v1370 = vpack.c.b16 %v1367, %v1366
    %v1371 = vpack.c.b16 %v1369, %v1368
    %v1375 = vsel %vm59, %v1350, 0
    %1377 = vmatprep.subr.bf16.mxu0 0
    %1378 = vmatpush1.bf16.msra.mxu0 0
    %1379 = vmatprep.subr.bf16.mxu0 0
    %1380 = vmatpush1.bf16.msra.mxu0 0
    %1381 = vmatprep.subr.bf16.mxu0 0
    %1382 = vmatpush1.bf16.msra.mxu0 0
    %1383 = vmatprep.subr.bf16.mxu0 0
    %1384 = vmatpush1.bf16.msra.mxu0 0
    %1385 = vmatprep.subr.bf16.mxu0 0
    %1386 = vmatpush1.bf16.msra.mxu0 0
    %1387 = vmatprep.subr.bf16.mxu0 0
    %1388 = vmatpush1.bf16.msra.mxu0 0
    %1389 = vmatprep.subr.bf16.mxu0 0
    %1390 = vmatpush1.bf16.msra.mxu0 %v1371
    %1391 = vmatprep.subr.bf16.mxu0 0
    %1392 = vmatpush1.bf16.msra.mxu0 %v1370
    %1393 = vmatprep.subr.bf16.mxu0 0
    %1394 = vmatpush2.bf16.msra.mxu0 0
    %1395 = vmatprep.subr.bf16.mxu0 0
    %1396 = vmatpush2.bf16.msra.mxu0 0
    %1397 = vmatprep.subr.bf16.mxu0 0
    %1398 = vmatpush2.bf16.msra.mxu0 0
    %1399 = vmatprep.subr.bf16.mxu0 0
    %1400 = vmatpush2.bf16.msra.mxu0 0
    %1401 = vmatprep.subr.bf16.mxu0 0
    %1402 = vmatpush2.bf16.msra.mxu0 0
    %1403 = vmatprep.subr.bf16.mxu0 0
    %1404 = vmatpush2.bf16.msra.mxu0 0
    %1405 = vmatprep.subr.bf16.mxu0 0
    %1406 = vmatpush2.bf16.msra.mxu0 0
    %1407 = vmatprep.subr.bf16.mxu0 0
    %1408 = vmatpush2.bf16.msra.mxu0 0
    %1409 = vmatprep.mubr.bf16.mxu0 0
    %1410 = vmatmul.mubr.bf16.gmra.mxu0 %v1375
    %v1411 = vpop.f32.mrf.mxu0
    %v1412 = vadd.f32 %v1360, %v1411
    %v1413 = vpop.f32.mrf.mxu0
    %v1414 = vpop.f32.mrf.mxu0
    %v1415 = vadd.f32 %v1360, %v1414
    %v1416 = vpop.f32.mrf.mxu0
    %1417 = vdwg.mxu0
    %v1418 = vmax.f32 %v1412, 0.0
    %v1419 = vmax.f32 %v1415, 0.0
    %v1420 = vpack.c.bf16 %v1419, %v1418
    %v1421 = vld [vmem:[%s12] sm:$0xf]
    %v1422 = vld [vmem:[%s12 + $0x4] sm:$0xf]
    %v1423 = vld [vmem:[%s12 + $0x8] sm:$0xf]
    %v1424 = vld [vmem:[%s12 + $0xc] sm:$0xf]
    %v1425 = vld [vmem:[%s12 + $0x10] sm:$0xf]
    %v1426 = vld [vmem:[%s12 + $0x14] sm:$0xf]
    %v1427 = vld [vmem:[%s12 + $0x18] sm:$0xf]
    %v1428 = vld [vmem:[%s12 + $0x1c] sm:$0xf]
    %v1429 = vld [vmem:[%s13] sm:$0x1]
    %v1431 = vlaneseq
    %v1432 = vshrl.u32 %v1431, 7
    %v1433 = vsub.s32 0, %v1432
    %v1434 = vrot.slane %v1429, %v1433
    %v1444 = vunpack.c.l.b16 %v1421
    %v1445 = vunpack.c.l.b16 %v1422
    %v1446 = vunpack.c.l.b16 %v1423
    %v1447 = vunpack.c.l.b16 %v1424
    %v1448 = vunpack.c.l.b16 %v1425
    %v1449 = vunpack.c.l.b16 %v1426
    %v1450 = vunpack.c.l.b16 %v1427
    %v1451 = vunpack.c.l.b16 %v1428
    %v1452 = vpack.c.b16 %v1445, %v1444
    %v1453 = vpack.c.b16 %v1447, %v1446
    %v1454 = vpack.c.b16 %v1449, %v1448
    %v1455 = vpack.c.b16 %v1451, %v1450
    %vm1460 = vcmask 523264
    %v1462 = vsel %vm1460, %v1420, 0
    %1464 = vmatprep.subr.bf16.mxu0 0
    %1465 = vmatpush1.bf16.msra.mxu0 0
    %1466 = vmatprep.subr.bf16.mxu0 0
    %1467 = vmatpush1.bf16.msra.mxu0 0
    %1468 = vmatprep.subr.bf16.mxu0 0
    %1469 = vmatpush1.bf16.msra.mxu0 0
    %1470 = vmatprep.subr.bf16.mxu0 0
    %1471 = vmatpush1.bf16.msra.mxu0 0
    %1472 = vmatprep.subr.bf16.mxu0 0
    %1473 = vmatpush1.bf16.msra.mxu0 %v1455
    %1474 = vmatprep.subr.bf16.mxu0 0
    %1475 = vmatpush1.bf16.msra.mxu0 %v1454
    %1476 = vmatprep.subr.bf16.mxu0 0
    %1477 = vmatpush1.bf16.msra.mxu0 %v1453
    %1478 = vmatprep.subr.bf16.mxu0 0
    %1479 = vmatpush1.bf16.msra.mxu0 %v1452
    %1480 = vmatprep.subr.bf16.mxu0 0
    %1481 = vmatpush2.bf16.msra.mxu0 0
    %1482 = vmatprep.subr.bf16.mxu0 0
    %1483 = vmatpush2.bf16.msra.mxu0 0
    %1484 = vmatprep.subr.bf16.mxu0 0
    %1485 = vmatpush2.bf16.msra.mxu0 0
    %1486 = vmatprep.subr.bf16.mxu0 0
    %1487 = vmatpush2.bf16.msra.mxu0 0
    %1488 = vmatprep.subr.bf16.mxu0 0
    %1489 = vmatpush2.bf16.msra.mxu0 0
    %1490 = vmatprep.subr.bf16.mxu0 0
    %1491 = vmatpush2.bf16.msra.mxu0 0
    %1492 = vmatprep.subr.bf16.mxu0 0
    %1493 = vmatpush2.bf16.msra.mxu0 0
    %1494 = vmatprep.subr.bf16.mxu0 0
    %1495 = vmatpush2.bf16.msra.mxu0 0
    %1496 = vmatprep.mubr.bf16.mxu0 0
    %1497 = vmatmul.mubr.bf16.gmra.mxu0 %v1462
    %v1498 = vpop.f32.mrf.mxu0
    %v1499 = vadd.f32 %v1434, %v1498
    %v1500 = vpop.f32.mrf.mxu0
    %v1501 = vpop.f32.mrf.mxu0
    %v1502 = vadd.f32 %v1434, %v1501
    %v1503 = vpop.f32.mrf.mxu0
    %1504 = vdwg.mxu0
    %v1505 = vadd.f32 %v1348, %v1499
    %v1506 = vadd.f32 %v1349, %v1502
    %v1507 = vld [vmem:[%s14] sm:$0x1]
    %v1508 = vld [vmem:[%s15] sm:$0x1]
    %v1509 = vsel %vm59, %v1505, 0.0
    %1510 = vadd.xlane.f32.xlu0 %v1509
    %v1511 = vpop.xlane.xlu0 %1510
    %v1512 = vsel %vm59, %v1506, 0.0
    %1513 = vadd.xlane.f32.xlu0 %v1512
    %v1514 = vpop.xlane.xlu0 %1513
    %v1515 = vmul.f32 %v1511, %v66
    %v1516 = vmul.f32 %v1514, %v66
    %v1517 = vsub.f32 %v1505, %v1515
    %v1518 = vsub.f32 %v1506, %v1516
    %v1519 = vmul.f32 %v1517, %v1517
    %v1520 = vmul.f32 %v1518, %v1518
    %v1521 = vsel %vm59, %v1519, 0.0
    %1522 = vadd.xlane.f32.xlu0 %v1521
    %v1523 = vpop.xlane.xlu0 %1522
    %v1524 = vsel %vm59, %v1520, 0.0
    %1525 = vadd.xlane.f32.xlu0 %v1524
    %v1526 = vpop.xlane.xlu0 %1525
    %v1527 = vmul.f32 %v1523, %v66
    %v1528 = vmul.f32 %v1526, %v66
    %v1529 = vadd.f32 %v1527, 1e-06
    %v1530 = vadd.f32 %v1528, 1e-06
    %v1531 = vrsqrt.pop %v1529
    %v1532 = vrsqrt.pop %v1530
    %v1533 = vmul.f32 %v1517, %v1531
    %v1534 = vmul.f32 %v1518, %v1532
    %v1536 = vlaneseq
    %v1537 = vshrl.u32 %v1536, 7
    %v1538 = vsub.s32 0, %v1537
    %v1539 = vrot.slane %v1507, %v1538
    %v1541 = vmul.f32 %v1533, %v1539
    %v1542 = vmul.f32 %v1534, %v1539
    %v1544 = vlaneseq
    %v1545 = vshrl.u32 %v1544, 7
    %v1546 = vsub.s32 0, %v1545
    %v1547 = vrot.slane %v1508, %v1546
    %v1549 = vadd.f32 %v1541, %v1547
    %v1550 = vadd.f32 %v1542, %v1547
    %v1551 = vpack.c.bf16 %v1550, %v1549
    %s1552 = scalar_lea.vmem %s3, 16
    %v1553 = vld [vmem:[%s1552] sm:$0xf]
    %v1554 = vld [vmem:[%s1552 + $0x4] sm:$0xf]
    %v1555 = vld [vmem:[%s1552 + $0x8] sm:$0xf]
    %v1556 = vld [vmem:[%s1552 + $0xc] sm:$0xf]
    %v1561 = vunpack.c.l.b16 %v1553
    %v1562 = vunpack.c.l.b16 %v1554
    %v1563 = vunpack.c.l.b16 %v1555
    %v1564 = vunpack.c.l.b16 %v1556
    %v1565 = vpack.c.b16 %v1562, %v1561
    %v1566 = vpack.c.b16 %v1564, %v1563
    %v1570 = vsel %vm59, %v1551, 0
    %1572 = vmatprep.subr.bf16.mxu0 0
    %1573 = vmatpush1.bf16.msra.mxu0 0
    %1574 = vmatprep.subr.bf16.mxu0 0
    %1575 = vmatpush1.bf16.msra.mxu0 0
    %1576 = vmatprep.subr.bf16.mxu0 0
    %1577 = vmatpush1.bf16.msra.mxu0 0
    %1578 = vmatprep.subr.bf16.mxu0 0
    %1579 = vmatpush1.bf16.msra.mxu0 0
    %1580 = vmatprep.subr.bf16.mxu0 0
    %1581 = vmatpush1.bf16.msra.mxu0 0
    %1582 = vmatprep.subr.bf16.mxu0 0
    %1583 = vmatpush1.bf16.msra.mxu0 0
    %1584 = vmatprep.subr.bf16.mxu0 0
    %1585 = vmatpush1.bf16.msra.mxu0 %v1566
    %1586 = vmatprep.subr.bf16.mxu0 0
    %1587 = vmatpush1.bf16.msra.mxu0 %v1565
    %1588 = vmatprep.subr.bf16.mxu0 0
    %1589 = vmatpush2.bf16.msra.mxu0 0
    %1590 = vmatprep.subr.bf16.mxu0 0
    %1591 = vmatpush2.bf16.msra.mxu0 0
    %1592 = vmatprep.subr.bf16.mxu0 0
    %1593 = vmatpush2.bf16.msra.mxu0 0
    %1594 = vmatprep.subr.bf16.mxu0 0
    %1595 = vmatpush2.bf16.msra.mxu0 0
    %1596 = vmatprep.subr.bf16.mxu0 0
    %1597 = vmatpush2.bf16.msra.mxu0 0
    %1598 = vmatprep.subr.bf16.mxu0 0
    %1599 = vmatpush2.bf16.msra.mxu0 0
    %1600 = vmatprep.subr.bf16.mxu0 0
    %1601 = vmatpush2.bf16.msra.mxu0 0
    %1602 = vmatprep.subr.bf16.mxu0 0
    %1603 = vmatpush2.bf16.msra.mxu0 0
    %1604 = vmatprep.mubr.bf16.mxu0 0
    %1605 = vmatmul.mubr.bf16.gmra.mxu0 %v1570
    %v1606 = vpop.f32.mrf.mxu0
    %v1607 = vadd.f32 0.0, %v1606
    %v1608 = vpop.f32.mrf.mxu0
    %v1609 = vpop.f32.mrf.mxu0
    %v1610 = vadd.f32 0.0, %v1609
    %v1611 = vpop.f32.mrf.mxu0
    %1612 = vdwg.mxu0
    %s1613 = scalar_lea.vmem %s4, 16
    %v1614 = vld [vmem:[%s1613] sm:$0xf]
    %v1615 = vld [vmem:[%s1613 + $0x4] sm:$0xf]
    %v1616 = vld [vmem:[%s1613 + $0x8] sm:$0xf]
    %v1617 = vld [vmem:[%s1613 + $0xc] sm:$0xf]
    %v1622 = vunpack.c.l.b16 %v1614
    %v1623 = vunpack.c.l.b16 %v1615
    %v1624 = vunpack.c.l.b16 %v1616
    %v1625 = vunpack.c.l.b16 %v1617
    %v1626 = vpack.c.b16 %v1623, %v1622
    %v1627 = vpack.c.b16 %v1625, %v1624
    %1630 = vmatprep.subr.bf16.mxu0 0
    %1631 = vmatpush1.bf16.msra.mxu0 0
    %1632 = vmatprep.subr.bf16.mxu0 0
    %1633 = vmatpush1.bf16.msra.mxu0 0
    %1634 = vmatprep.subr.bf16.mxu0 0
    %1635 = vmatpush1.bf16.msra.mxu0 0
    %1636 = vmatprep.subr.bf16.mxu0 0
    %1637 = vmatpush1.bf16.msra.mxu0 0
    %1638 = vmatprep.subr.bf16.mxu0 0
    %1639 = vmatpush1.bf16.msra.mxu0 0
    %1640 = vmatprep.subr.bf16.mxu0 0
    %1641 = vmatpush1.bf16.msra.mxu0 0
    %1642 = vmatprep.subr.bf16.mxu0 0
    %1643 = vmatpush1.bf16.msra.mxu0 %v1627
    %1644 = vmatprep.subr.bf16.mxu0 0
    %1645 = vmatpush1.bf16.msra.mxu0 %v1626
    %1646 = vmatprep.subr.bf16.mxu0 0
    %1647 = vmatpush2.bf16.msra.mxu0 0
    %1648 = vmatprep.subr.bf16.mxu0 0
    %1649 = vmatpush2.bf16.msra.mxu0 0
    %1650 = vmatprep.subr.bf16.mxu0 0
    %1651 = vmatpush2.bf16.msra.mxu0 0
    %1652 = vmatprep.subr.bf16.mxu0 0
    %1653 = vmatpush2.bf16.msra.mxu0 0
    %1654 = vmatprep.subr.bf16.mxu0 0
    %1655 = vmatpush2.bf16.msra.mxu0 0
    %1656 = vmatprep.subr.bf16.mxu0 0
    %1657 = vmatpush2.bf16.msra.mxu0 0
    %1658 = vmatprep.subr.bf16.mxu0 0
    %1659 = vmatpush2.bf16.msra.mxu0 0
    %1660 = vmatprep.subr.bf16.mxu0 0
    %1661 = vmatpush2.bf16.msra.mxu0 0
    %1662 = vmatprep.mubr.bf16.mxu0 0
    %1663 = vmatmul.mubr.bf16.gmra.mxu0 %v1570
    %v1664 = vpop.f32.mrf.mxu0
    %v1665 = vadd.f32 0.0, %v1664
    %v1666 = vpop.f32.mrf.mxu0
    %v1667 = vpop.f32.mrf.mxu0
    %v1668 = vadd.f32 0.0, %v1667
    %v1669 = vpop.f32.mrf.mxu0
    %1670 = vdwg.mxu0
    %s1671 = scalar_lea.vmem %s5, 16
    %v1672 = vld [vmem:[%s1671] sm:$0xf]
    %v1673 = vld [vmem:[%s1671 + $0x4] sm:$0xf]
    %v1674 = vld [vmem:[%s1671 + $0x8] sm:$0xf]
    %v1675 = vld [vmem:[%s1671 + $0xc] sm:$0xf]
    %v1680 = vunpack.c.l.b16 %v1672
    %v1681 = vunpack.c.l.b16 %v1673
    %v1682 = vunpack.c.l.b16 %v1674
    %v1683 = vunpack.c.l.b16 %v1675
    %v1684 = vpack.c.b16 %v1681, %v1680
    %v1685 = vpack.c.b16 %v1683, %v1682
    %1688 = vmatprep.subr.bf16.mxu0 0
    %1689 = vmatpush1.bf16.msra.mxu0 0
    %1690 = vmatprep.subr.bf16.mxu0 0
    %1691 = vmatpush1.bf16.msra.mxu0 0
    %1692 = vmatprep.subr.bf16.mxu0 0
    %1693 = vmatpush1.bf16.msra.mxu0 0
    %1694 = vmatprep.subr.bf16.mxu0 0
    %1695 = vmatpush1.bf16.msra.mxu0 0
    %1696 = vmatprep.subr.bf16.mxu0 0
    %1697 = vmatpush1.bf16.msra.mxu0 0
    %1698 = vmatprep.subr.bf16.mxu0 0
    %1699 = vmatpush1.bf16.msra.mxu0 0
    %1700 = vmatprep.subr.bf16.mxu0 0
    %1701 = vmatpush1.bf16.msra.mxu0 %v1685
    %1702 = vmatprep.subr.bf16.mxu0 0
    %1703 = vmatpush1.bf16.msra.mxu0 %v1684
    %1704 = vmatprep.subr.bf16.mxu0 0
    %1705 = vmatpush2.bf16.msra.mxu0 0
    %1706 = vmatprep.subr.bf16.mxu0 0
    %1707 = vmatpush2.bf16.msra.mxu0 0
    %1708 = vmatprep.subr.bf16.mxu0 0
    %1709 = vmatpush2.bf16.msra.mxu0 0
    %1710 = vmatprep.subr.bf16.mxu0 0
    %1711 = vmatpush2.bf16.msra.mxu0 0
    %1712 = vmatprep.subr.bf16.mxu0 0
    %1713 = vmatpush2.bf16.msra.mxu0 0
    %1714 = vmatprep.subr.bf16.mxu0 0
    %1715 = vmatpush2.bf16.msra.mxu0 0
    %1716 = vmatprep.subr.bf16.mxu0 0
    %1717 = vmatpush2.bf16.msra.mxu0 0
    %1718 = vmatprep.subr.bf16.mxu0 0
    %1719 = vmatpush2.bf16.msra.mxu0 0
    %1720 = vmatprep.mubr.bf16.mxu0 0
    %1721 = vmatmul.mubr.bf16.gmra.mxu0 %v1570
    %v1722 = vpop.f32.mrf.mxu0
    %v1723 = vadd.f32 0.0, %v1722
    %v1724 = vpop.f32.mrf.mxu0
    %v1725 = vpop.f32.mrf.mxu0
    %v1726 = vadd.f32 0.0, %v1725
    %v1727 = vpop.f32.mrf.mxu0
    %1728 = vdwg.mxu0
    %1731 = vrot.lane.b32.xlu0 %v1607, 120
    %v1732 = vpop.permute.xlu0 %1731
    %1733 = vrot.lane.b32.xlu0 %v1610, 120
    %v1734 = vpop.permute.xlu0 %1733
    %1737 = vrot.lane.b32.xlu0 %v1607, 112
    %v1738 = vpop.permute.xlu0 %1737
    %1739 = vrot.lane.b32.xlu0 %v1610, 112
    %v1740 = vpop.permute.xlu0 %1739
    %1743 = vrot.lane.b32.xlu0 %v1607, 104
    %v1744 = vpop.permute.xlu0 %1743
    %1745 = vrot.lane.b32.xlu0 %v1610, 104
    %v1746 = vpop.permute.xlu0 %1745
    %v1749 = vpack.c.bf16 %v1607, %v1607
    %v1750 = vpack.c.bf16 %v1610, %v1610
    %v1751 = vpack.c.bf16 %v1732, %v1732
    %v1752 = vpack.c.bf16 %v1734, %v1734
    %v1753 = vpack.c.bf16 %v1738, %v1738
    %v1754 = vpack.c.bf16 %v1740, %v1740
    %v1755 = vpack.c.bf16 %v1744, %v1744
    %v1756 = vpack.c.bf16 %v1746, %v1746
    %1759 = vrot.lane.b32.xlu0 %v1665, 120
    %v1760 = vpop.permute.xlu0 %1759
    %1761 = vrot.lane.b32.xlu0 %v1668, 120
    %v1762 = vpop.permute.xlu0 %1761
    %1765 = vrot.lane.b32.xlu0 %v1665, 112
    %v1766 = vpop.permute.xlu0 %1765
    %1767 = vrot.lane.b32.xlu0 %v1668, 112
    %v1768 = vpop.permute.xlu0 %1767
    %1771 = vrot.lane.b32.xlu0 %v1665, 104
    %v1772 = vpop.permute.xlu0 %1771
    %1773 = vrot.lane.b32.xlu0 %v1668, 104
    %v1774 = vpop.permute.xlu0 %1773
    %v1777 = vpack.c.bf16 %v1665, %v1665
    %v1778 = vpack.c.bf16 %v1668, %v1668
    %v1779 = vpack.c.bf16 %v1760, %v1760
    %v1780 = vpack.c.bf16 %v1762, %v1762
    %v1781 = vpack.c.bf16 %v1766, %v1766
    %v1782 = vpack.c.bf16 %v1768, %v1768
    %v1783 = vpack.c.bf16 %v1772, %v1772
    %v1784 = vpack.c.bf16 %v1774, %v1774
    %1787 = vrot.lane.b32.xlu0 %v1723, 120
    %v1788 = vpop.permute.xlu0 %1787
    %1789 = vrot.lane.b32.xlu0 %v1726, 120
    %v1790 = vpop.permute.xlu0 %1789
    %1793 = vrot.lane.b32.xlu0 %v1723, 112
    %v1794 = vpop.permute.xlu0 %1793
    %1795 = vrot.lane.b32.xlu0 %v1726, 112
    %v1796 = vpop.permute.xlu0 %1795
    %1799 = vrot.lane.b32.xlu0 %v1723, 104
    %v1800 = vpop.permute.xlu0 %1799
    %1801 = vrot.lane.b32.xlu0 %v1726, 104
    %v1802 = vpop.permute.xlu0 %1801
    %v1805 = vpack.c.bf16 %v1723, %v1723
    %v1806 = vpack.c.bf16 %v1726, %v1726
    %v1807 = vpack.c.bf16 %v1788, %v1788
    %v1808 = vpack.c.bf16 %v1790, %v1790
    %v1809 = vpack.c.bf16 %v1794, %v1794
    %v1810 = vpack.c.bf16 %v1796, %v1796
    %v1811 = vpack.c.bf16 %v1800, %v1800
    %v1812 = vpack.c.bf16 %v1802, %v1802
    %v1814 = vsel %vm362, %v1749, 0
    %v1817 = vsel %vm362, %v1777, 0
    %1819 = vmatprep.subr.bf16.mxu0 0
    %1820 = vmatpush1.bf16.xpose.msra.mxu0 0
    %1821 = vmatprep.subr.bf16.mxu0 0
    %1822 = vmatpush1.bf16.xpose.msra.mxu0 0
    %1823 = vmatprep.subr.bf16.mxu0 0
    %1824 = vmatpush1.bf16.xpose.msra.mxu0 0
    %1825 = vmatprep.subr.bf16.mxu0 0
    %1826 = vmatpush1.bf16.xpose.msra.mxu0 0
    %1827 = vmatprep.subr.bf16.mxu0 0
    %1828 = vmatpush1.bf16.xpose.msra.mxu0 0
    %1829 = vmatprep.subr.bf16.mxu0 0
    %1830 = vmatpush1.bf16.xpose.msra.mxu0 0
    %1831 = vmatprep.subr.bf16.mxu0 0
    %1832 = vmatpush1.bf16.xpose.msra.mxu0 0
    %1833 = vmatprep.subr.bf16.mxu0 0
    %1834 = vmatpush1.bf16.xpose.msra.mxu0 %v1817
    %1835 = vmatprep.subr.bf16.mxu0 0
    %1836 = vmatpush2.bf16.xpose.msra.mxu0 0
    %1837 = vmatprep.subr.bf16.mxu0 0
    %1838 = vmatpush2.bf16.xpose.msra.mxu0 0
    %1839 = vmatprep.subr.bf16.mxu0 0
    %1840 = vmatpush2.bf16.xpose.msra.mxu0 0
    %1841 = vmatprep.subr.bf16.mxu0 0
    %1842 = vmatpush2.bf16.xpose.msra.mxu0 0
    %1843 = vmatprep.subr.bf16.mxu0 0
    %1844 = vmatpush2.bf16.xpose.msra.mxu0 0
    %1845 = vmatprep.subr.bf16.mxu0 0
    %1846 = vmatpush2.bf16.xpose.msra.mxu0 0
    %1847 = vmatprep.subr.bf16.mxu0 0
    %1848 = vmatpush2.bf16.xpose.msra.mxu0 0
    %1849 = vmatprep.subr.bf16.mxu0 0
    %1850 = vmatpush2.bf16.xpose.msra.mxu0 0
    %1851 = vmatprep.mubr.bf16.mxu0 0
    %1852 = vmatmul.mubr.bf16.gmra.mxu0 %v1814
    %v1853 = vpop.f32.mrf.mxu0
    %v1854 = vadd.f32 0.0, %v1853
    %v1855 = vpop.f32.mrf.mxu0
    %v1856 = vpop.f32.mrf.mxu0
    %v1857 = vpop.f32.mrf.mxu0
    %1858 = vdwg.mxu0
    %v1860 = vsel %vm362, %v1750, 0
    %v1863 = vsel %vm362, %v1778, 0
    %1865 = vmatprep.subr.bf16.mxu0 0
    %1866 = vmatpush1.bf16.xpose.msra.mxu0 0
    %1867 = vmatprep.subr.bf16.mxu0 0
    %1868 = vmatpush1.bf16.xpose.msra.mxu0 0
    %1869 = vmatprep.subr.bf16.mxu0 0
    %1870 = vmatpush1.bf16.xpose.msra.mxu0 0
    %1871 = vmatprep.subr.bf16.mxu0 0
    %1872 = vmatpush1.bf16.xpose.msra.mxu0 0
    %1873 = vmatprep.subr.bf16.mxu0 0
    %1874 = vmatpush1.bf16.xpose.msra.mxu0 0
    %1875 = vmatprep.subr.bf16.mxu0 0
    %1876 = vmatpush1.bf16.xpose.msra.mxu0 0
    %1877 = vmatprep.subr.bf16.mxu0 0
    %1878 = vmatpush1.bf16.xpose.msra.mxu0 0
    %1879 = vmatprep.subr.bf16.mxu0 0
    %1880 = vmatpush1.bf16.xpose.msra.mxu0 %v1863
    %1881 = vmatprep.subr.bf16.mxu0 0
    %1882 = vmatpush2.bf16.xpose.msra.mxu0 0
    %1883 = vmatprep.subr.bf16.mxu0 0
    %1884 = vmatpush2.bf16.xpose.msra.mxu0 0
    %1885 = vmatprep.subr.bf16.mxu0 0
    %1886 = vmatpush2.bf16.xpose.msra.mxu0 0
    %1887 = vmatprep.subr.bf16.mxu0 0
    %1888 = vmatpush2.bf16.xpose.msra.mxu0 0
    %1889 = vmatprep.subr.bf16.mxu0 0
    %1890 = vmatpush2.bf16.xpose.msra.mxu0 0
    %1891 = vmatprep.subr.bf16.mxu0 0
    %1892 = vmatpush2.bf16.xpose.msra.mxu0 0
    %1893 = vmatprep.subr.bf16.mxu0 0
    %1894 = vmatpush2.bf16.xpose.msra.mxu0 0
    %1895 = vmatprep.subr.bf16.mxu0 0
    %1896 = vmatpush2.bf16.xpose.msra.mxu0 0
    %1897 = vmatprep.mubr.bf16.mxu0 0
    %1898 = vmatmul.mubr.bf16.gmra.mxu0 %v1860
    %v1899 = vpop.f32.mrf.mxu0
    %v1900 = vadd.f32 0.0, %v1899
    %v1901 = vpop.f32.mrf.mxu0
    %v1902 = vpop.f32.mrf.mxu0
    %v1903 = vpop.f32.mrf.mxu0
    %1904 = vdwg.mxu0
    %v1906 = vsel %vm362, %v1751, 0
    %v1909 = vsel %vm362, %v1779, 0
    %1911 = vmatprep.subr.bf16.mxu0 0
    %1912 = vmatpush1.bf16.xpose.msra.mxu0 0
    %1913 = vmatprep.subr.bf16.mxu0 0
    %1914 = vmatpush1.bf16.xpose.msra.mxu0 0
    %1915 = vmatprep.subr.bf16.mxu0 0
    %1916 = vmatpush1.bf16.xpose.msra.mxu0 0
    %1917 = vmatprep.subr.bf16.mxu0 0
    %1918 = vmatpush1.bf16.xpose.msra.mxu0 0
    %1919 = vmatprep.subr.bf16.mxu0 0
    %1920 = vmatpush1.bf16.xpose.msra.mxu0 0
    %1921 = vmatprep.subr.bf16.mxu0 0
    %1922 = vmatpush1.bf16.xpose.msra.mxu0 0
    %1923 = vmatprep.subr.bf16.mxu0 0
    %1924 = vmatpush1.bf16.xpose.msra.mxu0 0
    %1925 = vmatprep.subr.bf16.mxu0 0
    %1926 = vmatpush1.bf16.xpose.msra.mxu0 %v1909
    %1927 = vmatprep.subr.bf16.mxu0 0
    %1928 = vmatpush2.bf16.xpose.msra.mxu0 0
    %1929 = vmatprep.subr.bf16.mxu0 0
    %1930 = vmatpush2.bf16.xpose.msra.mxu0 0
    %1931 = vmatprep.subr.bf16.mxu0 0
    %1932 = vmatpush2.bf16.xpose.msra.mxu0 0
    %1933 = vmatprep.subr.bf16.mxu0 0
    %1934 = vmatpush2.bf16.xpose.msra.mxu0 0
    %1935 = vmatprep.subr.bf16.mxu0 0
    %1936 = vmatpush2.bf16.xpose.msra.mxu0 0
    %1937 = vmatprep.subr.bf16.mxu0 0
    %1938 = vmatpush2.bf16.xpose.msra.mxu0 0
    %1939 = vmatprep.subr.bf16.mxu0 0
    %1940 = vmatpush2.bf16.xpose.msra.mxu0 0
    %1941 = vmatprep.subr.bf16.mxu0 0
    %1942 = vmatpush2.bf16.xpose.msra.mxu0 0
    %1943 = vmatprep.mubr.bf16.mxu0 0
    %1944 = vmatmul.mubr.bf16.gmra.mxu0 %v1906
    %v1945 = vpop.f32.mrf.mxu0
    %v1946 = vadd.f32 0.0, %v1945
    %v1947 = vpop.f32.mrf.mxu0
    %v1948 = vpop.f32.mrf.mxu0
    %v1949 = vpop.f32.mrf.mxu0
    %1950 = vdwg.mxu0
    %v1952 = vsel %vm362, %v1752, 0
    %v1955 = vsel %vm362, %v1780, 0
    %1957 = vmatprep.subr.bf16.mxu0 0
    %1958 = vmatpush1.bf16.xpose.msra.mxu0 0
    %1959 = vmatprep.subr.bf16.mxu0 0
    %1960 = vmatpush1.bf16.xpose.msra.mxu0 0
    %1961 = vmatprep.subr.bf16.mxu0 0
    %1962 = vmatpush1.bf16.xpose.msra.mxu0 0
    %1963 = vmatprep.subr.bf16.mxu0 0
    %1964 = vmatpush1.bf16.xpose.msra.mxu0 0
    %1965 = vmatprep.subr.bf16.mxu0 0
    %1966 = vmatpush1.bf16.xpose.msra.mxu0 0
    %1967 = vmatprep.subr.bf16.mxu0 0
    %1968 = vmatpush1.bf16.xpose.msra.mxu0 0
    %1969 = vmatprep.subr.bf16.mxu0 0
    %1970 = vmatpush1.bf16.xpose.msra.mxu0 0
    %1971 = vmatprep.subr.bf16.mxu0 0
    %1972 = vmatpush1.bf16.xpose.msra.mxu0 %v1955
    %1973 = vmatprep.subr.bf16.mxu0 0
    %1974 = vmatpush2.bf16.xpose.msra.mxu0 0
    %1975 = vmatprep.subr.bf16.mxu0 0
    %1976 = vmatpush2.bf16.xpose.msra.mxu0 0
    %1977 = vmatprep.subr.bf16.mxu0 0
    %1978 = vmatpush2.bf16.xpose.msra.mxu0 0
    %1979 = vmatprep.subr.bf16.mxu0 0
    %1980 = vmatpush2.bf16.xpose.msra.mxu0 0
    %1981 = vmatprep.subr.bf16.mxu0 0
    %1982 = vmatpush2.bf16.xpose.msra.mxu0 0
    %1983 = vmatprep.subr.bf16.mxu0 0
    %1984 = vmatpush2.bf16.xpose.msra.mxu0 0
    %1985 = vmatprep.subr.bf16.mxu0 0
    %1986 = vmatpush2.bf16.xpose.msra.mxu0 0
    %1987 = vmatprep.subr.bf16.mxu0 0
    %1988 = vmatpush2.bf16.xpose.msra.mxu0 0
    %1989 = vmatprep.mubr.bf16.mxu0 0
    %1990 = vmatmul.mubr.bf16.gmra.mxu0 %v1952
    %v1991 = vpop.f32.mrf.mxu0
    %v1992 = vadd.f32 0.0, %v1991
    %v1993 = vpop.f32.mrf.mxu0
    %v1994 = vpop.f32.mrf.mxu0
    %v1995 = vpop.f32.mrf.mxu0
    %1996 = vdwg.mxu0
    %v1998 = vsel %vm362, %v1753, 0
    %v2001 = vsel %vm362, %v1781, 0
    %2003 = vmatprep.subr.bf16.mxu0 0
    %2004 = vmatpush1.bf16.xpose.msra.mxu0 0
    %2005 = vmatprep.subr.bf16.mxu0 0
    %2006 = vmatpush1.bf16.xpose.msra.mxu0 0
    %2007 = vmatprep.subr.bf16.mxu0 0
    %2008 = vmatpush1.bf16.xpose.msra.mxu0 0
    %2009 = vmatprep.subr.bf16.mxu0 0
    %2010 = vmatpush1.bf16.xpose.msra.mxu0 0
    %2011 = vmatprep.subr.bf16.mxu0 0
    %2012 = vmatpush1.bf16.xpose.msra.mxu0 0
    %2013 = vmatprep.subr.bf16.mxu0 0
    %2014 = vmatpush1.bf16.xpose.msra.mxu0 0
    %2015 = vmatprep.subr.bf16.mxu0 0
    %2016 = vmatpush1.bf16.xpose.msra.mxu0 0
    %2017 = vmatprep.subr.bf16.mxu0 0
    %2018 = vmatpush1.bf16.xpose.msra.mxu0 %v2001
    %2019 = vmatprep.subr.bf16.mxu0 0
    %2020 = vmatpush2.bf16.xpose.msra.mxu0 0
    %2021 = vmatprep.subr.bf16.mxu0 0
    %2022 = vmatpush2.bf16.xpose.msra.mxu0 0
    %2023 = vmatprep.subr.bf16.mxu0 0
    %2024 = vmatpush2.bf16.xpose.msra.mxu0 0
    %2025 = vmatprep.subr.bf16.mxu0 0
    %2026 = vmatpush2.bf16.xpose.msra.mxu0 0
    %2027 = vmatprep.subr.bf16.mxu0 0
    %2028 = vmatpush2.bf16.xpose.msra.mxu0 0
    %2029 = vmatprep.subr.bf16.mxu0 0
    %2030 = vmatpush2.bf16.xpose.msra.mxu0 0
    %2031 = vmatprep.subr.bf16.mxu0 0
    %2032 = vmatpush2.bf16.xpose.msra.mxu0 0
    %2033 = vmatprep.subr.bf16.mxu0 0
    %2034 = vmatpush2.bf16.xpose.msra.mxu0 0
    %2035 = vmatprep.mubr.bf16.mxu0 0
    %2036 = vmatmul.mubr.bf16.gmra.mxu0 %v1998
    %v2037 = vpop.f32.mrf.mxu0
    %v2038 = vadd.f32 0.0, %v2037
    %v2039 = vpop.f32.mrf.mxu0
    %v2040 = vpop.f32.mrf.mxu0
    %v2041 = vpop.f32.mrf.mxu0
    %2042 = vdwg.mxu0
    %v2044 = vsel %vm362, %v1754, 0
    %v2047 = vsel %vm362, %v1782, 0
    %2049 = vmatprep.subr.bf16.mxu0 0
    %2050 = vmatpush1.bf16.xpose.msra.mxu0 0
    %2051 = vmatprep.subr.bf16.mxu0 0
    %2052 = vmatpush1.bf16.xpose.msra.mxu0 0
    %2053 = vmatprep.subr.bf16.mxu0 0
    %2054 = vmatpush1.bf16.xpose.msra.mxu0 0
    %2055 = vmatprep.subr.bf16.mxu0 0
    %2056 = vmatpush1.bf16.xpose.msra.mxu0 0
    %2057 = vmatprep.subr.bf16.mxu0 0
    %2058 = vmatpush1.bf16.xpose.msra.mxu0 0
    %2059 = vmatprep.subr.bf16.mxu0 0
    %2060 = vmatpush1.bf16.xpose.msra.mxu0 0
    %2061 = vmatprep.subr.bf16.mxu0 0
    %2062 = vmatpush1.bf16.xpose.msra.mxu0 0
    %2063 = vmatprep.subr.bf16.mxu0 0
    %2064 = vmatpush1.bf16.xpose.msra.mxu0 %v2047
    %2065 = vmatprep.subr.bf16.mxu0 0
    %2066 = vmatpush2.bf16.xpose.msra.mxu0 0
    %2067 = vmatprep.subr.bf16.mxu0 0
    %2068 = vmatpush2.bf16.xpose.msra.mxu0 0
    %2069 = vmatprep.subr.bf16.mxu0 0
    %2070 = vmatpush2.bf16.xpose.msra.mxu0 0
    %2071 = vmatprep.subr.bf16.mxu0 0
    %2072 = vmatpush2.bf16.xpose.msra.mxu0 0
    %2073 = vmatprep.subr.bf16.mxu0 0
    %2074 = vmatpush2.bf16.xpose.msra.mxu0 0
    %2075 = vmatprep.subr.bf16.mxu0 0
    %2076 = vmatpush2.bf16.xpose.msra.mxu0 0
    %2077 = vmatprep.subr.bf16.mxu0 0
    %2078 = vmatpush2.bf16.xpose.msra.mxu0 0
    %2079 = vmatprep.subr.bf16.mxu0 0
    %2080 = vmatpush2.bf16.xpose.msra.mxu0 0
    %2081 = vmatprep.mubr.bf16.mxu0 0
    %2082 = vmatmul.mubr.bf16.gmra.mxu0 %v2044
    %v2083 = vpop.f32.mrf.mxu0
    %v2084 = vadd.f32 0.0, %v2083
    %v2085 = vpop.f32.mrf.mxu0
    %v2086 = vpop.f32.mrf.mxu0
    %v2087 = vpop.f32.mrf.mxu0
    %2088 = vdwg.mxu0
    %v2090 = vsel %vm362, %v1755, 0
    %v2093 = vsel %vm362, %v1783, 0
    %2095 = vmatprep.subr.bf16.mxu0 0
    %2096 = vmatpush1.bf16.xpose.msra.mxu0 0
    %2097 = vmatprep.subr.bf16.mxu0 0
    %2098 = vmatpush1.bf16.xpose.msra.mxu0 0
    %2099 = vmatprep.subr.bf16.mxu0 0
    %2100 = vmatpush1.bf16.xpose.msra.mxu0 0
    %2101 = vmatprep.subr.bf16.mxu0 0
    %2102 = vmatpush1.bf16.xpose.msra.mxu0 0
    %2103 = vmatprep.subr.bf16.mxu0 0
    %2104 = vmatpush1.bf16.xpose.msra.mxu0 0
    %2105 = vmatprep.subr.bf16.mxu0 0
    %2106 = vmatpush1.bf16.xpose.msra.mxu0 0
    %2107 = vmatprep.subr.bf16.mxu0 0
    %2108 = vmatpush1.bf16.xpose.msra.mxu0 0
    %2109 = vmatprep.subr.bf16.mxu0 0
    %2110 = vmatpush1.bf16.xpose.msra.mxu0 %v2093
    %2111 = vmatprep.subr.bf16.mxu0 0
    %2112 = vmatpush2.bf16.xpose.msra.mxu0 0
    %2113 = vmatprep.subr.bf16.mxu0 0
    %2114 = vmatpush2.bf16.xpose.msra.mxu0 0
    %2115 = vmatprep.subr.bf16.mxu0 0
    %2116 = vmatpush2.bf16.xpose.msra.mxu0 0
    %2117 = vmatprep.subr.bf16.mxu0 0
    %2118 = vmatpush2.bf16.xpose.msra.mxu0 0
    %2119 = vmatprep.subr.bf16.mxu0 0
    %2120 = vmatpush2.bf16.xpose.msra.mxu0 0
    %2121 = vmatprep.subr.bf16.mxu0 0
    %2122 = vmatpush2.bf16.xpose.msra.mxu0 0
    %2123 = vmatprep.subr.bf16.mxu0 0
    %2124 = vmatpush2.bf16.xpose.msra.mxu0 0
    %2125 = vmatprep.subr.bf16.mxu0 0
    %2126 = vmatpush2.bf16.xpose.msra.mxu0 0
    %2127 = vmatprep.mubr.bf16.mxu0 0
    %2128 = vmatmul.mubr.bf16.gmra.mxu0 %v2090
    %v2129 = vpop.f32.mrf.mxu0
    %v2130 = vadd.f32 0.0, %v2129
    %v2131 = vpop.f32.mrf.mxu0
    %v2132 = vpop.f32.mrf.mxu0
    %v2133 = vpop.f32.mrf.mxu0
    %2134 = vdwg.mxu0
    %v2136 = vsel %vm362, %v1756, 0
    %v2139 = vsel %vm362, %v1784, 0
    %2141 = vmatprep.subr.bf16.mxu0 0
    %2142 = vmatpush1.bf16.xpose.msra.mxu0 0
    %2143 = vmatprep.subr.bf16.mxu0 0
    %2144 = vmatpush1.bf16.xpose.msra.mxu0 0
    %2145 = vmatprep.subr.bf16.mxu0 0
    %2146 = vmatpush1.bf16.xpose.msra.mxu0 0
    %2147 = vmatprep.subr.bf16.mxu0 0
    %2148 = vmatpush1.bf16.xpose.msra.mxu0 0
    %2149 = vmatprep.subr.bf16.mxu0 0
    %2150 = vmatpush1.bf16.xpose.msra.mxu0 0
    %2151 = vmatprep.subr.bf16.mxu0 0
    %2152 = vmatpush1.bf16.xpose.msra.mxu0 0
    %2153 = vmatprep.subr.bf16.mxu0 0
    %2154 = vmatpush1.bf16.xpose.msra.mxu0 0
    %2155 = vmatprep.subr.bf16.mxu0 0
    %2156 = vmatpush1.bf16.xpose.msra.mxu0 %v2139
    %2157 = vmatprep.subr.bf16.mxu0 0
    %2158 = vmatpush2.bf16.xpose.msra.mxu0 0
    %2159 = vmatprep.subr.bf16.mxu0 0
    %2160 = vmatpush2.bf16.xpose.msra.mxu0 0
    %2161 = vmatprep.subr.bf16.mxu0 0
    %2162 = vmatpush2.bf16.xpose.msra.mxu0 0
    %2163 = vmatprep.subr.bf16.mxu0 0
    %2164 = vmatpush2.bf16.xpose.msra.mxu0 0
    %2165 = vmatprep.subr.bf16.mxu0 0
    %2166 = vmatpush2.bf16.xpose.msra.mxu0 0
    %2167 = vmatprep.subr.bf16.mxu0 0
    %2168 = vmatpush2.bf16.xpose.msra.mxu0 0
    %2169 = vmatprep.subr.bf16.mxu0 0
    %2170 = vmatpush2.bf16.xpose.msra.mxu0 0
    %2171 = vmatprep.subr.bf16.mxu0 0
    %2172 = vmatpush2.bf16.xpose.msra.mxu0 0
    %2173 = vmatprep.mubr.bf16.mxu0 0
    %2174 = vmatmul.mubr.bf16.gmra.mxu0 %v2136
    %v2175 = vpop.f32.mrf.mxu0
    %v2176 = vadd.f32 0.0, %v2175
    %v2177 = vpop.f32.mrf.mxu0
    %v2178 = vpop.f32.mrf.mxu0
    %v2179 = vpop.f32.mrf.mxu0
    %2180 = vdwg.mxu0
    %v2181 = vmul.f32 %v1854, 0.35355338
    %v2182 = vmul.f32 %v1900, 0.35355338
    %v2183 = vmul.f32 %v1946, 0.35355338
    %v2184 = vmul.f32 %v1992, 0.35355338
    %v2185 = vmul.f32 %v2038, 0.35355338
    %v2186 = vmul.f32 %v2084, 0.35355338
    %v2187 = vmul.f32 %v2130, 0.35355338
    %v2188 = vmul.f32 %v2176, 0.35355338
    %v2189 = vsel %vm362, %v2181, -inf
    %2190 = vmax.xlane.f32.xlu0 %v2189
    %v2191 = vpop.xlane.xlu0 %2190
    %v2192 = vsel %vm362, %v2182, -inf
    %2193 = vmax.xlane.f32.xlu0 %v2192
    %v2194 = vpop.xlane.xlu0 %2193
    %v2195 = vsel %vm362, %v2183, -inf
    %2196 = vmax.xlane.f32.xlu0 %v2195
    %v2197 = vpop.xlane.xlu0 %2196
    %v2198 = vsel %vm362, %v2184, -inf
    %2199 = vmax.xlane.f32.xlu0 %v2198
    %v2200 = vpop.xlane.xlu0 %2199
    %v2201 = vsel %vm362, %v2185, -inf
    %2202 = vmax.xlane.f32.xlu0 %v2201
    %v2203 = vpop.xlane.xlu0 %2202
    %v2204 = vsel %vm362, %v2186, -inf
    %2205 = vmax.xlane.f32.xlu0 %v2204
    %v2206 = vpop.xlane.xlu0 %2205
    %v2207 = vsel %vm362, %v2187, -inf
    %2208 = vmax.xlane.f32.xlu0 %v2207
    %v2209 = vpop.xlane.xlu0 %2208
    %v2210 = vsel %vm362, %v2188, -inf
    %2211 = vmax.xlane.f32.xlu0 %v2210
    %v2212 = vpop.xlane.xlu0 %2211
    %v2213 = vsub.f32 %v2181, %v2191
    %v2214 = vsub.f32 %v2182, %v2194
    %v2215 = vsub.f32 %v2183, %v2197
    %v2216 = vsub.f32 %v2184, %v2200
    %v2217 = vsub.f32 %v2185, %v2203
    %v2218 = vsub.f32 %v2186, %v2206
    %v2219 = vsub.f32 %v2187, %v2209
    %v2220 = vsub.f32 %v2188, %v2212
    %v2221 = vmul.f32 %v2213, 1.442695
    %v2222 = vpow.pop %v2221
    %v2223 = vmul.f32 %v2214, 1.442695
    %v2224 = vpow.pop %v2223
    %v2225 = vmul.f32 %v2215, 1.442695
    %v2226 = vpow.pop %v2225
    %v2227 = vmul.f32 %v2216, 1.442695
    %v2228 = vpow.pop %v2227
    %v2229 = vmul.f32 %v2217, 1.442695
    %v2230 = vpow.pop %v2229
    %v2231 = vmul.f32 %v2218, 1.442695
    %v2232 = vpow.pop %v2231
    %v2233 = vmul.f32 %v2219, 1.442695
    %v2234 = vpow.pop %v2233
    %v2235 = vmul.f32 %v2220, 1.442695
    %v2236 = vpow.pop %v2235
    %v2237 = vsel %vm362, %v2222, 0.0
    %2238 = vadd.xlane.f32.xlu0 %v2237
    %v2239 = vpop.xlane.xlu0 %2238
    %v2240 = vsel %vm362, %v2224, 0.0
    %2241 = vadd.xlane.f32.xlu0 %v2240
    %v2242 = vpop.xlane.xlu0 %2241
    %v2243 = vsel %vm362, %v2226, 0.0
    %2244 = vadd.xlane.f32.xlu0 %v2243
    %v2245 = vpop.xlane.xlu0 %2244
    %v2246 = vsel %vm362, %v2228, 0.0
    %2247 = vadd.xlane.f32.xlu0 %v2246
    %v2248 = vpop.xlane.xlu0 %2247
    %v2249 = vsel %vm362, %v2230, 0.0
    %2250 = vadd.xlane.f32.xlu0 %v2249
    %v2251 = vpop.xlane.xlu0 %2250
    %v2252 = vsel %vm362, %v2232, 0.0
    %2253 = vadd.xlane.f32.xlu0 %v2252
    %v2254 = vpop.xlane.xlu0 %2253
    %v2255 = vsel %vm362, %v2234, 0.0
    %2256 = vadd.xlane.f32.xlu0 %v2255
    %v2257 = vpop.xlane.xlu0 %2256
    %v2258 = vsel %vm362, %v2236, 0.0
    %2259 = vadd.xlane.f32.xlu0 %v2258
    %v2260 = vpop.xlane.xlu0 %2259
    %v2261 = vrcp.pop %v2239
    %v2262 = vrcp.pop %v2242
    %v2263 = vrcp.pop %v2245
    %v2264 = vrcp.pop %v2248
    %v2265 = vrcp.pop %v2251
    %v2266 = vrcp.pop %v2254
    %v2267 = vrcp.pop %v2257
    %v2268 = vrcp.pop %v2260
    %v2269 = vmul.f32 %v2222, %v2261
    %v2270 = vmul.f32 %v2224, %v2262
    %v2271 = vmul.f32 %v2226, %v2263
    %v2272 = vmul.f32 %v2228, %v2264
    %v2273 = vmul.f32 %v2230, %v2265
    %v2274 = vmul.f32 %v2232, %v2266
    %v2275 = vmul.f32 %v2234, %v2267
    %v2276 = vmul.f32 %v2236, %v2268
    %v2277 = vpack.c.bf16 %v2269, %v2269
    %v2278 = vpack.c.bf16 %v2270, %v2270
    %v2279 = vpack.c.bf16 %v2271, %v2271
    %v2280 = vpack.c.bf16 %v2272, %v2272
    %v2281 = vpack.c.bf16 %v2273, %v2273
    %v2282 = vpack.c.bf16 %v2274, %v2274
    %v2283 = vpack.c.bf16 %v2275, %v2275
    %v2284 = vpack.c.bf16 %v2276, %v2276
    %v2286 = vsel %vm362, %v2277, 0
    %v2289 = vsel %vm838, %v1805, 0
    %2291 = vmatprep.subr.bf16.mxu0 0
    %2292 = vmatpush1.bf16.msra.mxu0 0
    %2293 = vmatprep.subr.bf16.mxu0 0
    %2294 = vmatpush1.bf16.msra.mxu0 0
    %2295 = vmatprep.subr.bf16.mxu0 0
    %2296 = vmatpush1.bf16.msra.mxu0 0
    %2297 = vmatprep.subr.bf16.mxu0 0
    %2298 = vmatpush1.bf16.msra.mxu0 0
    %2299 = vmatprep.subr.bf16.mxu0 0
    %2300 = vmatpush1.bf16.msra.mxu0 0
    %2301 = vmatprep.subr.bf16.mxu0 0
    %2302 = vmatpush1.bf16.msra.mxu0 0
    %2303 = vmatprep.subr.bf16.mxu0 0
    %2304 = vmatpush1.bf16.msra.mxu0 0
    %2305 = vmatprep.subr.bf16.mxu0 0
    %2306 = vmatpush1.bf16.msra.mxu0 %v2289
    %2307 = vmatprep.subr.bf16.mxu0 0
    %2308 = vmatpush2.bf16.msra.mxu0 0
    %2309 = vmatprep.subr.bf16.mxu0 0
    %2310 = vmatpush2.bf16.msra.mxu0 0
    %2311 = vmatprep.subr.bf16.mxu0 0
    %2312 = vmatpush2.bf16.msra.mxu0 0
    %2313 = vmatprep.subr.bf16.mxu0 0
    %2314 = vmatpush2.bf16.msra.mxu0 0
    %2315 = vmatprep.subr.bf16.mxu0 0
    %2316 = vmatpush2.bf16.msra.mxu0 0
    %2317 = vmatprep.subr.bf16.mxu0 0
    %2318 = vmatpush2.bf16.msra.mxu0 0
    %2319 = vmatprep.subr.bf16.mxu0 0
    %2320 = vmatpush2.bf16.msra.mxu0 0
    %2321 = vmatprep.subr.bf16.mxu0 0
    %2322 = vmatpush2.bf16.msra.mxu0 0
    %2323 = vmatprep.mubr.bf16.mxu0 0
    %2324 = vmatmul.mubr.bf16.gmra.mxu0 %v2286
    %v2325 = vpop.f32.mrf.mxu0
    %v2326 = vadd.f32 0.0, %v2325
    %v2327 = vpop.f32.mrf.mxu0
    %v2328 = vpop.f32.mrf.mxu0
    %v2329 = vpop.f32.mrf.mxu0
    %2330 = vdwg.mxu0
    %v2332 = vsel %vm362, %v2278, 0
    %v2335 = vsel %vm838, %v1806, 0
    %2337 = vmatprep.subr.bf16.mxu0 0
    %2338 = vmatpush1.bf16.msra.mxu0 0
    %2339 = vmatprep.subr.bf16.mxu0 0
    %2340 = vmatpush1.bf16.msra.mxu0 0
    %2341 = vmatprep.subr.bf16.mxu0 0
    %2342 = vmatpush1.bf16.msra.mxu0 0
    %2343 = vmatprep.subr.bf16.mxu0 0
    %2344 = vmatpush1.bf16.msra.mxu0 0
    %2345 = vmatprep.subr.bf16.mxu0 0
    %2346 = vmatpush1.bf16.msra.mxu0 0
    %2347 = vmatprep.subr.bf16.mxu0 0
    %2348 = vmatpush1.bf16.msra.mxu0 0
    %2349 = vmatprep.subr.bf16.mxu0 0
    %2350 = vmatpush1.bf16.msra.mxu0 0
    %2351 = vmatprep.subr.bf16.mxu0 0
    %2352 = vmatpush1.bf16.msra.mxu0 %v2335
    %2353 = vmatprep.subr.bf16.mxu0 0
    %2354 = vmatpush2.bf16.msra.mxu0 0
    %2355 = vmatprep.subr.bf16.mxu0 0
    %2356 = vmatpush2.bf16.msra.mxu0 0
    %2357 = vmatprep.subr.bf16.mxu0 0
    %2358 = vmatpush2.bf16.msra.mxu0 0
    %2359 = vmatprep.subr.bf16.mxu0 0
    %2360 = vmatpush2.bf16.msra.mxu0 0
    %2361 = vmatprep.subr.bf16.mxu0 0
    %2362 = vmatpush2.bf16.msra.mxu0 0
    %2363 = vmatprep.subr.bf16.mxu0 0
    %2364 = vmatpush2.bf16.msra.mxu0 0
    %2365 = vmatprep.subr.bf16.mxu0 0
    %2366 = vmatpush2.bf16.msra.mxu0 0
    %2367 = vmatprep.subr.bf16.mxu0 0
    %2368 = vmatpush2.bf16.msra.mxu0 0
    %2369 = vmatprep.mubr.bf16.mxu0 0
    %2370 = vmatmul.mubr.bf16.gmra.mxu0 %v2332
    %v2371 = vpop.f32.mrf.mxu0
    %v2372 = vadd.f32 0.0, %v2371
    %v2373 = vpop.f32.mrf.mxu0
    %v2374 = vpop.f32.mrf.mxu0
    %v2375 = vpop.f32.mrf.mxu0
    %2376 = vdwg.mxu0
    %v2378 = vsel %vm362, %v2279, 0
    %v2381 = vsel %vm838, %v1807, 0
    %2383 = vmatprep.subr.bf16.mxu0 0
    %2384 = vmatpush1.bf16.msra.mxu0 0
    %2385 = vmatprep.subr.bf16.mxu0 0
    %2386 = vmatpush1.bf16.msra.mxu0 0
    %2387 = vmatprep.subr.bf16.mxu0 0
    %2388 = vmatpush1.bf16.msra.mxu0 0
    %2389 = vmatprep.subr.bf16.mxu0 0
    %2390 = vmatpush1.bf16.msra.mxu0 0
    %2391 = vmatprep.subr.bf16.mxu0 0
    %2392 = vmatpush1.bf16.msra.mxu0 0
    %2393 = vmatprep.subr.bf16.mxu0 0
    %2394 = vmatpush1.bf16.msra.mxu0 0
    %2395 = vmatprep.subr.bf16.mxu0 0
    %2396 = vmatpush1.bf16.msra.mxu0 0
    %2397 = vmatprep.subr.bf16.mxu0 0
    %2398 = vmatpush1.bf16.msra.mxu0 %v2381
    %2399 = vmatprep.subr.bf16.mxu0 0
    %2400 = vmatpush2.bf16.msra.mxu0 0
    %2401 = vmatprep.subr.bf16.mxu0 0
    %2402 = vmatpush2.bf16.msra.mxu0 0
    %2403 = vmatprep.subr.bf16.mxu0 0
    %2404 = vmatpush2.bf16.msra.mxu0 0
    %2405 = vmatprep.subr.bf16.mxu0 0
    %2406 = vmatpush2.bf16.msra.mxu0 0
    %2407 = vmatprep.subr.bf16.mxu0 0
    %2408 = vmatpush2.bf16.msra.mxu0 0
    %2409 = vmatprep.subr.bf16.mxu0 0
    %2410 = vmatpush2.bf16.msra.mxu0 0
    %2411 = vmatprep.subr.bf16.mxu0 0
    %2412 = vmatpush2.bf16.msra.mxu0 0
    %2413 = vmatprep.subr.bf16.mxu0 0
    %2414 = vmatpush2.bf16.msra.mxu0 0
    %2415 = vmatprep.mubr.bf16.mxu0 0
    %2416 = vmatmul.mubr.bf16.gmra.mxu0 %v2378
    %v2417 = vpop.f32.mrf.mxu0
    %v2418 = vadd.f32 0.0, %v2417
    %v2419 = vpop.f32.mrf.mxu0
    %v2420 = vpop.f32.mrf.mxu0
    %v2421 = vpop.f32.mrf.mxu0
    %2422 = vdwg.mxu0
    %v2424 = vsel %vm362, %v2280, 0
    %v2427 = vsel %vm838, %v1808, 0
    %2429 = vmatprep.subr.bf16.mxu0 0
    %2430 = vmatpush1.bf16.msra.mxu0 0
    %2431 = vmatprep.subr.bf16.mxu0 0
    %2432 = vmatpush1.bf16.msra.mxu0 0
    %2433 = vmatprep.subr.bf16.mxu0 0
    %2434 = vmatpush1.bf16.msra.mxu0 0
    %2435 = vmatprep.subr.bf16.mxu0 0
    %2436 = vmatpush1.bf16.msra.mxu0 0
    %2437 = vmatprep.subr.bf16.mxu0 0
    %2438 = vmatpush1.bf16.msra.mxu0 0
    %2439 = vmatprep.subr.bf16.mxu0 0
    %2440 = vmatpush1.bf16.msra.mxu0 0
    %2441 = vmatprep.subr.bf16.mxu0 0
    %2442 = vmatpush1.bf16.msra.mxu0 0
    %2443 = vmatprep.subr.bf16.mxu0 0
    %2444 = vmatpush1.bf16.msra.mxu0 %v2427
    %2445 = vmatprep.subr.bf16.mxu0 0
    %2446 = vmatpush2.bf16.msra.mxu0 0
    %2447 = vmatprep.subr.bf16.mxu0 0
    %2448 = vmatpush2.bf16.msra.mxu0 0
    %2449 = vmatprep.subr.bf16.mxu0 0
    %2450 = vmatpush2.bf16.msra.mxu0 0
    %2451 = vmatprep.subr.bf16.mxu0 0
    %2452 = vmatpush2.bf16.msra.mxu0 0
    %2453 = vmatprep.subr.bf16.mxu0 0
    %2454 = vmatpush2.bf16.msra.mxu0 0
    %2455 = vmatprep.subr.bf16.mxu0 0
    %2456 = vmatpush2.bf16.msra.mxu0 0
    %2457 = vmatprep.subr.bf16.mxu0 0
    %2458 = vmatpush2.bf16.msra.mxu0 0
    %2459 = vmatprep.subr.bf16.mxu0 0
    %2460 = vmatpush2.bf16.msra.mxu0 0
    %2461 = vmatprep.mubr.bf16.mxu0 0
    %2462 = vmatmul.mubr.bf16.gmra.mxu0 %v2424
    %v2463 = vpop.f32.mrf.mxu0
    %v2464 = vadd.f32 0.0, %v2463
    %v2465 = vpop.f32.mrf.mxu0
    %v2466 = vpop.f32.mrf.mxu0
    %v2467 = vpop.f32.mrf.mxu0
    %2468 = vdwg.mxu0
    %v2470 = vsel %vm362, %v2281, 0
    %v2473 = vsel %vm838, %v1809, 0
    %2475 = vmatprep.subr.bf16.mxu0 0
    %2476 = vmatpush1.bf16.msra.mxu0 0
    %2477 = vmatprep.subr.bf16.mxu0 0
    %2478 = vmatpush1.bf16.msra.mxu0 0
    %2479 = vmatprep.subr.bf16.mxu0 0
    %2480 = vmatpush1.bf16.msra.mxu0 0
    %2481 = vmatprep.subr.bf16.mxu0 0
    %2482 = vmatpush1.bf16.msra.mxu0 0
    %2483 = vmatprep.subr.bf16.mxu0 0
    %2484 = vmatpush1.bf16.msra.mxu0 0
    %2485 = vmatprep.subr.bf16.mxu0 0
    %2486 = vmatpush1.bf16.msra.mxu0 0
    %2487 = vmatprep.subr.bf16.mxu0 0
    %2488 = vmatpush1.bf16.msra.mxu0 0
    %2489 = vmatprep.subr.bf16.mxu0 0
    %2490 = vmatpush1.bf16.msra.mxu0 %v2473
    %2491 = vmatprep.subr.bf16.mxu0 0
    %2492 = vmatpush2.bf16.msra.mxu0 0
    %2493 = vmatprep.subr.bf16.mxu0 0
    %2494 = vmatpush2.bf16.msra.mxu0 0
    %2495 = vmatprep.subr.bf16.mxu0 0
    %2496 = vmatpush2.bf16.msra.mxu0 0
    %2497 = vmatprep.subr.bf16.mxu0 0
    %2498 = vmatpush2.bf16.msra.mxu0 0
    %2499 = vmatprep.subr.bf16.mxu0 0
    %2500 = vmatpush2.bf16.msra.mxu0 0
    %2501 = vmatprep.subr.bf16.mxu0 0
    %2502 = vmatpush2.bf16.msra.mxu0 0
    %2503 = vmatprep.subr.bf16.mxu0 0
    %2504 = vmatpush2.bf16.msra.mxu0 0
    %2505 = vmatprep.subr.bf16.mxu0 0
    %2506 = vmatpush2.bf16.msra.mxu0 0
    %2507 = vmatprep.mubr.bf16.mxu0 0
    %2508 = vmatmul.mubr.bf16.gmra.mxu0 %v2470
    %v2509 = vpop.f32.mrf.mxu0
    %v2510 = vadd.f32 0.0, %v2509
    %v2511 = vpop.f32.mrf.mxu0
    %v2512 = vpop.f32.mrf.mxu0
    %v2513 = vpop.f32.mrf.mxu0
    %2514 = vdwg.mxu0
    %v2516 = vsel %vm362, %v2282, 0
    %v2519 = vsel %vm838, %v1810, 0
    %2521 = vmatprep.subr.bf16.mxu0 0
    %2522 = vmatpush1.bf16.msra.mxu0 0
    %2523 = vmatprep.subr.bf16.mxu0 0
    %2524 = vmatpush1.bf16.msra.mxu0 0
    %2525 = vmatprep.subr.bf16.mxu0 0
    %2526 = vmatpush1.bf16.msra.mxu0 0
    %2527 = vmatprep.subr.bf16.mxu0 0
    %2528 = vmatpush1.bf16.msra.mxu0 0
    %2529 = vmatprep.subr.bf16.mxu0 0
    %2530 = vmatpush1.bf16.msra.mxu0 0
    %2531 = vmatprep.subr.bf16.mxu0 0
    %2532 = vmatpush1.bf16.msra.mxu0 0
    %2533 = vmatprep.subr.bf16.mxu0 0
    %2534 = vmatpush1.bf16.msra.mxu0 0
    %2535 = vmatprep.subr.bf16.mxu0 0
    %2536 = vmatpush1.bf16.msra.mxu0 %v2519
    %2537 = vmatprep.subr.bf16.mxu0 0
    %2538 = vmatpush2.bf16.msra.mxu0 0
    %2539 = vmatprep.subr.bf16.mxu0 0
    %2540 = vmatpush2.bf16.msra.mxu0 0
    %2541 = vmatprep.subr.bf16.mxu0 0
    %2542 = vmatpush2.bf16.msra.mxu0 0
    %2543 = vmatprep.subr.bf16.mxu0 0
    %2544 = vmatpush2.bf16.msra.mxu0 0
    %2545 = vmatprep.subr.bf16.mxu0 0
    %2546 = vmatpush2.bf16.msra.mxu0 0
    %2547 = vmatprep.subr.bf16.mxu0 0
    %2548 = vmatpush2.bf16.msra.mxu0 0
    %2549 = vmatprep.subr.bf16.mxu0 0
    %2550 = vmatpush2.bf16.msra.mxu0 0
    %2551 = vmatprep.subr.bf16.mxu0 0
    %2552 = vmatpush2.bf16.msra.mxu0 0
    %2553 = vmatprep.mubr.bf16.mxu0 0
    %2554 = vmatmul.mubr.bf16.gmra.mxu0 %v2516
    %v2555 = vpop.f32.mrf.mxu0
    %v2556 = vadd.f32 0.0, %v2555
    %v2557 = vpop.f32.mrf.mxu0
    %v2558 = vpop.f32.mrf.mxu0
    %v2559 = vpop.f32.mrf.mxu0
    %2560 = vdwg.mxu0
    %v2562 = vsel %vm362, %v2283, 0
    %v2565 = vsel %vm838, %v1811, 0
    %2567 = vmatprep.subr.bf16.mxu0 0
    %2568 = vmatpush1.bf16.msra.mxu0 0
    %2569 = vmatprep.subr.bf16.mxu0 0
    %2570 = vmatpush1.bf16.msra.mxu0 0
    %2571 = vmatprep.subr.bf16.mxu0 0
    %2572 = vmatpush1.bf16.msra.mxu0 0
    %2573 = vmatprep.subr.bf16.mxu0 0
    %2574 = vmatpush1.bf16.msra.mxu0 0
    %2575 = vmatprep.subr.bf16.mxu0 0
    %2576 = vmatpush1.bf16.msra.mxu0 0
    %2577 = vmatprep.subr.bf16.mxu0 0
    %2578 = vmatpush1.bf16.msra.mxu0 0
    %2579 = vmatprep.subr.bf16.mxu0 0
    %2580 = vmatpush1.bf16.msra.mxu0 0
    %2581 = vmatprep.subr.bf16.mxu0 0
    %2582 = vmatpush1.bf16.msra.mxu0 %v2565
    %2583 = vmatprep.subr.bf16.mxu0 0
    %2584 = vmatpush2.bf16.msra.mxu0 0
    %2585 = vmatprep.subr.bf16.mxu0 0
    %2586 = vmatpush2.bf16.msra.mxu0 0
    %2587 = vmatprep.subr.bf16.mxu0 0
    %2588 = vmatpush2.bf16.msra.mxu0 0
    %2589 = vmatprep.subr.bf16.mxu0 0
    %2590 = vmatpush2.bf16.msra.mxu0 0
    %2591 = vmatprep.subr.bf16.mxu0 0
    %2592 = vmatpush2.bf16.msra.mxu0 0
    %2593 = vmatprep.subr.bf16.mxu0 0
    %2594 = vmatpush2.bf16.msra.mxu0 0
    %2595 = vmatprep.subr.bf16.mxu0 0
    %2596 = vmatpush2.bf16.msra.mxu0 0
    %2597 = vmatprep.subr.bf16.mxu0 0
    %2598 = vmatpush2.bf16.msra.mxu0 0
    %2599 = vmatprep.mubr.bf16.mxu0 0
    %2600 = vmatmul.mubr.bf16.gmra.mxu0 %v2562
    %v2601 = vpop.f32.mrf.mxu0
    %v2602 = vadd.f32 0.0, %v2601
    %v2603 = vpop.f32.mrf.mxu0
    %v2604 = vpop.f32.mrf.mxu0
    %v2605 = vpop.f32.mrf.mxu0
    %2606 = vdwg.mxu0
    %v2608 = vsel %vm362, %v2284, 0
    %v2611 = vsel %vm838, %v1812, 0
    %2613 = vmatprep.subr.bf16.mxu0 0
    %2614 = vmatpush1.bf16.msra.mxu0 0
    %2615 = vmatprep.subr.bf16.mxu0 0
    %2616 = vmatpush1.bf16.msra.mxu0 0
    %2617 = vmatprep.subr.bf16.mxu0 0
    %2618 = vmatpush1.bf16.msra.mxu0 0
    %2619 = vmatprep.subr.bf16.mxu0 0
    %2620 = vmatpush1.bf16.msra.mxu0 0
    %2621 = vmatprep.subr.bf16.mxu0 0
    %2622 = vmatpush1.bf16.msra.mxu0 0
    %2623 = vmatprep.subr.bf16.mxu0 0
    %2624 = vmatpush1.bf16.msra.mxu0 0
    %2625 = vmatprep.subr.bf16.mxu0 0
    %2626 = vmatpush1.bf16.msra.mxu0 0
    %2627 = vmatprep.subr.bf16.mxu0 0
    %2628 = vmatpush1.bf16.msra.mxu0 %v2611
    %2629 = vmatprep.subr.bf16.mxu0 0
    %2630 = vmatpush2.bf16.msra.mxu0 0
    %2631 = vmatprep.subr.bf16.mxu0 0
    %2632 = vmatpush2.bf16.msra.mxu0 0
    %2633 = vmatprep.subr.bf16.mxu0 0
    %2634 = vmatpush2.bf16.msra.mxu0 0
    %2635 = vmatprep.subr.bf16.mxu0 0
    %2636 = vmatpush2.bf16.msra.mxu0 0
    %2637 = vmatprep.subr.bf16.mxu0 0
    %2638 = vmatpush2.bf16.msra.mxu0 0
    %2639 = vmatprep.subr.bf16.mxu0 0
    %2640 = vmatpush2.bf16.msra.mxu0 0
    %2641 = vmatprep.subr.bf16.mxu0 0
    %2642 = vmatpush2.bf16.msra.mxu0 0
    %2643 = vmatprep.subr.bf16.mxu0 0
    %2644 = vmatpush2.bf16.msra.mxu0 0
    %2645 = vmatprep.mubr.bf16.mxu0 0
    %2646 = vmatmul.mubr.bf16.gmra.mxu0 %v2608
    %v2647 = vpop.f32.mrf.mxu0
    %v2648 = vadd.f32 0.0, %v2647
    %v2649 = vpop.f32.mrf.mxu0
    %v2650 = vpop.f32.mrf.mxu0
    %v2651 = vpop.f32.mrf.mxu0
    %2652 = vdwg.mxu0
    %2655 = vrot.lane.b32.xlu0 %v2418, 8
    %v2656 = vpop.permute.xlu0 %2655
    %2657 = vrot.lane.b32.xlu0 %v2464, 8
    %v2658 = vpop.permute.xlu0 %2657
    %2663 = vrot.lane.b32.xlu0 %v2510, 16
    %v2664 = vpop.permute.xlu0 %2663
    %2665 = vrot.lane.b32.xlu0 %v2556, 16
    %v2666 = vpop.permute.xlu0 %2665
    %2671 = vrot.lane.b32.xlu0 %v2602, 24
    %v2672 = vpop.permute.xlu0 %2671
    %2673 = vrot.lane.b32.xlu0 %v2648, 24
    %v2674 = vpop.permute.xlu0 %2673
    %v2677 = vsel %vm362, %v2326, %v2656
    %v2678 = vsel %vm362, %v2372, %v2658
    %v2679 = vsel %vm1230, %v2677, %v2664
    %v2680 = vsel %vm1230, %v2678, %v2666
    %v2681 = vsel %vm1233, %v2679, %v2672
    %v2682 = vsel %vm1233, %v2680, %v2674
    %v2683 = vpack.c.bf16 %v2682, %v2681
    %s2684 = scalar_lea.vmem %s6, 16
    %v2685 = vld [vmem:[%s2684] sm:$0xf]
    %v2686 = vld [vmem:[%s2684 + $0x4] sm:$0xf]
    %v2687 = vld [vmem:[%s2684 + $0x8] sm:$0xf]
    %v2688 = vld [vmem:[%s2684 + $0xc] sm:$0xf]
    %s2689 = scalar_lea.vmem %s7, 1
    %v2690 = vld [vmem:[%s2689] sm:$0x1]
    %v2692 = vlaneseq
    %v2693 = vshrl.u32 %v2692, 7
    %v2694 = vsub.s32 0, %v2693
    %v2695 = vrot.slane %v2690, %v2694
    %v2701 = vunpack.c.l.b16 %v2685
    %v2702 = vunpack.c.l.b16 %v2686
    %v2703 = vunpack.c.l.b16 %v2687
    %v2704 = vunpack.c.l.b16 %v2688
    %v2705 = vpack.c.b16 %v2702, %v2701
    %v2706 = vpack.c.b16 %v2704, %v2703
    %v2710 = vsel %vm59, %v2683, 0
    %2712 = vmatprep.subr.bf16.mxu0 0
    %2713 = vmatpush1.bf16.msra.mxu0 0
    %2714 = vmatprep.subr.bf16.mxu0 0
    %2715 = vmatpush1.bf16.msra.mxu0 0
    %2716 = vmatprep.subr.bf16.mxu0 0
    %2717 = vmatpush1.bf16.msra.mxu0 0
    %2718 = vmatprep.subr.bf16.mxu0 0
    %2719 = vmatpush1.bf16.msra.mxu0 0
    %2720 = vmatprep.subr.bf16.mxu0 0
    %2721 = vmatpush1.bf16.msra.mxu0 0
    %2722 = vmatprep.subr.bf16.mxu0 0
    %2723 = vmatpush1.bf16.msra.mxu0 0
    %2724 = vmatprep.subr.bf16.mxu0 0
    %2725 = vmatpush1.bf16.msra.mxu0 %v2706
    %2726 = vmatprep.subr.bf16.mxu0 0
    %2727 = vmatpush1.bf16.msra.mxu0 %v2705
    %2728 = vmatprep.subr.bf16.mxu0 0
    %2729 = vmatpush2.bf16.msra.mxu0 0
    %2730 = vmatprep.subr.bf16.mxu0 0
    %2731 = vmatpush2.bf16.msra.mxu0 0
    %2732 = vmatprep.subr.bf16.mxu0 0
    %2733 = vmatpush2.bf16.msra.mxu0 0
    %2734 = vmatprep.subr.bf16.mxu0 0
    %2735 = vmatpush2.bf16.msra.mxu0 0
    %2736 = vmatprep.subr.bf16.mxu0 0
    %2737 = vmatpush2.bf16.msra.mxu0 0
    %2738 = vmatprep.subr.bf16.mxu0 0
    %2739 = vmatpush2.bf16.msra.mxu0 0
    %2740 = vmatprep.subr.bf16.mxu0 0
    %2741 = vmatpush2.bf16.msra.mxu0 0
    %2742 = vmatprep.subr.bf16.mxu0 0
    %2743 = vmatpush2.bf16.msra.mxu0 0
    %2744 = vmatprep.mubr.bf16.mxu0 0
    %2745 = vmatmul.mubr.bf16.gmra.mxu0 %v2710
    %v2746 = vpop.f32.mrf.mxu0
    %v2747 = vadd.f32 %v2695, %v2746
    %v2748 = vpop.f32.mrf.mxu0
    %v2749 = vpop.f32.mrf.mxu0
    %v2750 = vadd.f32 %v2695, %v2749
    %v2751 = vpop.f32.mrf.mxu0
    %2752 = vdwg.mxu0
    %v2753 = vadd.f32 %v1549, %v2747
    %v2754 = vadd.f32 %v1550, %v2750
    %s2755 = scalar_lea.vmem %s8, 1
    %v2756 = vld [vmem:[%s2755] sm:$0x1]
    %s2757 = scalar_lea.vmem %s9, 1
    %v2758 = vld [vmem:[%s2757] sm:$0x1]
    %v2759 = vsel %vm59, %v2753, 0.0
    %2760 = vadd.xlane.f32.xlu0 %v2759
    %v2761 = vpop.xlane.xlu0 %2760
    %v2762 = vsel %vm59, %v2754, 0.0
    %2763 = vadd.xlane.f32.xlu0 %v2762
    %v2764 = vpop.xlane.xlu0 %2763
    %v2765 = vmul.f32 %v2761, %v66
    %v2766 = vmul.f32 %v2764, %v66
    %v2767 = vsub.f32 %v2753, %v2765
    %v2768 = vsub.f32 %v2754, %v2766
    %v2769 = vmul.f32 %v2767, %v2767
    %v2770 = vmul.f32 %v2768, %v2768
    %v2771 = vsel %vm59, %v2769, 0.0
    %2772 = vadd.xlane.f32.xlu0 %v2771
    %v2773 = vpop.xlane.xlu0 %2772
    %v2774 = vsel %vm59, %v2770, 0.0
    %2775 = vadd.xlane.f32.xlu0 %v2774
    %v2776 = vpop.xlane.xlu0 %2775
    %v2777 = vmul.f32 %v2773, %v66
    %v2778 = vmul.f32 %v2776, %v66
    %v2779 = vadd.f32 %v2777, 1e-06
    %v2780 = vadd.f32 %v2778, 1e-06
    %v2781 = vrsqrt.pop %v2779
    %v2782 = vrsqrt.pop %v2780
    %v2783 = vmul.f32 %v2767, %v2781
    %v2784 = vmul.f32 %v2768, %v2782
    %v2786 = vlaneseq
    %v2787 = vshrl.u32 %v2786, 7
    %v2788 = vsub.s32 0, %v2787
    %v2789 = vrot.slane %v2756, %v2788
    %v2791 = vmul.f32 %v2783, %v2789
    %v2792 = vmul.f32 %v2784, %v2789
    %v2794 = vlaneseq
    %v2795 = vshrl.u32 %v2794, 7
    %v2796 = vsub.s32 0, %v2795
    %v2797 = vrot.slane %v2758, %v2796
    %v2799 = vadd.f32 %v2791, %v2797
    %v2800 = vadd.f32 %v2792, %v2797
    %v2801 = vpack.c.bf16 %v2800, %v2799
    %s2802 = scalar_lea.vmem %s10, 16
    %v2803 = vld [vmem:[%s2802] sm:$0xf]
    %v2804 = vld [vmem:[%s2802 + $0x4] sm:$0xf]
    %v2805 = vld [vmem:[%s2802 + $0x8] sm:$0xf]
    %v2806 = vld [vmem:[%s2802 + $0xc] sm:$0xf]
    %s2807 = scalar_lea.vmem %s11, 1
    %v2808 = vld [vmem:[%s2807] sm:$0x1]
    %v2810 = vlaneseq
    %v2811 = vshrl.u32 %v2810, 7
    %v2812 = vsub.s32 0, %v2811
    %v2813 = vrot.slane %v2808, %v2812
    %v2819 = vunpack.c.l.b16 %v2803
    %v2820 = vunpack.c.l.b16 %v2804
    %v2821 = vunpack.c.l.b16 %v2805
    %v2822 = vunpack.c.l.b16 %v2806
    %v2823 = vpack.c.b16 %v2820, %v2819
    %v2824 = vpack.c.b16 %v2822, %v2821
    %v2828 = vsel %vm59, %v2801, 0
    %2830 = vmatprep.subr.bf16.mxu0 0
    %2831 = vmatpush1.bf16.msra.mxu0 0
    %2832 = vmatprep.subr.bf16.mxu0 0
    %2833 = vmatpush1.bf16.msra.mxu0 0
    %2834 = vmatprep.subr.bf16.mxu0 0
    %2835 = vmatpush1.bf16.msra.mxu0 0
    %2836 = vmatprep.subr.bf16.mxu0 0
    %2837 = vmatpush1.bf16.msra.mxu0 0
    %2838 = vmatprep.subr.bf16.mxu0 0
    %2839 = vmatpush1.bf16.msra.mxu0 0
    %2840 = vmatprep.subr.bf16.mxu0 0
    %2841 = vmatpush1.bf16.msra.mxu0 0
    %2842 = vmatprep.subr.bf16.mxu0 0
    %2843 = vmatpush1.bf16.msra.mxu0 %v2824
    %2844 = vmatprep.subr.bf16.mxu0 0
    %2845 = vmatpush1.bf16.msra.mxu0 %v2823
    %2846 = vmatprep.subr.bf16.mxu0 0
    %2847 = vmatpush2.bf16.msra.mxu0 0
    %2848 = vmatprep.subr.bf16.mxu0 0
    %2849 = vmatpush2.bf16.msra.mxu0 0
    %2850 = vmatprep.subr.bf16.mxu0 0
    %2851 = vmatpush2.bf16.msra.mxu0 0
    %2852 = vmatprep.subr.bf16.mxu0 0
    %2853 = vmatpush2.bf16.msra.mxu0 0
    %2854 = vmatprep.subr.bf16.mxu0 0
    %2855 = vmatpush2.bf16.msra.mxu0 0
    %2856 = vmatprep.subr.bf16.mxu0 0
    %2857 = vmatpush2.bf16.msra.mxu0 0
    %2858 = vmatprep.subr.bf16.mxu0 0
    %2859 = vmatpush2.bf16.msra.mxu0 0
    %2860 = vmatprep.subr.bf16.mxu0 0
    %2861 = vmatpush2.bf16.msra.mxu0 0
    %2862 = vmatprep.mubr.bf16.mxu0 0
    %2863 = vmatmul.mubr.bf16.gmra.mxu0 %v2828
    %v2864 = vpop.f32.mrf.mxu0
    %v2865 = vadd.f32 %v2813, %v2864
    %v2866 = vpop.f32.mrf.mxu0
    %v2867 = vpop.f32.mrf.mxu0
    %v2868 = vadd.f32 %v2813, %v2867
    %v2869 = vpop.f32.mrf.mxu0
    %2870 = vdwg.mxu0
    %v2871 = vmax.f32 %v2865, 0.0
    %v2872 = vmax.f32 %v2868, 0.0
    %v2873 = vpack.c.bf16 %v2872, %v2871
    %s2874 = scalar_lea.vmem %s12, 32
    %v2875 = vld [vmem:[%s2874] sm:$0xf]
    %v2876 = vld [vmem:[%s2874 + $0x4] sm:$0xf]
    %v2877 = vld [vmem:[%s2874 + $0x8] sm:$0xf]
    %v2878 = vld [vmem:[%s2874 + $0xc] sm:$0xf]
    %v2879 = vld [vmem:[%s2874 + $0x10] sm:$0xf]
    %v2880 = vld [vmem:[%s2874 + $0x14] sm:$0xf]
    %v2881 = vld [vmem:[%s2874 + $0x18] sm:$0xf]
    %v2882 = vld [vmem:[%s2874 + $0x1c] sm:$0xf]
    %s2883 = scalar_lea.vmem %s13, 1
    %v2884 = vld [vmem:[%s2883] sm:$0x1]
    %v2886 = vlaneseq
    %v2887 = vshrl.u32 %v2886, 7
    %v2888 = vsub.s32 0, %v2887
    %v2889 = vrot.slane %v2884, %v2888
    %v2899 = vunpack.c.l.b16 %v2875
    %v2900 = vunpack.c.l.b16 %v2876
    %v2901 = vunpack.c.l.b16 %v2877
    %v2902 = vunpack.c.l.b16 %v2878
    %v2903 = vunpack.c.l.b16 %v2879
    %v2904 = vunpack.c.l.b16 %v2880
    %v2905 = vunpack.c.l.b16 %v2881
    %v2906 = vunpack.c.l.b16 %v2882
    %v2907 = vpack.c.b16 %v2900, %v2899
    %v2908 = vpack.c.b16 %v2902, %v2901
    %v2909 = vpack.c.b16 %v2904, %v2903
    %v2910 = vpack.c.b16 %v2906, %v2905
    %v2916 = vsel %vm1460, %v2873, 0
    %2918 = vmatprep.subr.bf16.mxu0 0
    %2919 = vmatpush1.bf16.msra.mxu0 0
    %2920 = vmatprep.subr.bf16.mxu0 0
    %2921 = vmatpush1.bf16.msra.mxu0 0
    %2922 = vmatprep.subr.bf16.mxu0 0
    %2923 = vmatpush1.bf16.msra.mxu0 0
    %2924 = vmatprep.subr.bf16.mxu0 0
    %2925 = vmatpush1.bf16.msra.mxu0 0
    %2926 = vmatprep.subr.bf16.mxu0 0
    %2927 = vmatpush1.bf16.msra.mxu0 %v2910
    %2928 = vmatprep.subr.bf16.mxu0 0
    %2929 = vmatpush1.bf16.msra.mxu0 %v2909
    %2930 = vmatprep.subr.bf16.mxu0 0
    %2931 = vmatpush1.bf16.msra.mxu0 %v2908
    %2932 = vmatprep.subr.bf16.mxu0 0
    %2933 = vmatpush1.bf16.msra.mxu0 %v2907
    %2934 = vmatprep.subr.bf16.mxu0 0
    %2935 = vmatpush2.bf16.msra.mxu0 0
    %2936 = vmatprep.subr.bf16.mxu0 0
    %2937 = vmatpush2.bf16.msra.mxu0 0
    %2938 = vmatprep.subr.bf16.mxu0 0
    %2939 = vmatpush2.bf16.msra.mxu0 0
    %2940 = vmatprep.subr.bf16.mxu0 0
    %2941 = vmatpush2.bf16.msra.mxu0 0
    %2942 = vmatprep.subr.bf16.mxu0 0
    %2943 = vmatpush2.bf16.msra.mxu0 0
    %2944 = vmatprep.subr.bf16.mxu0 0
    %2945 = vmatpush2.bf16.msra.mxu0 0
    %2946 = vmatprep.subr.bf16.mxu0 0
    %2947 = vmatpush2.bf16.msra.mxu0 0
    %2948 = vmatprep.subr.bf16.mxu0 0
    %2949 = vmatpush2.bf16.msra.mxu0 0
    %2950 = vmatprep.mubr.bf16.mxu0 0
    %2951 = vmatmul.mubr.bf16.gmra.mxu0 %v2916
    %v2952 = vpop.f32.mrf.mxu0
    %v2953 = vadd.f32 %v2889, %v2952
    %v2954 = vpop.f32.mrf.mxu0
    %v2955 = vpop.f32.mrf.mxu0
    %v2956 = vadd.f32 %v2889, %v2955
    %v2957 = vpop.f32.mrf.mxu0
    %2958 = vdwg.mxu0
    %v2959 = vadd.f32 %v2799, %v2953
    %v2960 = vadd.f32 %v2800, %v2956
    %s2961 = scalar_lea.vmem %s14, 1
    %v2962 = vld [vmem:[%s2961] sm:$0x1]
    %s2963 = scalar_lea.vmem %s15, 1
    %v2964 = vld [vmem:[%s2963] sm:$0x1]
    %v2965 = vsel %vm59, %v2959, 0.0
    %2966 = vadd.xlane.f32.xlu0 %v2965
    %v2967 = vpop.xlane.xlu0 %2966
    %v2968 = vsel %vm59, %v2960, 0.0
    %2969 = vadd.xlane.f32.xlu0 %v2968
    %v2970 = vpop.xlane.xlu0 %2969
    %v2971 = vmul.f32 %v2967, %v66
    %v2972 = vmul.f32 %v2970, %v66
    %v2973 = vsub.f32 %v2959, %v2971
    %v2974 = vsub.f32 %v2960, %v2972
    %v2975 = vmul.f32 %v2973, %v2973
    %v2976 = vmul.f32 %v2974, %v2974
    %v2977 = vsel %vm59, %v2975, 0.0
    %2978 = vadd.xlane.f32.xlu0 %v2977
    %v2979 = vpop.xlane.xlu0 %2978
    %v2980 = vsel %vm59, %v2976, 0.0
    %2981 = vadd.xlane.f32.xlu0 %v2980
    %v2982 = vpop.xlane.xlu0 %2981
    %v2983 = vmul.f32 %v2979, %v66
    %v2984 = vmul.f32 %v2982, %v66
    %v2985 = vadd.f32 %v2983, 1e-06
    %v2986 = vadd.f32 %v2984, 1e-06
    %v2987 = vrsqrt.pop %v2985
    %v2988 = vrsqrt.pop %v2986
    %v2989 = vmul.f32 %v2973, %v2987
    %v2990 = vmul.f32 %v2974, %v2988
    %v2992 = vlaneseq
    %v2993 = vshrl.u32 %v2992, 7
    %v2994 = vsub.s32 0, %v2993
    %v2995 = vrot.slane %v2962, %v2994
    %v2997 = vmul.f32 %v2989, %v2995
    %v2998 = vmul.f32 %v2990, %v2995
    %v3000 = vlaneseq
    %v3001 = vshrl.u32 %v3000, 7
    %v3002 = vsub.s32 0, %v3001
    %v3003 = vrot.slane %v2964, %v3002
    %v3005 = vadd.f32 %v2997, %v3003
    %v3006 = vadd.f32 %v2998, %v3003
    %3007 = vst.msk [vmem:[#allocation2] sm:$0xff] %vm59, %v3005
    %3008 = vst.msk [vmem:[#allocation2 + $0x8] sm:$0xff] %vm59, %v3006
    // Predicated region
    $region66: #{_lambda_.1} parent=1 // pred_check
      _
    $region67: #{_lambda_.1} parent=1 // pred_check_branch
      %3010 = sbr.rel (0) target = $region69
    $region68: #{_lambda_.1} parent=1 // pred_region
      %s3012 = ssub.s32 256, 256
      %3013 = vsyncadd [#allocation3], %s3012
      %s3014 = sshll.u32 [#allocation2], 4
      %s3015 = int_to_ptr.vmem [resolvable:$true] %s3014
      %3020 = dma.vmem_to_hbm [thread:$0]  %s3015, 256, %s16, [#allocation3], 128, 128, 8
    $region69: #{_lambda_.1} parent=1 // pred_fallthru
      _
    // Predicated region
    $region70: #{_lambda_.1} parent=1 // pred_check
      _
    $region71: #{_lambda_.1} parent=1 // pred_check_branch
      %3022 = sbr.rel (0) target = $region73
    $region72: #{_lambda_.1} parent=1 // pred_region
      %3023 = dma.done [#allocation3], 256
    $region73: #{_lambda_.1} parent=1 // pred_fallthru
      _
    %3024 = vsyncpa [#allocation3], 1

</llo_original>
